<compile_context>
chip_gen: v5e
topology: v5e:2x2
jax: 0.10.0
libtpu: 0.0.40
codegen_flags: <defaults>
</compile_context>

<pallas_src>
import math
import functools

import jax
import jax.numpy as jnp
from jax import lax
from jax.experimental import pallas as pl
from jax.experimental.pallas import tpu as pltpu


# ----------------------------- small helpers ---------------------------------

def _layernorm(h, g, b, eps=1e-5):
    """LayerNorm over the last axis (f32 math).  g/b broadcast as (1, C)."""
    mean = jnp.mean(h, axis=-1, keepdims=True)
    var = jnp.mean(jnp.square(h - mean), axis=-1, keepdims=True)
    return (h - mean) * lax.rsqrt(var + eps) * g + b


def sinusoidal_pe(S, D):
    # The reference's `sinusoidal_positional_embedding` helper is not part of
    # the snippet; we assume the canonical additive sin/cos table (x + PE),
    # matching the previous implementation.
    pos = jnp.arange(S, dtype=jnp.float32)[:, None]
    i = jnp.arange(0, D, 2, dtype=jnp.float32)
    div = jnp.exp(-(jnp.log(10000.0) / D) * i)
    pe = jnp.zeros((S, D), jnp.float32)
    pe = pe.at[:, 0::2].set(jnp.sin(pos * div))
    pe = pe.at[:, 1::2].set(jnp.cos(pos * div))
    return pe


# --------------------------- fused stack kernel -------------------------------

def _encoder_stack_kernel(
    pe_ref, pin_ref, pw_ref, pb_ref,
    wqk_ref, bqk_ref, wv_ref, bv_ref, wo_ref, bo_ref,
    w1_ref, b1_ref, w2_ref, b2_ref,
    ln1g_ref, ln1b_ref, ln2g_ref, ln2b_ref,
    lng_ref, lnb_ref,
    o_ref,
    *, B, S, C, nhead):
    """One grid step = one post-norm TransformerEncoderLayer for one stream.

    grid = (stream, layer).  o_ref is the resident (1, B*S, C) block that
    carries the activations across the layer axis entirely in VMEM.
    """
    l = pl.program_id(1)
    n_layers = pl.num_programs(1)
    BS = B * S
    Dh = C // nhead
    scale = 1.0 / math.sqrt(Dh)

    def mm(a, w_ref, b_ref):
        # bf16 operands to the MXU, f32 accumulation, fused bias add.
        return (jnp.dot(a.astype(jnp.bfloat16), w_ref[0, 0],
                        preferred_element_type=jnp.float32) + b_ref[0, 0])

    # ---- layer 0: fused row_proj / col_proj ----------------------------------
    @pl.when(l == 0)
    def _():
        proj = (jnp.dot(pin_ref[0].astype(jnp.bfloat16), pw_ref[0],
                        preferred_element_type=jnp.float32) + pb_ref[0])
        o_ref[...] = proj[None]

    pe = pe_ref[...]                                              # (S, C) f32

    # Outer-loop PE add (features = sinusoidal_positional_embedding(features)).
    src = (o_ref[0].reshape(B, S, C) + pe[None]).reshape(BS, C)

    # ---- self-attention: q = k = src + PE (added again, as in the reference),
    #      value = src, residual = src ----------------------------------------
    qk_in = (src.reshape(B, S, C) + pe[None]).reshape(BS, C)
    qk = mm(qk_in, wqk_ref, bqk_ref)                              # (BS, 2C)
    v = mm(src, wv_ref, bv_ref)                                   # (BS, C)

    q3 = (qk[:, :C] * scale).reshape(B, S, C).astype(jnp.bfloat16)
    k3 = qk[:, C:].reshape(B, S, C).astype(jnp.bfloat16)
    v3 = v.reshape(B, S, C).astype(jnp.bfloat16)

    heads = []
    for h in range(nhead):                                        # static unroll
        sl = slice(h * Dh, (h + 1) * Dh)
        s = jnp.einsum('bqd,bkd->bqk', q3[:, :, sl], k3[:, :, sl],
                       preferred_element_type=jnp.float32)        # (B, S, S)
        m = jnp.max(s, axis=-1, keepdims=True)
        p = jnp.exp(s - m)
        p = p * pl.reciprocal(jnp.sum(p, axis=-1, keepdims=True), approx=True)
        heads.append(jnp.einsum('bqk,bkd->bqd', p.astype(jnp.bfloat16),
                                v3[:, :, sl],
                                preferred_element_type=jnp.float32))
    attn = jnp.concatenate(heads, axis=-1).reshape(BS, C)
    attn = mm(attn, wo_ref, bo_ref)                               # out-projection

    # ---- post-norm residual blocks -------------------------------------------
    h1 = _layernorm(src + attn, ln1g_ref[0, 0], ln1b_ref[0, 0])   # norm1(res+attn)
    ff = jnp.maximum(mm(h1, w1_ref, b1_ref), 0.0)                 # linear1 + relu
    ff = mm(ff, w2_ref, b2_ref)                                   # linear2
    out = _layernorm(h1 + ff, ln2g_ref[0, 0], ln2b_ref[0, 0])     # norm2(res+ffn)

    o_ref[...] = out[None]

    # ---- final encoder LayerNorm, fused into the last layer step -------------
    @pl.when(l == n_layers - 1)
    def _():
        o_ref[...] = _layernorm(out, lng_ref[...], lnb_ref[...])[None]


def encoder_stack(pin, pw, pb, lp, ln_g, ln_b, *, B, S, C, nhead):
    """Run the full layer stack for G independent streams in one pallas_call.

    pin: (G, B*S, KP) projection inputs, pw: (G, KP, C), pb: (G, 1, C),
    lp: dict of per-layer weights stacked to (G, L, ...).  Returns (G, B*S, C).
    """
    G, BS, KP = pin.shape
    L = lp['wqk'].shape[1]
    F = lp['w1'].shape[-1]
    C2 = 2 * C

    pe = sinusoidal_pe(S, C)

    def per_layer(*shape):          # (G, L, *shape): new block per (stream, layer)
        return pl.BlockSpec((1, 1) + shape,
                            lambda g, l: (g, l) + (0,) * len(shape))

    def per_stream(*shape):         # (G, *shape): resident across the layer axis
        return pl.BlockSpec((1,) + shape,
                            lambda g, l: (g,) + (0,) * len(shape))

    def shared(*shape):             # same block for every grid step
        return pl.BlockSpec(shape, lambda g, l: (0,) * len(shape))

    in_specs = [
        shared(S, C),                          # pe
        per_stream(BS, KP),                    # projection input
        per_stream(KP, C),                     # projection weight (bf16)
        per_stream(1, C),                      # projection bias
        per_layer(C, C2), per_layer(1, C2),    # wqk, bqk
        per_layer(C, C), per_layer(1, C),      # wv, bv
        per_layer(C, C), per_layer(1, C),      # wo, bo
        per_layer(C, F), per_layer(1, F),      # w1, b1
        per_layer(F, C), per_layer(1, C),      # w2, b2
        per_layer(1, C), per_layer(1, C),      # ln1 gamma / beta
        per_layer(1, C), per_layer(1, C),      # ln2 gamma / beta
        shared(1, C), shared(1, C),            # final LayerNorm gamma / beta
    ]
    out_specs = pl.BlockSpec((1, BS, C), lambda g, l: (g, 0, 0))

    kernel = functools.partial(_encoder_stack_kernel, B=B, S=S, C=C, nhead=nhead)

    return pl.pallas_call(
        kernel,
        out_shape=jax.ShapeDtypeStruct((G, BS, C), jnp.float32),
        grid=(G, L),
        in_specs=in_specs,
        out_specs=out_specs,
        compiler_params=pltpu.CompilerParams(
            # stream axis = independent work (megacore on v7x); the layer axis
            # carries the resident activation so it stays sequential.
            dimension_semantics=("parallel", "arbitrary")),
    )(pe, pin, pw.astype(jnp.bfloat16), pb,
      lp['wqk'], lp['bqk'], lp['wv'], lp['bv'], lp['wo'], lp['bo'],
      lp['w1'], lp['b1'], lp['w2'], lp['b2'],
      lp['ln1_g'], lp['ln1_b'], lp['ln2_g'], lp['ln2_b'],
      ln_g.reshape(1, C), ln_b.reshape(1, C))


def stack_layer_params(streams):
    """streams: list (one per stream) of lists (one per layer) of param dicts.
    Returns arrays stacked to (G, L, ...); matmul weights cast to bf16."""
    def stack(fn, dtype=jnp.float32):
        return jnp.stack(
            [jnp.stack([fn(p) for p in layers], 0) for layers in streams], 0
        ).astype(dtype)

    bf16 = jnp.bfloat16
    return dict(
        wqk=stack(lambda p: jnp.concatenate([p['wq'], p['wk']], axis=1), bf16),
        bqk=stack(lambda p: jnp.concatenate([p['bq'], p['bk']], axis=0)[None, :]),
        wv=stack(lambda p: p['wv'], bf16), bv=stack(lambda p: p['bv'][None, :]),
        wo=stack(lambda p: p['wo'], bf16), bo=stack(lambda p: p['bo'][None, :]),
        w1=stack(lambda p: p['w1'], bf16), b1=stack(lambda p: p['b1'][None, :]),
        w2=stack(lambda p: p['w2'], bf16), b2=stack(lambda p: p['b2'][None, :]),
        ln1_g=stack(lambda p: p['ln1_g'][None, :]),
        ln1_b=stack(lambda p: p['ln1_b'][None, :]),
        ln2_g=stack(lambda p: p['ln2_g'][None, :]),
        ln2_b=stack(lambda p: p['ln2_b'][None, :]),
    )


# ------------------------------ forward pass ----------------------------------

def row_column_attention_encoder(feature_map, params, nhead):
    B, C, H, W = feature_map.shape
    x = feature_map.astype(jnp.float32)

    # Projection inputs.
    # TODO(synk): the NCHW -> (B*W, C*H) / (B*H, C*W) gather is not a
    # rectangular tile, so this one-time relayout stays in XLA rather than a
    # BlockSpec index_map.
    row_in = x.reshape(B, C * H, W).transpose(0, 2, 1).reshape(B * W, C * H)
    col_in = x.transpose(0, 2, 1, 3).reshape(B * H, C * W)

    if H == W:
        # Batch the two independent streams into a single fused kernel call.
        pin = jnp.stack([row_in, col_in], axis=0)                     # (2, B*S, C*S)
        pw = jnp.stack([params['row_proj_w'], params['col_proj_w']], axis=0)
        pb = jnp.stack([params['row_proj_b'], params['col_proj_b']], axis=0)[:, None, :]
        lp = stack_layer_params([params['row_layers'], params['col_layers']])
        out = encoder_stack(pin, pw, pb, lp, params['ln_g'], params['ln_b'],
                            B=B, S=W, C=C, nhead=nhead)               # (2, B*S, C)
        row, col = out[0].reshape(B, W, C), out[1].reshape(B, H, C)
    else:
        row = encoder_stack(
            row_in[None], params['row_proj_w'][None],
            params['row_proj_b'][None, None, :],
            stack_layer_params([params['row_layers']]),
            params['ln_g'], params['ln_b'],
            B=B, S=W, C=C, nhead=nhead)[0].reshape(B, W, C)
        col = encoder_stack(
            col_in[None], params['col_proj_w'][None],
            params['col_proj_b'][None, None, :],
            stack_layer_params([params['col_layers']]),
            params['ln_g'], params['ln_b'],
            B=B, S=H, C=C, nhead=nhead)[0].reshape(B, H, C)

    # Final LayerNorm is already fused into the last layer step in-kernel;
    # only the concatenation remains.
    return jnp.concatenate([row, col], axis=1)                        # (B, W+H, C)


# --------------------------- parameter init -----------------------------------

def init_layer_params(key, C):
    d_ff = 4 * C
    ks = jax.random.split(key, 8)
    n = lambda k, shp: 0.02 * jax.random.normal(k, shp, jnp.float32)
    z = lambda shp: jnp.zeros(shp, jnp.float32)
    o = lambda shp: jnp.ones(shp, jnp.float32)
    return dict(
        wq=n(ks[0], (C, C)), bq=z((C,)),
        wk=n(ks[1], (C, C)), bk=z((C,)),
        wv=n(ks[2], (C, C)), bv=z((C,)),
        wo=n(ks[3], (C, C)), bo=z((C,)),
        w1=n(ks[4], (C, d_ff)), b1=n(ks[5], (d_ff,)),
        w2=n(ks[6], (d_ff, C)), b2=n(ks[7], (C,)),
        ln1_g=o((C,)), ln1_b=z((C,)),
        ln2_g=o((C,)), ln2_b=z((C,)),
    )


def init_params(key, C, H, W, num_layers):
    ks = jax.random.split(key, 2 * num_layers + 2)
    return dict(
        row_proj_w=0.02 * jax.random.normal(ks[0], (C * H, C), jnp.float32),
        row_proj_b=jnp.zeros((C,), jnp.float32),
        col_proj_w=0.02 * jax.random.normal(ks[1], (C * W, C), jnp.float32),
        col_proj_b=jnp.zeros((C,), jnp.float32),
        ln_g=jnp.ones((C,), jnp.float32),
        ln_b=jnp.zeros((C,), jnp.float32),
        row_layers=[init_layer_params(ks[2 + i], C) for i in range(num_layers)],
        col_layers=[init_layer_params(ks[2 + num_layers + i], C)
                    for i in range(num_layers)],
    )


# --------------------------------- main ----------------------------------------

if __name__ == "__main__":
    B, C, H, W = 2, 32, 8, 8          # embed_dim = C = 32, H = W = 8
    num_layers, num_heads = 2, 8      # small stack for a quick demo run

    key = jax.random.PRNGKey(0)
    kx, kp = jax.random.split(key)
    feature_map = jax.random.normal(kx, (B, C, H, W), jnp.float32)
    params = init_params(kp, C, H, W, num_layers)

    fwd = jax.jit(functools.partial(row_column_attention_encoder, nhead=num_heads))
    out = fwd(feature_map, params)
    jax.block_until_ready(out)
    assert out.shape == (B, W + H, C), out.shape
    assert bool(jnp.all(jnp.isfinite(out))), "non-finite output"
    print("KERNEL_OK")
</pallas_src>

<mosaic_0001>
module attributes {stable_mosaic.version = 11 : i64} {
  func.func @_encoder_stack_kernel(%arg0: i32, %arg1: i32, %arg2: memref<8x32xf32, #tpu.memory_space<vmem>>, %arg3: memref<1x16x256xf32, #tpu.memory_space<vmem>>, %arg4: memref<1x256x32xbf16, #tpu.memory_space<vmem>>, %arg5: memref<1x1x32xf32, #tpu.memory_space<vmem>>, %arg6: memref<1x1x32x64xbf16, #tpu.memory_space<vmem>>, %arg7: memref<1x1x1x64xf32, #tpu.memory_space<vmem>>, %arg8: memref<1x1x32x32xbf16, #tpu.memory_space<vmem>>, %arg9: memref<1x1x1x32xf32, #tpu.memory_space<vmem>>, %arg10: memref<1x1x32x32xbf16, #tpu.memory_space<vmem>>, %arg11: memref<1x1x1x32xf32, #tpu.memory_space<vmem>>, %arg12: memref<1x1x32x128xbf16, #tpu.memory_space<vmem>>, %arg13: memref<1x1x1x128xf32, #tpu.memory_space<vmem>>, %arg14: memref<1x1x128x32xbf16, #tpu.memory_space<vmem>>, %arg15: memref<1x1x1x32xf32, #tpu.memory_space<vmem>>, %arg16: memref<1x1x1x32xf32, #tpu.memory_space<vmem>>, %arg17: memref<1x1x1x32xf32, #tpu.memory_space<vmem>>, %arg18: memref<1x1x1x32xf32, #tpu.memory_space<vmem>>, %arg19: memref<1x1x1x32xf32, #tpu.memory_space<vmem>>, %arg20: memref<1x32xf32, #tpu.memory_space<vmem>>, %arg21: memref<1x32xf32, #tpu.memory_space<vmem>>, %arg22: memref<1x16x32xf32, #tpu.memory_space<vmem>>) attributes {dimension_semantics = [#tpu.dimension_semantics<parallel>, #tpu.dimension_semantics<arbitrary>], iteration_bounds = array<i64: 2, 2>, scalar_prefetch = 0 : i64, scratch_operands = 0 : i64, tpu.core_type = #tpu.core_type<tc>, window_params = [{pipeline_mode = #tpu.pipeline_mode<synchronous>, transform_indices = @transform_0, window_bounds = array<i64: 8, 32>}, {transform_indices = @transform_1, window_bounds = array<i64: 1, 16, 256>}, {transform_indices = @transform_2, window_bounds = array<i64: 1, 256, 32>}, {transform_indices = @transform_3, window_bounds = array<i64: 1, 1, 32>}, {transform_indices = @transform_4, window_bounds = array<i64: 1, 1, 32, 64>}, {transform_indices = @transform_5, window_bounds = array<i64: 1, 1, 1, 64>}, {transform_indices = @transform_6, window_bounds = array<i64: 1, 1, 32, 32>}, {transform_indices = @transform_7, window_bounds = array<i64: 1, 1, 1, 32>}, {transform_indices = @transform_8, window_bounds = array<i64: 1, 1, 32, 32>}, {transform_indices = @transform_9, window_bounds = array<i64: 1, 1, 1, 32>}, {transform_indices = @transform_10, window_bounds = array<i64: 1, 1, 32, 128>}, {transform_indices = @transform_11, window_bounds = array<i64: 1, 1, 1, 128>}, {transform_indices = @transform_12, window_bounds = array<i64: 1, 1, 128, 32>}, {transform_indices = @transform_13, window_bounds = array<i64: 1, 1, 1, 32>}, {transform_indices = @transform_14, window_bounds = array<i64: 1, 1, 1, 32>}, {transform_indices = @transform_15, window_bounds = array<i64: 1, 1, 1, 32>}, {transform_indices = @transform_16, window_bounds = array<i64: 1, 1, 1, 32>}, {transform_indices = @transform_17, window_bounds = array<i64: 1, 1, 1, 32>}, {pipeline_mode = #tpu.pipeline_mode<synchronous>, transform_indices = @transform_18, window_bounds = array<i64: 1, 32>}, {pipeline_mode = #tpu.pipeline_mode<synchronous>, transform_indices = @transform_19, window_bounds = array<i64: 1, 32>}, {transform_indices = @transform_20, window_bounds = array<i64: 1, 16, 32>}]} {
    %c0_i32 = arith.constant 0 : i32
    %0 = arith.cmpi eq, %arg1, %c0_i32 : i32
    %1 = arith.extui %0 : i1 to i32
    %c0_i32_0 = arith.constant 0 : i32
    %2 = arith.cmpi ne, %1, %c0_i32_0 : i32
    scf.if %2 {
      %c0_113 = arith.constant 0 : index
      %c0_114 = arith.constant 0 : index
      %c0_115 = arith.constant 0 : index
      %257 = vector.load %arg3[%c0_113, %c0_114, %c0_115] : memref<1x16x256xf32, #tpu.memory_space<vmem>>, vector<1x16x256xf32>
      %258 = vector.shape_cast %257 : vector<1x16x256xf32> to vector<16x256xf32>
      %259 = arith.truncf %258 : vector<16x256xf32> to vector<16x256xbf16>
      %c0_116 = arith.constant 0 : index
      %c0_117 = arith.constant 0 : index
      %c0_118 = arith.constant 0 : index
      %260 = vector.load %arg4[%c0_116, %c0_117, %c0_118] : memref<1x256x32xbf16, #tpu.memory_space<vmem>>, vector<1x256x32xbf16>
      %261 = vector.shape_cast %260 : vector<1x256x32xbf16> to vector<256x32xbf16>
      %cst_119 = arith.constant dense<0.000000e+00> : vector<16x32xf32>
      %262 = tpu.matmul %259, %261, %cst_119 {dimension_numbers = #tpu.dot_dimension_numbers<[1], [0], [0], [1], [0, 0, 1, 1], [], []>} : vector<16x256xbf16>, vector<256x32xbf16>, vector<16x32xf32> -> vector<16x32xf32>
      %c0_120 = arith.constant 0 : index
      %c0_121 = arith.constant 0 : index
      %c0_122 = arith.constant 0 : index
      %263 = vector.load %arg5[%c0_120, %c0_121, %c0_122] : memref<1x1x32xf32, #tpu.memory_space<vmem>>, vector<1x1x32xf32>
      %264 = vector.shape_cast %263 : vector<1x1x32xf32> to vector<1x32xf32>
      %265 = vector.broadcast %264 : vector<1x32xf32> to vector<16x32xf32>
      %266 = arith.addf %262, %265 : vector<16x32xf32>
      %267 = vector.shape_cast %266 : vector<16x32xf32> to vector<1x16x32xf32>
      %c0_123 = arith.constant 0 : index
      %c0_124 = arith.constant 0 : index
      %c0_125 = arith.constant 0 : index
      %268 = vector.load %arg22[%c0_123, %c0_124, %c0_125] : memref<1x16x32xf32, #tpu.memory_space<vmem>>, vector<1x16x32xf32>
      tpu.vector_store %arg22[%c0_123, %c0_124, %c0_125], %267 {strides = array<i32>} : memref<1x16x32xf32, #tpu.memory_space<vmem>>, vector<1x16x32xf32>,
    } else {
    }
    %c0 = arith.constant 0 : index
    %c0_1 = arith.constant 0 : index
    %3 = vector.load %arg2[%c0, %c0_1] : memref<8x32xf32, #tpu.memory_space<vmem>>, vector<8x32xf32>
    %c0_2 = arith.constant 0 : index
    %c0_3 = arith.constant 0 : index
    %c0_4 = arith.constant 0 : index
    %4 = vector.load %arg22[%c0_2, %c0_3, %c0_4] : memref<1x16x32xf32, #tpu.memory_space<vmem>>, vector<1x16x32xf32>
    %5 = vector.shape_cast %4 : vector<1x16x32xf32> to vector<16x32xf32>
    %6 = vector.shape_cast %5 : vector<16x32xf32> to vector<2x8x32xf32>
    %7 = vector.shape_cast %3 : vector<8x32xf32> to vector<1x8x32xf32>
    %8 = vector.broadcast %7 : vector<1x8x32xf32> to vector<2x8x32xf32>
    %9 = arith.addf %6, %8 : vector<2x8x32xf32>
    %10 = vector.shape_cast %9 : vector<2x8x32xf32> to vector<16x32xf32>
    %11 = vector.shape_cast %10 : vector<16x32xf32> to vector<2x8x32xf32>
    %12 = vector.shape_cast %3 : vector<8x32xf32> to vector<1x8x32xf32>
    %13 = vector.broadcast %12 : vector<1x8x32xf32> to vector<2x8x32xf32>
    %14 = arith.addf %11, %13 : vector<2x8x32xf32>
    %15 = vector.shape_cast %14 : vector<2x8x32xf32> to vector<16x32xf32>
    %16 = arith.truncf %15 : vector<16x32xf32> to vector<16x32xbf16>
    %c0_5 = arith.constant 0 : index
    %c0_6 = arith.constant 0 : index
    %c0_7 = arith.constant 0 : index
    %c0_8 = arith.constant 0 : index
    %17 = vector.load %arg6[%c0_5, %c0_6, %c0_7, %c0_8] : memref<1x1x32x64xbf16, #tpu.memory_space<vmem>>, vector<1x1x32x64xbf16>
    %18 = vector.shape_cast %17 : vector<1x1x32x64xbf16> to vector<32x64xbf16>
    %cst = arith.constant dense<0.000000e+00> : vector<16x64xf32>
    %19 = tpu.matmul %16, %18, %cst {dimension_numbers = #tpu.dot_dimension_numbers<[1], [0], [0], [1], [0, 0, 1, 1], [], []>} : vector<16x32xbf16>, vector<32x64xbf16>, vector<16x64xf32> -> vector<16x64xf32>
    %c0_9 = arith.constant 0 : index
    %c0_10 = arith.constant 0 : index
    %c0_11 = arith.constant 0 : index
    %c0_12 = arith.constant 0 : index
    %20 = vector.load %arg7[%c0_9, %c0_10, %c0_11, %c0_12] : memref<1x1x1x64xf32, #tpu.memory_space<vmem>>, vector<1x1x1x64xf32>
    %21 = vector.shape_cast %20 : vector<1x1x1x64xf32> to vector<1x64xf32>
    %22 = vector.broadcast %21 : vector<1x64xf32> to vector<16x64xf32>
    %23 = arith.addf %19, %22 : vector<16x64xf32>
    %24 = arith.truncf %10 : vector<16x32xf32> to vector<16x32xbf16>
    %c0_13 = arith.constant 0 : index
    %c0_14 = arith.constant 0 : index
    %c0_15 = arith.constant 0 : index
    %c0_16 = arith.constant 0 : index
    %25 = vector.load %arg8[%c0_13, %c0_14, %c0_15, %c0_16] : memref<1x1x32x32xbf16, #tpu.memory_space<vmem>>, vector<1x1x32x32xbf16>
    %26 = vector.shape_cast %25 : vector<1x1x32x32xbf16> to vector<32x32xbf16>
    %cst_17 = arith.constant dense<0.000000e+00> : vector<16x32xf32>
    %27 = tpu.matmul %24, %26, %cst_17 {dimension_numbers = #tpu.dot_dimension_numbers<[1], [0], [0], [1], [0, 0, 1, 1], [], []>} : vector<16x32xbf16>, vector<32x32xbf16>, vector<16x32xf32> -> vector<16x32xf32>
    %c0_18 = arith.constant 0 : index
    %c0_19 = arith.constant 0 : index
    %c0_20 = arith.constant 0 : index
    %c0_21 = arith.constant 0 : index
    %28 = vector.load %arg9[%c0_18, %c0_19, %c0_20, %c0_21] : memref<1x1x1x32xf32, #tpu.memory_space<vmem>>, vector<1x1x1x32xf32>
    %29 = vector.shape_cast %28 : vector<1x1x1x32xf32> to vector<1x32xf32>
    %30 = vector.broadcast %29 : vector<1x32xf32> to vector<16x32xf32>
    %31 = arith.addf %27, %30 : vector<16x32xf32>
    %32 = vector.extract_strided_slice %23 {offsets = [0, 0], sizes = [16, 32], strides = [1, 1]} : vector<16x64xf32> to vector<16x32xf32>
    %cst_22 = arith.constant 5.000000e-01 : f32
    %33 = vector.broadcast %cst_22 : f32 to vector<16x32xf32>
    %34 = arith.mulf %32, %33 : vector<16x32xf32>
    %35 = vector.shape_cast %34 : vector<16x32xf32> to vector<2x8x32xf32>
    %36 = arith.truncf %35 : vector<2x8x32xf32> to vector<2x8x32xbf16>
    %37 = vector.extract_strided_slice %23 {offsets = [0, 32], sizes = [16, 32], strides = [1, 1]} : vector<16x64xf32> to vector<16x32xf32>
    %38 = vector.shape_cast %37 : vector<16x32xf32> to vector<2x8x32xf32>
    %39 = arith.truncf %38 : vector<2x8x32xf32> to vector<2x8x32xbf16>
    %40 = vector.shape_cast %31 : vector<16x32xf32> to vector<2x8x32xf32>
    %41 = arith.truncf %40 : vector<2x8x32xf32> to vector<2x8x32xbf16>
    %42 = vector.extract_strided_slice %36 {offsets = [0, 0, 0], sizes = [2, 8, 4], strides = [1, 1, 1]} : vector<2x8x32xbf16> to vector<2x8x4xbf16>
    %43 = vector.extract_strided_slice %39 {offsets = [0, 0, 0], sizes = [2, 8, 4], strides = [1, 1, 1]} : vector<2x8x32xbf16> to vector<2x8x4xbf16>
    "tpu.trace_start"() <{level = 10 : i32, message = "bqd,bkd->bqk"}> : () -> ()
    %cst_23 = arith.constant dense<0.000000e+00> : vector<2x8x8xf32>
    %44 = tpu.matmul %42, %43, %cst_23 {dimension_numbers = #tpu.dot_dimension_numbers<[2], [2], [1], [1], [0, 0, 0, 1, 1, 1], [0], [0]>} : vector<2x8x4xbf16>, vector<2x8x4xbf16>, vector<2x8x8xf32> -> vector<2x8x8xf32>
    "tpu.trace_stop"() : () -> ()
    %cst_24 = arith.constant dense<0xFF800000> : vector<2x8xf32>
    %45 = vector.multi_reduction <maximumf>, %44, %cst_24 [2] : vector<2x8x8xf32> to vector<2x8xf32>
    %46 = vector.shape_cast %45 : vector<2x8xf32> to vector<2x8x1xf32>
    %47 = vector.broadcast %46 : vector<2x8x1xf32> to vector<2x8x8xf32>
    %48 = arith.subf %44, %47 : vector<2x8x8xf32>
    %49 = math.exp %48 : vector<2x8x8xf32>
    %cst_25 = arith.constant dense<0.000000e+00> : vector<2x8xf32>
    %50 = vector.multi_reduction <add>, %49, %cst_25 [2] : vector<2x8x8xf32> to vector<2x8xf32>
    %51 = vector.shape_cast %50 : vector<2x8xf32> to vector<2x8x1xf32>
    %52 = tpu.reciprocal %51 {approx = true} : vector<2x8x1xf32> -> vector<2x8x1xf32>
    %53 = vector.broadcast %52 : vector<2x8x1xf32> to vector<2x8x8xf32>
    %54 = arith.mulf %49, %53 : vector<2x8x8xf32>
    %55 = arith.truncf %54 : vector<2x8x8xf32> to vector<2x8x8xbf16>
    %56 = vector.extract_strided_slice %41 {offsets = [0, 0, 0], sizes = [2, 8, 4], strides = [1, 1, 1]} : vector<2x8x32xbf16> to vector<2x8x4xbf16>
    "tpu.trace_start"() <{level = 10 : i32, message = "bqk,bkd->bqd"}> : () -> ()
    %cst_26 = arith.constant dense<0.000000e+00> : vector<2x8x4xf32>
    %57 = tpu.matmul %55, %56, %cst_26 {dimension_numbers = #tpu.dot_dimension_numbers<[2], [1], [1], [2], [0, 0, 0, 1, 1, 2], [0], [0]>} : vector<2x8x8xbf16>, vector<2x8x4xbf16>, vector<2x8x4xf32> -> vector<2x8x4xf32>
    "tpu.trace_stop"() : () -> ()
    %58 = vector.extract_strided_slice %36 {offsets = [0, 0, 4], sizes = [2, 8, 4], strides = [1, 1, 1]} : vector<2x8x32xbf16> to vector<2x8x4xbf16>
    %59 = vector.extract_strided_slice %39 {offsets = [0, 0, 4], sizes = [2, 8, 4], strides = [1, 1, 1]} : vector<2x8x32xbf16> to vector<2x8x4xbf16>
    "tpu.trace_start"() <{level = 10 : i32, message = "bqd,bkd->bqk"}> : () -> ()
    %cst_27 = arith.constant dense<0.000000e+00> : vector<2x8x8xf32>
    %60 = tpu.matmul %58, %59, %cst_27 {dimension_numbers = #tpu.dot_dimension_numbers<[2], [2], [1], [1], [0, 0, 0, 1, 1, 1], [0], [0]>} : vector<2x8x4xbf16>, vector<2x8x4xbf16>, vector<2x8x8xf32> -> vector<2x8x8xf32>
    "tpu.trace_stop"() : () -> ()
    %cst_28 = arith.constant dense<0xFF800000> : vector<2x8xf32>
    %61 = vector.multi_reduction <maximumf>, %60, %cst_28 [2] : vector<2x8x8xf32> to vector<2x8xf32>
    %62 = vector.shape_cast %61 : vector<2x8xf32> to vector<2x8x1xf32>
    %63 = vector.broadcast %62 : vector<2x8x1xf32> to vector<2x8x8xf32>
    %64 = arith.subf %60, %63 : vector<2x8x8xf32>
    %65 = math.exp %64 : vector<2x8x8xf32>
    %cst_29 = arith.constant dense<0.000000e+00> : vector<2x8xf32>
    %66 = vector.multi_reduction <add>, %65, %cst_29 [2] : vector<2x8x8xf32> to vector<2x8xf32>
    %67 = vector.shape_cast %66 : vector<2x8xf32> to vector<2x8x1xf32>
    %68 = tpu.reciprocal %67 {approx = true} : vector<2x8x1xf32> -> vector<2x8x1xf32>
    %69 = vector.broadcast %68 : vector<2x8x1xf32> to vector<2x8x8xf32>
    %70 = arith.mulf %65, %69 : vector<2x8x8xf32>
    %71 = arith.truncf %70 : vector<2x8x8xf32> to vector<2x8x8xbf16>
    %72 = vector.extract_strided_slice %41 {offsets = [0, 0, 4], sizes = [2, 8, 4], strides = [1, 1, 1]} : vector<2x8x32xbf16> to vector<2x8x4xbf16>
    "tpu.trace_start"() <{level = 10 : i32, message = "bqk,bkd->bqd"}> : () -> ()
    %cst_30 = arith.constant dense<0.000000e+00> : vector<2x8x4xf32>
    %73 = tpu.matmul %71, %72, %cst_30 {dimension_numbers = #tpu.dot_dimension_numbers<[2], [1], [1], [2], [0, 0, 0, 1, 1, 2], [0], [0]>} : vector<2x8x8xbf16>, vector<2x8x4xbf16>, vector<2x8x4xf32> -> vector<2x8x4xf32>
    "tpu.trace_stop"() : () -> ()
    %74 = vector.extract_strided_slice %36 {offsets = [0, 0, 8], sizes = [2, 8, 4], strides = [1, 1, 1]} : vector<2x8x32xbf16> to vector<2x8x4xbf16>
    %75 = vector.extract_strided_slice %39 {offsets = [0, 0, 8], sizes = [2, 8, 4], strides = [1, 1, 1]} : vector<2x8x32xbf16> to vector<2x8x4xbf16>
    "tpu.trace_start"() <{level = 10 : i32, message = "bqd,bkd->bqk"}> : () -> ()
    %cst_31 = arith.constant dense<0.000000e+00> : vector<2x8x8xf32>
    %76 = tpu.matmul %74, %75, %cst_31 {dimension_numbers = #tpu.dot_dimension_numbers<[2], [2], [1], [1], [0, 0, 0, 1, 1, 1], [0], [0]>} : vector<2x8x4xbf16>, vector<2x8x4xbf16>, vector<2x8x8xf32> -> vector<2x8x8xf32>
    "tpu.trace_stop"() : () -> ()
    %cst_32 = arith.constant dense<0xFF800000> : vector<2x8xf32>
    %77 = vector.multi_reduction <maximumf>, %76, %cst_32 [2] : vector<2x8x8xf32> to vector<2x8xf32>
    %78 = vector.shape_cast %77 : vector<2x8xf32> to vector<2x8x1xf32>
    %79 = vector.broadcast %78 : vector<2x8x1xf32> to vector<2x8x8xf32>
    %80 = arith.subf %76, %79 : vector<2x8x8xf32>
    %81 = math.exp %80 : vector<2x8x8xf32>
    %cst_33 = arith.constant dense<0.000000e+00> : vector<2x8xf32>
    %82 = vector.multi_reduction <add>, %81, %cst_33 [2] : vector<2x8x8xf32> to vector<2x8xf32>
    %83 = vector.shape_cast %82 : vector<2x8xf32> to vector<2x8x1xf32>
    %84 = tpu.reciprocal %83 {approx = true} : vector<2x8x1xf32> -> vector<2x8x1xf32>
    %85 = vector.broadcast %84 : vector<2x8x1xf32> to vector<2x8x8xf32>
    %86 = arith.mulf %81, %85 : vector<2x8x8xf32>
    %87 = arith.truncf %86 : vector<2x8x8xf32> to vector<2x8x8xbf16>
    %88 = vector.extract_strided_slice %41 {offsets = [0, 0, 8], sizes = [2, 8, 4], strides = [1, 1, 1]} : vector<2x8x32xbf16> to vector<2x8x4xbf16>
    "tpu.trace_start"() <{level = 10 : i32, message = "bqk,bkd->bqd"}> : () -> ()
    %cst_34 = arith.constant dense<0.000000e+00> : vector<2x8x4xf32>
    %89 = tpu.matmul %87, %88, %cst_34 {dimension_numbers = #tpu.dot_dimension_numbers<[2], [1], [1], [2], [0, 0, 0, 1, 1, 2], [0], [0]>} : vector<2x8x8xbf16>, vector<2x8x4xbf16>, vector<2x8x4xf32> -> vector<2x8x4xf32>
    "tpu.trace_stop"() : () -> ()
    %90 = vector.extract_strided_slice %36 {offsets = [0, 0, 12], sizes = [2, 8, 4], strides = [1, 1, 1]} : vector<2x8x32xbf16> to vector<2x8x4xbf16>
    %91 = vector.extract_strided_slice %39 {offsets = [0, 0, 12], sizes = [2, 8, 4], strides = [1, 1, 1]} : vector<2x8x32xbf16> to vector<2x8x4xbf16>
    "tpu.trace_start"() <{level = 10 : i32, message = "bqd,bkd->bqk"}> : () -> ()
    %cst_35 = arith.constant dense<0.000000e+00> : vector<2x8x8xf32>
    %92 = tpu.matmul %90, %91, %cst_35 {dimension_numbers = #tpu.dot_dimension_numbers<[2], [2], [1], [1], [0, 0, 0, 1, 1, 1], [0], [0]>} : vector<2x8x4xbf16>, vector<2x8x4xbf16>, vector<2x8x8xf32> -> vector<2x8x8xf32>
    "tpu.trace_stop"() : () -> ()
    %cst_36 = arith.constant dense<0xFF800000> : vector<2x8xf32>
    %93 = vector.multi_reduction <maximumf>, %92, %cst_36 [2] : vector<2x8x8xf32> to vector<2x8xf32>
    %94 = vector.shape_cast %93 : vector<2x8xf32> to vector<2x8x1xf32>
    %95 = vector.broadcast %94 : vector<2x8x1xf32> to vector<2x8x8xf32>
    %96 = arith.subf %92, %95 : vector<2x8x8xf32>
    %97 = math.exp %96 : vector<2x8x8xf32>
    %cst_37 = arith.constant dense<0.000000e+00> : vector<2x8xf32>
    %98 = vector.multi_reduction <add>, %97, %cst_37 [2] : vector<2x8x8xf32> to vector<2x8xf32>
    %99 = vector.shape_cast %98 : vector<2x8xf32> to vector<2x8x1xf32>
    %100 = tpu.reciprocal %99 {approx = true} : vector<2x8x1xf32> -> vector<2x8x1xf32>
    %101 = vector.broadcast %100 : vector<2x8x1xf32> to vector<2x8x8xf32>
    %102 = arith.mulf %97, %101 : vector<2x8x8xf32>
    %103 = arith.truncf %102 : vector<2x8x8xf32> to vector<2x8x8xbf16>
    %104 = vector.extract_strided_slice %41 {offsets = [0, 0, 12], sizes = [2, 8, 4], strides = [1, 1, 1]} : vector<2x8x32xbf16> to vector<2x8x4xbf16>
    "tpu.trace_start"() <{level = 10 : i32, message = "bqk,bkd->bqd"}> : () -> ()
    %cst_38 = arith.constant dense<0.000000e+00> : vector<2x8x4xf32>
    %105 = tpu.matmul %103, %104, %cst_38 {dimension_numbers = #tpu.dot_dimension_numbers<[2], [1], [1], [2], [0, 0, 0, 1, 1, 2], [0], [0]>} : vector<2x8x8xbf16>, vector<2x8x4xbf16>, vector<2x8x4xf32> -> vector<2x8x4xf32>
    "tpu.trace_stop"() : () -> ()
    %106 = vector.extract_strided_slice %36 {offsets = [0, 0, 16], sizes = [2, 8, 4], strides = [1, 1, 1]} : vector<2x8x32xbf16> to vector<2x8x4xbf16>
    %107 = vector.extract_strided_slice %39 {offsets = [0, 0, 16], sizes = [2, 8, 4], strides = [1, 1, 1]} : vector<2x8x32xbf16> to vector<2x8x4xbf16>
    "tpu.trace_start"() <{level = 10 : i32, message = "bqd,bkd->bqk"}> : () -> ()
    %cst_39 = arith.constant dense<0.000000e+00> : vector<2x8x8xf32>
    %108 = tpu.matmul %106, %107, %cst_39 {dimension_numbers = #tpu.dot_dimension_numbers<[2], [2], [1], [1], [0, 0, 0, 1, 1, 1], [0], [0]>} : vector<2x8x4xbf16>, vector<2x8x4xbf16>, vector<2x8x8xf32> -> vector<2x8x8xf32>
    "tpu.trace_stop"() : () -> ()
    %cst_40 = arith.constant dense<0xFF800000> : vector<2x8xf32>
    %109 = vector.multi_reduction <maximumf>, %108, %cst_40 [2] : vector<2x8x8xf32> to vector<2x8xf32>
    %110 = vector.shape_cast %109 : vector<2x8xf32> to vector<2x8x1xf32>
    %111 = vector.broadcast %110 : vector<2x8x1xf32> to vector<2x8x8xf32>
    %112 = arith.subf %108, %111 : vector<2x8x8xf32>
    %113 = math.exp %112 : vector<2x8x8xf32>
    %cst_41 = arith.constant dense<0.000000e+00> : vector<2x8xf32>
    %114 = vector.multi_reduction <add>, %113, %cst_41 [2] : vector<2x8x8xf32> to vector<2x8xf32>
    %115 = vector.shape_cast %114 : vector<2x8xf32> to vector<2x8x1xf32>
    %116 = tpu.reciprocal %115 {approx = true} : vector<2x8x1xf32> -> vector<2x8x1xf32>
    %117 = vector.broadcast %116 : vector<2x8x1xf32> to vector<2x8x8xf32>
    %118 = arith.mulf %113, %117 : vector<2x8x8xf32>
    %119 = arith.truncf %118 : vector<2x8x8xf32> to vector<2x8x8xbf16>
    %120 = vector.extract_strided_slice %41 {offsets = [0, 0, 16], sizes = [2, 8, 4], strides = [1, 1, 1]} : vector<2x8x32xbf16> to vector<2x8x4xbf16>
    "tpu.trace_start"() <{level = 10 : i32, message = "bqk,bkd->bqd"}> : () -> ()
    %cst_42 = arith.constant dense<0.000000e+00> : vector<2x8x4xf32>
    %121 = tpu.matmul %119, %120, %cst_42 {dimension_numbers = #tpu.dot_dimension_numbers<[2], [1], [1], [2], [0, 0, 0, 1, 1, 2], [0], [0]>} : vector<2x8x8xbf16>, vector<2x8x4xbf16>, vector<2x8x4xf32> -> vector<2x8x4xf32>
    "tpu.trace_stop"() : () -> ()
    %122 = vector.extract_strided_slice %36 {offsets = [0, 0, 20], sizes = [2, 8, 4], strides = [1, 1, 1]} : vector<2x8x32xbf16> to vector<2x8x4xbf16>
    %123 = vector.extract_strided_slice %39 {offsets = [0, 0, 20], sizes = [2, 8, 4], strides = [1, 1, 1]} : vector<2x8x32xbf16> to vector<2x8x4xbf16>
    "tpu.trace_start"() <{level = 10 : i32, message = "bqd,bkd->bqk"}> : () -> ()
    %cst_43 = arith.constant dense<0.000000e+00> : vector<2x8x8xf32>
    %124 = tpu.matmul %122, %123, %cst_43 {dimension_numbers = #tpu.dot_dimension_numbers<[2], [2], [1], [1], [0, 0, 0, 1, 1, 1], [0], [0]>} : vector<2x8x4xbf16>, vector<2x8x4xbf16>, vector<2x8x8xf32> -> vector<2x8x8xf32>
    "tpu.trace_stop"() : () -> ()
    %cst_44 = arith.constant dense<0xFF800000> : vector<2x8xf32>
    %125 = vector.multi_reduction <maximumf>, %124, %cst_44 [2] : vector<2x8x8xf32> to vector<2x8xf32>
    %126 = vector.shape_cast %125 : vector<2x8xf32> to vector<2x8x1xf32>
    %127 = vector.broadcast %126 : vector<2x8x1xf32> to vector<2x8x8xf32>
    %128 = arith.subf %124, %127 : vector<2x8x8xf32>
    %129 = math.exp %128 : vector<2x8x8xf32>
    %cst_45 = arith.constant dense<0.000000e+00> : vector<2x8xf32>
    %130 = vector.multi_reduction <add>, %129, %cst_45 [2] : vector<2x8x8xf32> to vector<2x8xf32>
    %131 = vector.shape_cast %130 : vector<2x8xf32> to vector<2x8x1xf32>
    %132 = tpu.reciprocal %131 {approx = true} : vector<2x8x1xf32> -> vector<2x8x1xf32>
    %133 = vector.broadcast %132 : vector<2x8x1xf32> to vector<2x8x8xf32>
    %134 = arith.mulf %129, %133 : vector<2x8x8xf32>
    %135 = arith.truncf %134 : vector<2x8x8xf32> to vector<2x8x8xbf16>
    %136 = vector.extract_strided_slice %41 {offsets = [0, 0, 20], sizes = [2, 8, 4], strides = [1, 1, 1]} : vector<2x8x32xbf16> to vector<2x8x4xbf16>
    "tpu.trace_start"() <{level = 10 : i32, message = "bqk,bkd->bqd"}> : () -> ()
    %cst_46 = arith.constant dense<0.000000e+00> : vector<2x8x4xf32>
    %137 = tpu.matmul %135, %136, %cst_46 {dimension_numbers = #tpu.dot_dimension_numbers<[2], [1], [1], [2], [0, 0, 0, 1, 1, 2], [0], [0]>} : vector<2x8x8xbf16>, vector<2x8x4xbf16>, vector<2x8x4xf32> -> vector<2x8x4xf32>
    "tpu.trace_stop"() : () -> ()
    %138 = vector.extract_strided_slice %36 {offsets = [0, 0, 24], sizes = [2, 8, 4], strides = [1, 1, 1]} : vector<2x8x32xbf16> to vector<2x8x4xbf16>
    %139 = vector.extract_strided_slice %39 {offsets = [0, 0, 24], sizes = [2, 8, 4], strides = [1, 1, 1]} : vector<2x8x32xbf16> to vector<2x8x4xbf16>
    "tpu.trace_start"() <{level = 10 : i32, message = "bqd,bkd->bqk"}> : () -> ()
    %cst_47 = arith.constant dense<0.000000e+00> : vector<2x8x8xf32>
    %140 = tpu.matmul %138, %139, %cst_47 {dimension_numbers = #tpu.dot_dimension_numbers<[2], [2], [1], [1], [0, 0, 0, 1, 1, 1], [0], [0]>} : vector<2x8x4xbf16>, vector<2x8x4xbf16>, vector<2x8x8xf32> -> vector<2x8x8xf32>
    "tpu.trace_stop"() : () -> ()
    %cst_48 = arith.constant dense<0xFF800000> : vector<2x8xf32>
    %141 = vector.multi_reduction <maximumf>, %140, %cst_48 [2] : vector<2x8x8xf32> to vector<2x8xf32>
    %142 = vector.shape_cast %141 : vector<2x8xf32> to vector<2x8x1xf32>
    %143 = vector.broadcast %142 : vector<2x8x1xf32> to vector<2x8x8xf32>
    %144 = arith.subf %140, %143 : vector<2x8x8xf32>
    %145 = math.exp %144 : vector<2x8x8xf32>
    %cst_49 = arith.constant dense<0.000000e+00> : vector<2x8xf32>
    %146 = vector.multi_reduction <add>, %145, %cst_49 [2] : vector<2x8x8xf32> to vector<2x8xf32>
    %147 = vector.shape_cast %146 : vector<2x8xf32> to vector<2x8x1xf32>
    %148 = tpu.reciprocal %147 {approx = true} : vector<2x8x1xf32> -> vector<2x8x1xf32>
    %149 = vector.broadcast %148 : vector<2x8x1xf32> to vector<2x8x8xf32>
    %150 = arith.mulf %145, %149 : vector<2x8x8xf32>
    %151 = arith.truncf %150 : vector<2x8x8xf32> to vector<2x8x8xbf16>
    %152 = vector.extract_strided_slice %41 {offsets = [0, 0, 24], sizes = [2, 8, 4], strides = [1, 1, 1]} : vector<2x8x32xbf16> to vector<2x8x4xbf16>
    "tpu.trace_start"() <{level = 10 : i32, message = "bqk,bkd->bqd"}> : () -> ()
    %cst_50 = arith.constant dense<0.000000e+00> : vector<2x8x4xf32>
    %153 = tpu.matmul %151, %152, %cst_50 {dimension_numbers = #tpu.dot_dimension_numbers<[2], [1], [1], [2], [0, 0, 0, 1, 1, 2], [0], [0]>} : vector<2x8x8xbf16>, vector<2x8x4xbf16>, vector<2x8x4xf32> -> vector<2x8x4xf32>
    "tpu.trace_stop"() : () -> ()
    %154 = vector.extract_strided_slice %36 {offsets = [0, 0, 28], sizes = [2, 8, 4], strides = [1, 1, 1]} : vector<2x8x32xbf16> to vector<2x8x4xbf16>
    %155 = vector.extract_strided_slice %39 {offsets = [0, 0, 28], sizes = [2, 8, 4], strides = [1, 1, 1]} : vector<2x8x32xbf16> to vector<2x8x4xbf16>
    "tpu.trace_start"() <{level = 10 : i32, message = "bqd,bkd->bqk"}> : () -> ()
    %cst_51 = arith.constant dense<0.000000e+00> : vector<2x8x8xf32>
    %156 = tpu.matmul %154, %155, %cst_51 {dimension_numbers = #tpu.dot_dimension_numbers<[2], [2], [1], [1], [0, 0, 0, 1, 1, 1], [0], [0]>} : vector<2x8x4xbf16>, vector<2x8x4xbf16>, vector<2x8x8xf32> -> vector<2x8x8xf32>
    "tpu.trace_stop"() : () -> ()
    %cst_52 = arith.constant dense<0xFF800000> : vector<2x8xf32>
    %157 = vector.multi_reduction <maximumf>, %156, %cst_52 [2] : vector<2x8x8xf32> to vector<2x8xf32>
    %158 = vector.shape_cast %157 : vector<2x8xf32> to vector<2x8x1xf32>
    %159 = vector.broadcast %158 : vector<2x8x1xf32> to vector<2x8x8xf32>
    %160 = arith.subf %156, %159 : vector<2x8x8xf32>
    %161 = math.exp %160 : vector<2x8x8xf32>
    %cst_53 = arith.constant dense<0.000000e+00> : vector<2x8xf32>
    %162 = vector.multi_reduction <add>, %161, %cst_53 [2] : vector<2x8x8xf32> to vector<2x8xf32>
    %163 = vector.shape_cast %162 : vector<2x8xf32> to vector<2x8x1xf32>
    %164 = tpu.reciprocal %163 {approx = true} : vector<2x8x1xf32> -> vector<2x8x1xf32>
    %165 = vector.broadcast %164 : vector<2x8x1xf32> to vector<2x8x8xf32>
    %166 = arith.mulf %161, %165 : vector<2x8x8xf32>
    %167 = arith.truncf %166 : vector<2x8x8xf32> to vector<2x8x8xbf16>
    %168 = vector.extract_strided_slice %41 {offsets = [0, 0, 28], sizes = [2, 8, 4], strides = [1, 1, 1]} : vector<2x8x32xbf16> to vector<2x8x4xbf16>
    "tpu.trace_start"() <{level = 10 : i32, message = "bqk,bkd->bqd"}> : () -> ()
    %cst_54 = arith.constant dense<0.000000e+00> : vector<2x8x4xf32>
    %169 = tpu.matmul %167, %168, %cst_54 {dimension_numbers = #tpu.dot_dimension_numbers<[2], [1], [1], [2], [0, 0, 0, 1, 1, 2], [0], [0]>} : vector<2x8x8xbf16>, vector<2x8x4xbf16>, vector<2x8x4xf32> -> vector<2x8x4xf32>
    "tpu.trace_stop"() : () -> ()
    %170 = tpu.concatenate %57, %73, %89, %105, %121, %137, %153, %169 in 2 : vector<2x8x4xf32>, vector<2x8x4xf32>, vector<2x8x4xf32>, vector<2x8x4xf32>, vector<2x8x4xf32>, vector<2x8x4xf32>, vector<2x8x4xf32>, vector<2x8x4xf32> -> vector<2x8x32xf32>
    %171 = vector.shape_cast %170 : vector<2x8x32xf32> to vector<16x32xf32>
    %172 = arith.truncf %171 : vector<16x32xf32> to vector<16x32xbf16>
    %c0_55 = arith.constant 0 : index
    %c0_56 = arith.constant 0 : index
    %c0_57 = arith.constant 0 : index
    %c0_58 = arith.constant 0 : index
    %173 = vector.load %arg10[%c0_55, %c0_56, %c0_57, %c0_58] : memref<1x1x32x32xbf16, #tpu.memory_space<vmem>>, vector<1x1x32x32xbf16>
    %174 = vector.shape_cast %173 : vector<1x1x32x32xbf16> to vector<32x32xbf16>
    %cst_59 = arith.constant dense<0.000000e+00> : vector<16x32xf32>
    %175 = tpu.matmul %172, %174, %cst_59 {dimension_numbers = #tpu.dot_dimension_numbers<[1], [0], [0], [1], [0, 0, 1, 1], [], []>} : vector<16x32xbf16>, vector<32x32xbf16>, vector<16x32xf32> -> vector<16x32xf32>
    %c0_60 = arith.constant 0 : index
    %c0_61 = arith.constant 0 : index
    %c0_62 = arith.constant 0 : index
    %c0_63 = arith.constant 0 : index
    %176 = vector.load %arg11[%c0_60, %c0_61, %c0_62, %c0_63] : memref<1x1x1x32xf32, #tpu.memory_space<vmem>>, vector<1x1x1x32xf32>
    %177 = vector.shape_cast %176 : vector<1x1x1x32xf32> to vector<1x32xf32>
    %178 = vector.broadcast %177 : vector<1x32xf32> to vector<16x32xf32>
    %179 = arith.addf %175, %178 : vector<16x32xf32>
    %180 = arith.addf %10, %179 : vector<16x32xf32>
    %c0_64 = arith.constant 0 : index
    %c0_65 = arith.constant 0 : index
    %c0_66 = arith.constant 0 : index
    %c0_67 = arith.constant 0 : index
    %181 = vector.load %arg16[%c0_64, %c0_65, %c0_66, %c0_67] : memref<1x1x1x32xf32, #tpu.memory_space<vmem>>, vector<1x1x1x32xf32>
    %182 = vector.shape_cast %181 : vector<1x1x1x32xf32> to vector<1x32xf32>
    %c0_68 = arith.constant 0 : index
    %c0_69 = arith.constant 0 : index
    %c0_70 = arith.constant 0 : index
    %c0_71 = arith.constant 0 : index
    %183 = vector.load %arg17[%c0_68, %c0_69, %c0_70, %c0_71] : memref<1x1x1x32xf32, #tpu.memory_space<vmem>>, vector<1x1x1x32xf32>
    %184 = vector.shape_cast %183 : vector<1x1x1x32xf32> to vector<1x32xf32>
    %cst_72 = arith.constant dense<0.000000e+00> : vector<16xf32>
    %185 = vector.multi_reduction <add>, %180, %cst_72 [1] : vector<16x32xf32> to vector<16xf32>
    %186 = vector.shape_cast %185 : vector<16xf32> to vector<16x1xf32>
    %cst_73 = arith.constant 3.200000e+01 : f32
    %187 = vector.broadcast %cst_73 : f32 to vector<16x1xf32>
    %188 = arith.divf %186, %187 : vector<16x1xf32>
    %189 = vector.broadcast %188 : vector<16x1xf32> to vector<16x32xf32>
    %190 = arith.subf %180, %189 : vector<16x32xf32>
    %191 = arith.mulf %190, %190 : vector<16x32xf32>
    %cst_74 = arith.constant dense<0.000000e+00> : vector<16xf32>
    %192 = vector.multi_reduction <add>, %191, %cst_74 [1] : vector<16x32xf32> to vector<16xf32>
    %193 = vector.shape_cast %192 : vector<16xf32> to vector<16x1xf32>
    %cst_75 = arith.constant 3.200000e+01 : f32
    %194 = vector.broadcast %cst_75 : f32 to vector<16x1xf32>
    %195 = arith.divf %193, %194 : vector<16x1xf32>
    %196 = vector.broadcast %188 : vector<16x1xf32> to vector<16x32xf32>
    %197 = arith.subf %180, %196 : vector<16x32xf32>
    %cst_76 = arith.constant 9.99999974E-6 : f32
    %198 = vector.broadcast %cst_76 : f32 to vector<16x1xf32>
    %199 = arith.addf %195, %198 : vector<16x1xf32>
    %200 = math.rsqrt %199 : vector<16x1xf32>
    %201 = vector.broadcast %200 : vector<16x1xf32> to vector<16x32xf32>
    %202 = arith.mulf %197, %201 : vector<16x32xf32>
    %203 = vector.broadcast %182 : vector<1x32xf32> to vector<16x32xf32>
    %204 = arith.mulf %202, %203 : vector<16x32xf32>
    %205 = vector.broadcast %184 : vector<1x32xf32> to vector<16x32xf32>
    %206 = arith.addf %204, %205 : vector<16x32xf32>
    %207 = arith.truncf %206 : vector<16x32xf32> to vector<16x32xbf16>
    %c0_77 = arith.constant 0 : index
    %c0_78 = arith.constant 0 : index
    %c0_79 = arith.constant 0 : index
    %c0_80 = arith.constant 0 : index
    %208 = vector.load %arg12[%c0_77, %c0_78, %c0_79, %c0_80] : memref<1x1x32x128xbf16, #tpu.memory_space<vmem>>, vector<1x1x32x128xbf16>
    %209 = vector.shape_cast %208 : vector<1x1x32x128xbf16> to vector<32x128xbf16>
    %cst_81 = arith.constant dense<0.000000e+00> : vector<16x128xf32>
    %210 = tpu.matmul %207, %209, %cst_81 {dimension_numbers = #tpu.dot_dimension_numbers<[1], [0], [0], [1], [0, 0, 1, 1], [], []>} : vector<16x32xbf16>, vector<32x128xbf16>, vector<16x128xf32> -> vector<16x128xf32>
    %c0_82 = arith.constant 0 : index
    %c0_83 = arith.constant 0 : index
    %c0_84 = arith.constant 0 : index
    %c0_85 = arith.constant 0 : index
    %211 = vector.load %arg13[%c0_82, %c0_83, %c0_84, %c0_85] : memref<1x1x1x128xf32, #tpu.memory_space<vmem>>, vector<1x1x1x128xf32>
    %212 = vector.shape_cast %211 : vector<1x1x1x128xf32> to vector<1x128xf32>
    %213 = vector.broadcast %212 : vector<1x128xf32> to vector<16x128xf32>
    %214 = arith.addf %210, %213 : vector<16x128xf32>
    %cst_86 = arith.constant 0.000000e+00 : f32
    %215 = vector.broadcast %cst_86 : f32 to vector<16x128xf32>
    %216 = arith.maximumf %214, %215 : vector<16x128xf32>
    %217 = arith.truncf %216 : vector<16x128xf32> to vector<16x128xbf16>
    %c0_87 = arith.constant 0 : index
    %c0_88 = arith.constant 0 : index
    %c0_89 = arith.constant 0 : index
    %c0_90 = arith.constant 0 : index
    %218 = vector.load %arg14[%c0_87, %c0_88, %c0_89, %c0_90] : memref<1x1x128x32xbf16, #tpu.memory_space<vmem>>, vector<1x1x128x32xbf16>
    %219 = vector.shape_cast %218 : vector<1x1x128x32xbf16> to vector<128x32xbf16>
    %cst_91 = arith.constant dense<0.000000e+00> : vector<16x32xf32>
    %220 = tpu.matmul %217, %219, %cst_91 {dimension_numbers = #tpu.dot_dimension_numbers<[1], [0], [0], [1], [0, 0, 1, 1], [], []>} : vector<16x128xbf16>, vector<128x32xbf16>, vector<16x32xf32> -> vector<16x32xf32>
    %c0_92 = arith.constant 0 : index
    %c0_93 = arith.constant 0 : index
    %c0_94 = arith.constant 0 : index
    %c0_95 = arith.constant 0 : index
    %221 = vector.load %arg15[%c0_92, %c0_93, %c0_94, %c0_95] : memref<1x1x1x32xf32, #tpu.memory_space<vmem>>, vector<1x1x1x32xf32>
    %222 = vector.shape_cast %221 : vector<1x1x1x32xf32> to vector<1x32xf32>
    %223 = vector.broadcast %222 : vector<1x32xf32> to vector<16x32xf32>
    %224 = arith.addf %220, %223 : vector<16x32xf32>
    %225 = arith.addf %206, %224 : vector<16x32xf32>
    %c0_96 = arith.constant 0 : index
    %c0_97 = arith.constant 0 : index
    %c0_98 = arith.constant 0 : index
    %c0_99 = arith.constant 0 : index
    %226 = vector.load %arg18[%c0_96, %c0_97, %c0_98, %c0_99] : memref<1x1x1x32xf32, #tpu.memory_space<vmem>>, vector<1x1x1x32xf32>
    %227 = vector.shape_cast %226 : vector<1x1x1x32xf32> to vector<1x32xf32>
    %c0_100 = arith.constant 0 : index
    %c0_101 = arith.constant 0 : index
    %c0_102 = arith.constant 0 : index
    %c0_103 = arith.constant 0 : index
    %228 = vector.load %arg19[%c0_100, %c0_101, %c0_102, %c0_103] : memref<1x1x1x32xf32, #tpu.memory_space<vmem>>, vector<1x1x1x32xf32>
    %229 = vector.shape_cast %228 : vector<1x1x1x32xf32> to vector<1x32xf32>
    %cst_104 = arith.constant dense<0.000000e+00> : vector<16xf32>
    %230 = vector.multi_reduction <add>, %225, %cst_104 [1] : vector<16x32xf32> to vector<16xf32>
    %231 = vector.shape_cast %230 : vector<16xf32> to vector<16x1xf32>
    %cst_105 = arith.constant 3.200000e+01 : f32
    %232 = vector.broadcast %cst_105 : f32 to vector<16x1xf32>
    %233 = arith.divf %231, %232 : vector<16x1xf32>
    %234 = vector.broadcast %233 : vector<16x1xf32> to vector<16x32xf32>
    %235 = arith.subf %225, %234 : vector<16x32xf32>
    %236 = arith.mulf %235, %235 : vector<16x32xf32>
    %cst_106 = arith.constant dense<0.000000e+00> : vector<16xf32>
    %237 = vector.multi_reduction <add>, %236, %cst_106 [1] : vector<16x32xf32> to vector<16xf32>
    %238 = vector.shape_cast %237 : vector<16xf32> to vector<16x1xf32>
    %cst_107 = arith.constant 3.200000e+01 : f32
    %239 = vector.broadcast %cst_107 : f32 to vector<16x1xf32>
    %240 = arith.divf %238, %239 : vector<16x1xf32>
    %241 = vector.broadcast %233 : vector<16x1xf32> to vector<16x32xf32>
    %242 = arith.subf %225, %241 : vector<16x32xf32>
    %cst_108 = arith.constant 9.99999974E-6 : f32
    %243 = vector.broadcast %cst_108 : f32 to vector<16x1xf32>
    %244 = arith.addf %240, %243 : vector<16x1xf32>
    %245 = math.rsqrt %244 : vector<16x1xf32>
    %246 = vector.broadcast %245 : vector<16x1xf32> to vector<16x32xf32>
    %247 = arith.mulf %242, %246 : vector<16x32xf32>
    %248 = vector.broadcast %227 : vector<1x32xf32> to vector<16x32xf32>
    %249 = arith.mulf %247, %248 : vector<16x32xf32>
    %250 = vector.broadcast %229 : vector<1x32xf32> to vector<16x32xf32>
    %251 = arith.addf %249, %250 : vector<16x32xf32>
    %252 = vector.shape_cast %251 : vector<16x32xf32> to vector<1x16x32xf32>
    %c0_109 = arith.constant 0 : index
    %c0_110 = arith.constant 0 : index
    %c0_111 = arith.constant 0 : index
    %253 = vector.load %arg22[%c0_109, %c0_110, %c0_111] : memref<1x16x32xf32, #tpu.memory_space<vmem>>, vector<1x16x32xf32>
    tpu.vector_store %arg22[%c0_109, %c0_110, %c0_111], %252 {strides = array<i32>} : memref<1x16x32xf32, #tpu.memory_space<vmem>>, vector<1x16x32xf32>,
    %c1_i32 = arith.constant 1 : i32
    %254 = arith.cmpi eq, %arg1, %c1_i32 : i32
    %255 = arith.extui %254 : i1 to i32
    %c0_i32_112 = arith.constant 0 : i32
    %256 = arith.cmpi ne, %255, %c0_i32_112 : i32
    scf.if %256 {
      %c0_113 = arith.constant 0 : index
      %c0_114 = arith.constant 0 : index
      %257 = vector.load %arg20[%c0_113, %c0_114] : memref<1x32xf32, #tpu.memory_space<vmem>>, vector<1x32xf32>
      %c0_115 = arith.constant 0 : index
      %c0_116 = arith.constant 0 : index
      %258 = vector.load %arg21[%c0_115, %c0_116] : memref<1x32xf32, #tpu.memory_space<vmem>>, vector<1x32xf32>
      %cst_117 = arith.constant dense<0.000000e+00> : vector<16xf32>
      %259 = vector.multi_reduction <add>, %251, %cst_117 [1] : vector<16x32xf32> to vector<16xf32>
      %260 = vector.shape_cast %259 : vector<16xf32> to vector<16x1xf32>
      %cst_118 = arith.constant 3.200000e+01 : f32
      %261 = vector.broadcast %cst_118 : f32 to vector<16x1xf32>
      %262 = arith.divf %260, %261 : vector<16x1xf32>
      %263 = vector.broadcast %262 : vector<16x1xf32> to vector<16x32xf32>
      %264 = arith.subf %251, %263 : vector<16x32xf32>
      %265 = arith.mulf %264, %264 : vector<16x32xf32>
      %cst_119 = arith.constant dense<0.000000e+00> : vector<16xf32>
      %266 = vector.multi_reduction <add>, %265, %cst_119 [1] : vector<16x32xf32> to vector<16xf32>
      %267 = vector.shape_cast %266 : vector<16xf32> to vector<16x1xf32>
      %cst_120 = arith.constant 3.200000e+01 : f32
      %268 = vector.broadcast %cst_120 : f32 to vector<16x1xf32>
      %269 = arith.divf %267, %268 : vector<16x1xf32>
      %270 = vector.broadcast %262 : vector<16x1xf32> to vector<16x32xf32>
      %271 = arith.subf %251, %270 : vector<16x32xf32>
      %cst_121 = arith.constant 9.99999974E-6 : f32
      %272 = vector.broadcast %cst_121 : f32 to vector<16x1xf32>
      %273 = arith.addf %269, %272 : vector<16x1xf32>
      %274 = math.rsqrt %273 : vector<16x1xf32>
      %275 = vector.broadcast %274 : vector<16x1xf32> to vector<16x32xf32>
      %276 = arith.mulf %271, %275 : vector<16x32xf32>
      %277 = vector.broadcast %257 : vector<1x32xf32> to vector<16x32xf32>
      %278 = arith.mulf %276, %277 : vector<16x32xf32>
      %279 = vector.broadcast %258 : vector<1x32xf32> to vector<16x32xf32>
      %280 = arith.addf %278, %279 : vector<16x32xf32>
      %281 = vector.shape_cast %280 : vector<16x32xf32> to vector<1x16x32xf32>
      %c0_122 = arith.constant 0 : index
      %c0_123 = arith.constant 0 : index
      %c0_124 = arith.constant 0 : index
      %282 = vector.load %arg22[%c0_122, %c0_123, %c0_124] : memref<1x16x32xf32, #tpu.memory_space<vmem>>, vector<1x16x32xf32>
      tpu.vector_store %arg22[%c0_122, %c0_123, %c0_124], %281 {strides = array<i32>} : memref<1x16x32xf32, #tpu.memory_space<vmem>>, vector<1x16x32xf32>,
    } else {
    }
    return
  }
  func.func @transform_0(%arg0: i32, %arg1: i32) -> (i32, i32) {
    %c0_i32 = arith.constant 0 : i32
    %c0_i32_0 = arith.constant 0 : i32
    %c0_i32_1 = arith.constant 0 : i32
    return %c0_i32, %c0_i32_0 : i32, i32
  }
  func.func @transform_1(%arg0: i32, %arg1: i32) -> (i32, i32, i32) {
    %c0_i32 = arith.constant 0 : i32
    %c0_i32_0 = arith.constant 0 : i32
    %c0_i32_1 = arith.constant 0 : i32
    return %arg0, %c0_i32, %c0_i32_0 : i32, i32, i32
  }
  func.func @transform_2(%arg0: i32, %arg1: i32) -> (i32, i32, i32) {
    %c0_i32 = arith.constant 0 : i32
    %c0_i32_0 = arith.constant 0 : i32
    %c0_i32_1 = arith.constant 0 : i32
    return %arg0, %c0_i32, %c0_i32_0 : i32, i32, i32
  }
  func.func @transform_3(%arg0: i32, %arg1: i32) -> (i32, i32, i32) {
    %c0_i32 = arith.constant 0 : i32
    %c0_i32_0 = arith.constant 0 : i32
    %c0_i32_1 = arith.constant 0 : i32
    return %arg0, %c0_i32, %c0_i32_0 : i32, i32, i32
  }
  func.func @transform_4(%arg0: i32, %arg1: i32) -> (i32, i32, i32, i32) {
    %c0_i32 = arith.constant 0 : i32
    %c0_i32_0 = arith.constant 0 : i32
    %c0_i32_1 = arith.constant 0 : i32
    return %arg0, %arg1, %c0_i32, %c0_i32_0 : i32, i32, i32, i32
  }
  func.func @transform_5(%arg0: i32, %arg1: i32) -> (i32, i32, i32, i32) {
    %c0_i32 = arith.constant 0 : i32
    %c0_i32_0 = arith.constant 0 : i32
    %c0_i32_1 = arith.constant 0 : i32
    return %arg0, %arg1, %c0_i32, %c0_i32_0 : i32, i32, i32, i32
  }
  func.func @transform_6(%arg0: i32, %arg1: i32) -> (i32, i32, i32, i32) {
    %c0_i32 = arith.constant 0 : i32
    %c0_i32_0 = arith.constant 0 : i32
    %c0_i32_1 = arith.constant 0 : i32
    return %arg0, %arg1, %c0_i32, %c0_i32_0 : i32, i32, i32, i32
  }
  func.func @transform_7(%arg0: i32, %arg1: i32) -> (i32, i32, i32, i32) {
    %c0_i32 = arith.constant 0 : i32
    %c0_i32_0 = arith.constant 0 : i32
    %c0_i32_1 = arith.constant 0 : i32
    return %arg0, %arg1, %c0_i32, %c0_i32_0 : i32, i32, i32, i32
  }
  func.func @transform_8(%arg0: i32, %arg1: i32) -> (i32, i32, i32, i32) {
    %c0_i32 = arith.constant 0 : i32
    %c0_i32_0 = arith.constant 0 : i32
    %c0_i32_1 = arith.constant 0 : i32
    return %arg0, %arg1, %c0_i32, %c0_i32_0 : i32, i32, i32, i32
  }
  func.func @transform_9(%arg0: i32, %arg1: i32) -> (i32, i32, i32, i32) {
    %c0_i32 = arith.constant 0 : i32
    %c0_i32_0 = arith.constant 0 : i32
    %c0_i32_1 = arith.constant 0 : i32
    return %arg0, %arg1, %c0_i32, %c0_i32_0 : i32, i32, i32, i32
  }
  func.func @transform_10(%arg0: i32, %arg1: i32) -> (i32, i32, i32, i32) {
    %c0_i32 = arith.constant 0 : i32
    %c0_i32_0 = arith.constant 0 : i32
    %c0_i32_1 = arith.constant 0 : i32
    return %arg0, %arg1, %c0_i32, %c0_i32_0 : i32, i32, i32, i32
  }
  func.func @transform_11(%arg0: i32, %arg1: i32) -> (i32, i32, i32, i32) {
    %c0_i32 = arith.constant 0 : i32
    %c0_i32_0 = arith.constant 0 : i32
    %c0_i32_1 = arith.constant 0 : i32
    return %arg0, %arg1, %c0_i32, %c0_i32_0 : i32, i32, i32, i32
  }
  func.func @transform_12(%arg0: i32, %arg1: i32) -> (i32, i32, i32, i32) {
    %c0_i32 = arith.constant 0 : i32
    %c0_i32_0 = arith.constant 0 : i32
    %c0_i32_1 = arith.constant 0 : i32
    return %arg0, %arg1, %c0_i32, %c0_i32_0 : i32, i32, i32, i32
  }
  func.func @transform_13(%arg0: i32, %arg1: i32) -> (i32, i32, i32, i32) {
    %c0_i32 = arith.constant 0 : i32
    %c0_i32_0 = arith.constant 0 : i32
    %c0_i32_1 = arith.constant 0 : i32
    return %arg0, %arg1, %c0_i32, %c0_i32_0 : i32, i32, i32, i32
  }
  func.func @transform_14(%arg0: i32, %arg1: i32) -> (i32, i32, i32, i32) {
    %c0_i32 = arith.constant 0 : i32
    %c0_i32_0 = arith.constant 0 : i32
    %c0_i32_1 = arith.constant 0 : i32
    return %arg0, %arg1, %c0_i32, %c0_i32_0 : i32, i32, i32, i32
  }
  func.func @transform_15(%arg0: i32, %arg1: i32) -> (i32, i32, i32, i32) {
    %c0_i32 = arith.constant 0 : i32
    %c0_i32_0 = arith.constant 0 : i32
    %c0_i32_1 = arith.constant 0 : i32
    return %arg0, %arg1, %c0_i32, %c0_i32_0 : i32, i32, i32, i32
  }
  func.func @transform_16(%arg0: i32, %arg1: i32) -> (i32, i32, i32, i32) {
    %c0_i32 = arith.constant 0 : i32
    %c0_i32_0 = arith.constant 0 : i32
    %c0_i32_1 = arith.constant 0 : i32
    return %arg0, %arg1, %c0_i32, %c0_i32_0 : i32, i32, i32, i32
  }
  func.func @transform_17(%arg0: i32, %arg1: i32) -> (i32, i32, i32, i32) {
    %c0_i32 = arith.constant 0 : i32
    %c0_i32_0 = arith.constant 0 : i32
    %c0_i32_1 = arith.constant 0 : i32
    return %arg0, %arg1, %c0_i32, %c0_i32_0 : i32, i32, i32, i32
  }
  func.func @transform_18(%arg0: i32, %arg1: i32) -> (i32, i32) {
    %c0_i32 = arith.constant 0 : i32
    %c0_i32_0 = arith.constant 0 : i32
    %c0_i32_1 = arith.constant 0 : i32
    return %c0_i32, %c0_i32_0 : i32, i32
  }
  func.func @transform_19(%arg0: i32, %arg1: i32) -> (i32, i32) {
    %c0_i32 = arith.constant 0 : i32
    %c0_i32_0 = arith.constant 0 : i32
    %c0_i32_1 = arith.constant 0 : i32
    return %c0_i32, %c0_i32_0 : i32, i32
  }
  func.func @transform_20(%arg0: i32, %arg1: i32) -> (i32, i32, i32) {
    %c0_i32 = arith.constant 0 : i32
    %c0_i32_0 = arith.constant 0 : i32
    %c0_i32_1 = arith.constant 0 : i32
    return %arg0, %c0_i32, %c0_i32_0 : i32, i32, i32
  }
}

</mosaic_0001>

<llo_original>
// kernel: row_column_attention_encoder.1
$region0: #{row_column_attention_encoder.1}
  #allocation0 [shape = 'u32[]', space=smem, size = 0x4, offset = 0x4, fixed_abs, tag = 'smem constant byte address 0x4 - core index']
  #allocation1 [shape = 'u32[72,128]{1,0:T(1,128)}', space=vmem, size = 0x9000, scoped, tag = 'internal scratch']
  %s0 = inlined_call_operand.vmem [shape: f32[8,32], index: 0, kind: input, shape index: {}]
  %s1 = inlined_call_operand.vmem [shape: f32[2,16,256], index: 1, kind: input, shape index: {}]
  %s2 = inlined_call_operand.vmem [shape: bf16[2,256,32], index: 2, kind: input, shape index: {}]
  %s3 = inlined_call_operand.vmem [shape: f32[2,1,32], index: 3, kind: input, shape index: {}]
  %s4 = inlined_call_operand.vmem [shape: bf16[2,2,32,64], index: 4, kind: input, shape index: {}]
  %s5 = inlined_call_operand.vmem [shape: f32[2,2,1,64], index: 5, kind: input, shape index: {}]
  %s6 = inlined_call_operand.vmem [shape: bf16[2,2,32,32], index: 6, kind: input, shape index: {}]
  %s7 = inlined_call_operand.vmem [shape: f32[2,2,1,32], index: 7, kind: input, shape index: {}]
  %s8 = inlined_call_operand.vmem [shape: bf16[2,2,32,32], index: 8, kind: input, shape index: {}]
  %s9 = inlined_call_operand.vmem [shape: f32[2,2,1,32], index: 9, kind: input, shape index: {}]
  %s10 = inlined_call_operand.vmem [shape: bf16[2,2,32,128], index: 10, kind: input, shape index: {}]
  %s11 = inlined_call_operand.vmem [shape: f32[2,2,1,128], index: 11, kind: input, shape index: {}]
  %s12 = inlined_call_operand.vmem [shape: bf16[2,2,128,32], index: 12, kind: input, shape index: {}]
  %s13 = inlined_call_operand.vmem [shape: f32[2,2,1,32], index: 13, kind: input, shape index: {}]
  %s14 = inlined_call_operand.vmem [shape: f32[2,2,1,32], index: 14, kind: input, shape index: {}]
  %s15 = inlined_call_operand.vmem [shape: f32[2,2,1,32], index: 15, kind: input, shape index: {}]
  %s16 = inlined_call_operand.vmem [shape: f32[2,2,1,32], index: 16, kind: input, shape index: {}]
  %s17 = inlined_call_operand.vmem [shape: f32[2,2,1,32], index: 17, kind: input, shape index: {}]
  %s18 = inlined_call_operand.vmem [shape: f32[1,32], index: 18, kind: input, shape index: {}]
  %s19 = inlined_call_operand.vmem [shape: f32[1,32], index: 19, kind: input, shape index: {}]
  %s20 = inlined_call_operand.vmem [shape: f32[2,16,32], index: 20, kind: output, shape index: {}]
  %s21 = sld [smem:[#allocation0]]
  $region121: #{row_column_attention_encoder.1} parent=0
    _
  %s23 = ssub.s32 1, %s21
  %s24 = scalar_select 0, %s23, %s21
  loop: start=0, step=1, limit=6
  $region2: #{row_column_attention_encoder.1} parent=0 // loop_pre_header
    _
  $region3: #{row_column_attention_encoder.1} parent=0 // loop_header
    %s26 = sphi 0, %s30
    %p27 = scmp.ge.s32.totalorder %s26, 6
    %s33 = sphi 0, %s45
    %s34 = sphi 0, %s41
    %s35 = sphi 0, %s33
    %s36 = sphi 0, %s34
    %s37 = sphi 0, %s35
    %s38 = sphi 0, %s36
    %s46 = sphi 0, %s46
    %s48 = sphi 0, %s46
    %s49 = sphi 0, %s48
    %s63 = sphi 0, %s49
    %s69 = sphi 0, %s71
    %s72 = sphi 0, %s69
    %s73 = sphi 0, %s72
    %s89 = sphi 0, %s73
    %s95 = sphi 0, %s97
    %s98 = sphi 0, %s95
    %s99 = sphi 0, %s98
    %s115 = sphi 0, %s99
    %s121 = sphi 0, %s123
    %s124 = sphi 0, %s121
    %s125 = sphi 0, %s124
    %s141 = sphi 0, %s125
    %s149 = sphi 0, %s151
    %s152 = sphi 0, %s149
    %s153 = sphi 0, %s152
    %s169 = sphi 0, %s153
    %s177 = sphi 0, %s179
    %s180 = sphi 0, %s177
    %s181 = sphi 0, %s180
    %s197 = sphi 0, %s181
    %s205 = sphi 0, %s207
    %s208 = sphi 0, %s205
    %s209 = sphi 0, %s208
    %s225 = sphi 0, %s209
    %s233 = sphi 0, %s235
    %s236 = sphi 0, %s233
    %s237 = sphi 0, %s236
    %s253 = sphi 0, %s237
    %s261 = sphi 0, %s263
    %s264 = sphi 0, %s261
    %s265 = sphi 0, %s264
    %s281 = sphi 0, %s265
    %s289 = sphi 0, %s291
    %s292 = sphi 0, %s289
    %s293 = sphi 0, %s292
    %s309 = sphi 0, %s293
    %s317 = sphi 0, %s319
    %s320 = sphi 0, %s317
    %s321 = sphi 0, %s320
    %s337 = sphi 0, %s321
    %s345 = sphi 0, %s347
    %s348 = sphi 0, %s345
    %s349 = sphi 0, %s348
    %s365 = sphi 0, %s349
    %s373 = sphi 0, %s375
    %s376 = sphi 0, %s373
    %s377 = sphi 0, %s376
    %s393 = sphi 0, %s377
    %s401 = sphi 0, %s403
    %s404 = sphi 0, %s401
    %s405 = sphi 0, %s404
    %s421 = sphi 0, %s405
    %s429 = sphi 0, %s431
    %s432 = sphi 0, %s429
    %s433 = sphi 0, %s432
    %s449 = sphi 0, %s433
    %s457 = sphi 0, %s459
    %s460 = sphi 0, %s457
    %s461 = sphi 0, %s460
    %s477 = sphi 0, %s461
    %s485 = sphi 0, %s487
    %s488 = sphi 0, %s485
    %s489 = sphi 0, %s488
    %s505 = sphi 0, %s489
    %s513 = sphi 0, %s515
    %s516 = sphi 0, %s513
    %s517 = sphi 0, %s516
    %s533 = sphi 0, %s517
    %s537 = sphi 0, %s537
    %s539 = sphi 0, %s537
    %s540 = sphi 0, %s539
    %s554 = sphi 0, %s540
    %s558 = sphi 0, %s558
    %s560 = sphi 0, %s558
    %s561 = sphi 0, %s560
    %s575 = sphi 0, %s561
    %s581 = sphi 0, %s583
    %s584 = sphi 0, %s581
    %s585 = sphi 0, %s584
    %s601 = sphi 0, %s585
  $region4: #{row_column_attention_encoder.1} parent=0 // loop_header_branch
    %29 = sbr.rel (%p27) target = $region8
  $region5: #{row_column_attention_encoder.1} parent=0 // loop_body
    %s31 = ssub.s32 %s26, 1
    %s32 = ssub.s32 %s26, 2
    %s39 = sadd.s32 1, %s34
    %p40 = scmp.ge.s32.totalorder %s39, 2
    %s41 = scalar_select %p40, 0, %s39
    %s42 = sadd.s32 1, %s33
    %s43 = scalar_select %p40, %s42, %s33
    %p44 = scmp.ge.s32.totalorder %s43, 2
    %s45 = scalar_select %p44, 0, %s43
    %s47 = sadd.s32 %s46, 1
    %p50 = scmp.eq.s32.totalorder %s26, 3
    %p51 = scmp.ne.s32.totalorder %s46, %s48
    %p52 = scmp.eq.s32.totalorder %s26, 0
    %p53 = por %p51, %p52
    %p54 = scmp.ne.s32.totalorder %s46, %s48
    %p55 = scmp.eq.s32.totalorder %s31, 3
    %p56 = por %p54, %p55
    %p57 = scmp.ne.s32.totalorder %s48, %s49
    %p58 = scmp.eq.s32.totalorder %s31, 0
    %p59 = por %p57, %p58
    %p60 = scmp.ne.s32.totalorder %s48, %s49
    %p61 = scmp.eq.s32.totalorder %s32, 3
    %p62 = por %p60, %p61
    %p64 = scmp.ne.s32.totalorder %s49, %s63
    %p65 = scmp.eq.s32.totalorder %s32, 0
    %p66 = por %p64, %p65
    %s67 = ssub.s32 %s33, %s45
    %p68 = scmp.eq.s32.totalorder %s67, 0
    %s70 = sadd.s32 %s69, 1
    %s71 = scalar_select %p68, %s69, %s70
    %p74 = pneg %p68
    %p75 = scmp.eq.s32.totalorder %s26, 3
    %p76 = por %p74, %p75
    %p77 = scmp.ne.s32.totalorder %s69, %s72
    %p78 = scmp.eq.s32.totalorder %s26, 0
    %p79 = por %p77, %p78
    %p80 = scmp.ne.s32.totalorder %s69, %s72
    %p81 = scmp.eq.s32.totalorder %s31, 3
    %p82 = por %p80, %p81
    %p83 = scmp.ne.s32.totalorder %s72, %s73
    %p84 = scmp.eq.s32.totalorder %s31, 0
    %p85 = por %p83, %p84
    %p86 = scmp.ne.s32.totalorder %s72, %s73
    %p87 = scmp.eq.s32.totalorder %s32, 3
    %p88 = por %p86, %p87
    %p90 = scmp.ne.s32.totalorder %s73, %s89
    %p91 = scmp.eq.s32.totalorder %s32, 0
    %p92 = por %p90, %p91
    %s93 = ssub.s32 %s33, %s45
    %p94 = scmp.eq.s32.totalorder %s93, 0
    %s96 = sadd.s32 %s95, 1
    %s97 = scalar_select %p94, %s95, %s96
    %p100 = pneg %p94
    %p101 = scmp.eq.s32.totalorder %s26, 3
    %p102 = por %p100, %p101
    %p103 = scmp.ne.s32.totalorder %s95, %s98
    %p104 = scmp.eq.s32.totalorder %s26, 0
    %p105 = por %p103, %p104
    %p106 = scmp.ne.s32.totalorder %s95, %s98
    %p107 = scmp.eq.s32.totalorder %s31, 3
    %p108 = por %p106, %p107
    %p109 = scmp.ne.s32.totalorder %s98, %s99
    %p110 = scmp.eq.s32.totalorder %s31, 0
    %p111 = por %p109, %p110
    %p112 = scmp.ne.s32.totalorder %s98, %s99
    %p113 = scmp.eq.s32.totalorder %s32, 3
    %p114 = por %p112, %p113
    %p116 = scmp.ne.s32.totalorder %s99, %s115
    %p117 = scmp.eq.s32.totalorder %s32, 0
    %p118 = por %p116, %p117
    %s119 = ssub.s32 %s33, %s45
    %p120 = scmp.eq.s32.totalorder %s119, 0
    %s122 = sadd.s32 %s121, 1
    %s123 = scalar_select %p120, %s121, %s122
    %p126 = pneg %p120
    %p127 = scmp.eq.s32.totalorder %s26, 3
    %p128 = por %p126, %p127
    %p129 = scmp.ne.s32.totalorder %s121, %s124
    %p130 = scmp.eq.s32.totalorder %s26, 0
    %p131 = por %p129, %p130
    %p132 = scmp.ne.s32.totalorder %s121, %s124
    %p133 = scmp.eq.s32.totalorder %s31, 3
    %p134 = por %p132, %p133
    %p135 = scmp.ne.s32.totalorder %s124, %s125
    %p136 = scmp.eq.s32.totalorder %s31, 0
    %p137 = por %p135, %p136
    %p138 = scmp.ne.s32.totalorder %s124, %s125
    %p139 = scmp.eq.s32.totalorder %s32, 3
    %p140 = por %p138, %p139
    %p142 = scmp.ne.s32.totalorder %s125, %s141
    %p143 = scmp.eq.s32.totalorder %s32, 0
    %p144 = por %p142, %p143
    %s145 = ssub.s32 %s33, %s45
    %s146 = ssub.s32 %s34, %s41
    %s147 = sor.u32 %s145, %s146
    %p148 = scmp.eq.s32.totalorder %s147, 0
    %s150 = sadd.s32 %s149, 1
    %s151 = scalar_select %p148, %s149, %s150
    %p154 = pneg %p148
    %p155 = scmp.eq.s32.totalorder %s26, 3
    %p156 = por %p154, %p155
    %p157 = scmp.ne.s32.totalorder %s149, %s152
    %p158 = scmp.eq.s32.totalorder %s26, 0
    %p159 = por %p157, %p158
    %p160 = scmp.ne.s32.totalorder %s149, %s152
    %p161 = scmp.eq.s32.totalorder %s31, 3
    %p162 = por %p160, %p161
    %p163 = scmp.ne.s32.totalorder %s152, %s153
    %p164 = scmp.eq.s32.totalorder %s31, 0
    %p165 = por %p163, %p164
    %p166 = scmp.ne.s32.totalorder %s152, %s153
    %p167 = scmp.eq.s32.totalorder %s32, 3
    %p168 = por %p166, %p167
    %p170 = scmp.ne.s32.totalorder %s153, %s169
    %p171 = scmp.eq.s32.totalorder %s32, 0
    %p172 = por %p170, %p171
    %s173 = ssub.s32 %s33, %s45
    %s174 = ssub.s32 %s34, %s41
    %s175 = sor.u32 %s173, %s174
    %p176 = scmp.eq.s32.totalorder %s175, 0
    %s178 = sadd.s32 %s177, 1
    %s179 = scalar_select %p176, %s177, %s178
    %p182 = pneg %p176
    %p183 = scmp.eq.s32.totalorder %s26, 3
    %p184 = por %p182, %p183
    %p185 = scmp.ne.s32.totalorder %s177, %s180
    %p186 = scmp.eq.s32.totalorder %s26, 0
    %p187 = por %p185, %p186
    %p188 = scmp.ne.s32.totalorder %s177, %s180
    %p189 = scmp.eq.s32.totalorder %s31, 3
    %p190 = por %p188, %p189
    %p191 = scmp.ne.s32.totalorder %s180, %s181
    %p192 = scmp.eq.s32.totalorder %s31, 0
    %p193 = por %p191, %p192
    %p194 = scmp.ne.s32.totalorder %s180, %s181
    %p195 = scmp.eq.s32.totalorder %s32, 3
    %p196 = por %p194, %p195
    %p198 = scmp.ne.s32.totalorder %s181, %s197
    %p199 = scmp.eq.s32.totalorder %s32, 0
    %p200 = por %p198, %p199
    %s201 = ssub.s32 %s33, %s45
    %s202 = ssub.s32 %s34, %s41
    %s203 = sor.u32 %s201, %s202
    %p204 = scmp.eq.s32.totalorder %s203, 0
    %s206 = sadd.s32 %s205, 1
    %s207 = scalar_select %p204, %s205, %s206
    %p210 = pneg %p204
    %p211 = scmp.eq.s32.totalorder %s26, 3
    %p212 = por %p210, %p211
    %p213 = scmp.ne.s32.totalorder %s205, %s208
    %p214 = scmp.eq.s32.totalorder %s26, 0
    %p215 = por %p213, %p214
    %p216 = scmp.ne.s32.totalorder %s205, %s208
    %p217 = scmp.eq.s32.totalorder %s31, 3
    %p218 = por %p216, %p217
    %p219 = scmp.ne.s32.totalorder %s208, %s209
    %p220 = scmp.eq.s32.totalorder %s31, 0
    %p221 = por %p219, %p220
    %p222 = scmp.ne.s32.totalorder %s208, %s209
    %p223 = scmp.eq.s32.totalorder %s32, 3
    %p224 = por %p222, %p223
    %p226 = scmp.ne.s32.totalorder %s209, %s225
    %p227 = scmp.eq.s32.totalorder %s32, 0
    %p228 = por %p226, %p227
    %s229 = ssub.s32 %s33, %s45
    %s230 = ssub.s32 %s34, %s41
    %s231 = sor.u32 %s229, %s230
    %p232 = scmp.eq.s32.totalorder %s231, 0
    %s234 = sadd.s32 %s233, 1
    %s235 = scalar_select %p232, %s233, %s234
    %p238 = pneg %p232
    %p239 = scmp.eq.s32.totalorder %s26, 3
    %p240 = por %p238, %p239
    %p241 = scmp.ne.s32.totalorder %s233, %s236
    %p242 = scmp.eq.s32.totalorder %s26, 0
    %p243 = por %p241, %p242
    %p244 = scmp.ne.s32.totalorder %s233, %s236
    %p245 = scmp.eq.s32.totalorder %s31, 3
    %p246 = por %p244, %p245
    %p247 = scmp.ne.s32.totalorder %s236, %s237
    %p248 = scmp.eq.s32.totalorder %s31, 0
    %p249 = por %p247, %p248
    %p250 = scmp.ne.s32.totalorder %s236, %s237
    %p251 = scmp.eq.s32.totalorder %s32, 3
    %p252 = por %p250, %p251
    %p254 = scmp.ne.s32.totalorder %s237, %s253
    %p255 = scmp.eq.s32.totalorder %s32, 0
    %p256 = por %p254, %p255
    %s257 = ssub.s32 %s33, %s45
    %s258 = ssub.s32 %s34, %s41
    %s259 = sor.u32 %s257, %s258
    %p260 = scmp.eq.s32.totalorder %s259, 0
    %s262 = sadd.s32 %s261, 1
    %s263 = scalar_select %p260, %s261, %s262
    %p266 = pneg %p260
    %p267 = scmp.eq.s32.totalorder %s26, 3
    %p268 = por %p266, %p267
    %p269 = scmp.ne.s32.totalorder %s261, %s264
    %p270 = scmp.eq.s32.totalorder %s26, 0
    %p271 = por %p269, %p270
    %p272 = scmp.ne.s32.totalorder %s261, %s264
    %p273 = scmp.eq.s32.totalorder %s31, 3
    %p274 = por %p272, %p273
    %p275 = scmp.ne.s32.totalorder %s264, %s265
    %p276 = scmp.eq.s32.totalorder %s31, 0
    %p277 = por %p275, %p276
    %p278 = scmp.ne.s32.totalorder %s264, %s265
    %p279 = scmp.eq.s32.totalorder %s32, 3
    %p280 = por %p278, %p279
    %p282 = scmp.ne.s32.totalorder %s265, %s281
    %p283 = scmp.eq.s32.totalorder %s32, 0
    %p284 = por %p282, %p283
    %s285 = ssub.s32 %s33, %s45
    %s286 = ssub.s32 %s34, %s41
    %s287 = sor.u32 %s285, %s286
    %p288 = scmp.eq.s32.totalorder %s287, 0
    %s290 = sadd.s32 %s289, 1
    %s291 = scalar_select %p288, %s289, %s290
    %p294 = pneg %p288
    %p295 = scmp.eq.s32.totalorder %s26, 3
    %p296 = por %p294, %p295
    %p297 = scmp.ne.s32.totalorder %s289, %s292
    %p298 = scmp.eq.s32.totalorder %s26, 0
    %p299 = por %p297, %p298
    %p300 = scmp.ne.s32.totalorder %s289, %s292
    %p301 = scmp.eq.s32.totalorder %s31, 3
    %p302 = por %p300, %p301
    %p303 = scmp.ne.s32.totalorder %s292, %s293
    %p304 = scmp.eq.s32.totalorder %s31, 0
    %p305 = por %p303, %p304
    %p306 = scmp.ne.s32.totalorder %s292, %s293
    %p307 = scmp.eq.s32.totalorder %s32, 3
    %p308 = por %p306, %p307
    %p310 = scmp.ne.s32.totalorder %s293, %s309
    %p311 = scmp.eq.s32.totalorder %s32, 0
    %p312 = por %p310, %p311
    %s313 = ssub.s32 %s33, %s45
    %s314 = ssub.s32 %s34, %s41
    %s315 = sor.u32 %s313, %s314
    %p316 = scmp.eq.s32.totalorder %s315, 0
    %s318 = sadd.s32 %s317, 1
    %s319 = scalar_select %p316, %s317, %s318
    %p322 = pneg %p316
    %p323 = scmp.eq.s32.totalorder %s26, 3
    %p324 = por %p322, %p323
    %p325 = scmp.ne.s32.totalorder %s317, %s320
    %p326 = scmp.eq.s32.totalorder %s26, 0
    %p327 = por %p325, %p326
    %p328 = scmp.ne.s32.totalorder %s317, %s320
    %p329 = scmp.eq.s32.totalorder %s31, 3
    %p330 = por %p328, %p329
    %p331 = scmp.ne.s32.totalorder %s320, %s321
    %p332 = scmp.eq.s32.totalorder %s31, 0
    %p333 = por %p331, %p332
    %p334 = scmp.ne.s32.totalorder %s320, %s321
    %p335 = scmp.eq.s32.totalorder %s32, 3
    %p336 = por %p334, %p335
    %p338 = scmp.ne.s32.totalorder %s321, %s337
    %p339 = scmp.eq.s32.totalorder %s32, 0
    %p340 = por %p338, %p339
    %s341 = ssub.s32 %s33, %s45
    %s342 = ssub.s32 %s34, %s41
    %s343 = sor.u32 %s341, %s342
    %p344 = scmp.eq.s32.totalorder %s343, 0
    %s346 = sadd.s32 %s345, 1
    %s347 = scalar_select %p344, %s345, %s346
    %p350 = pneg %p344
    %p351 = scmp.eq.s32.totalorder %s26, 3
    %p352 = por %p350, %p351
    %p353 = scmp.ne.s32.totalorder %s345, %s348
    %p354 = scmp.eq.s32.totalorder %s26, 0
    %p355 = por %p353, %p354
    %p356 = scmp.ne.s32.totalorder %s345, %s348
    %p357 = scmp.eq.s32.totalorder %s31, 3
    %p358 = por %p356, %p357
    %p359 = scmp.ne.s32.totalorder %s348, %s349
    %p360 = scmp.eq.s32.totalorder %s31, 0
    %p361 = por %p359, %p360
    %p362 = scmp.ne.s32.totalorder %s348, %s349
    %p363 = scmp.eq.s32.totalorder %s32, 3
    %p364 = por %p362, %p363
    %p366 = scmp.ne.s32.totalorder %s349, %s365
    %p367 = scmp.eq.s32.totalorder %s32, 0
    %p368 = por %p366, %p367
    %s369 = ssub.s32 %s33, %s45
    %s370 = ssub.s32 %s34, %s41
    %s371 = sor.u32 %s369, %s370
    %p372 = scmp.eq.s32.totalorder %s371, 0
    %s374 = sadd.s32 %s373, 1
    %s375 = scalar_select %p372, %s373, %s374
    %p378 = pneg %p372
    %p379 = scmp.eq.s32.totalorder %s26, 3
    %p380 = por %p378, %p379
    %p381 = scmp.ne.s32.totalorder %s373, %s376
    %p382 = scmp.eq.s32.totalorder %s26, 0
    %p383 = por %p381, %p382
    %p384 = scmp.ne.s32.totalorder %s373, %s376
    %p385 = scmp.eq.s32.totalorder %s31, 3
    %p386 = por %p384, %p385
    %p387 = scmp.ne.s32.totalorder %s376, %s377
    %p388 = scmp.eq.s32.totalorder %s31, 0
    %p389 = por %p387, %p388
    %p390 = scmp.ne.s32.totalorder %s376, %s377
    %p391 = scmp.eq.s32.totalorder %s32, 3
    %p392 = por %p390, %p391
    %p394 = scmp.ne.s32.totalorder %s377, %s393
    %p395 = scmp.eq.s32.totalorder %s32, 0
    %p396 = por %p394, %p395
    %s397 = ssub.s32 %s33, %s45
    %s398 = ssub.s32 %s34, %s41
    %s399 = sor.u32 %s397, %s398
    %p400 = scmp.eq.s32.totalorder %s399, 0
    %s402 = sadd.s32 %s401, 1
    %s403 = scalar_select %p400, %s401, %s402
    %p406 = pneg %p400
    %p407 = scmp.eq.s32.totalorder %s26, 3
    %p408 = por %p406, %p407
    %p409 = scmp.ne.s32.totalorder %s401, %s404
    %p410 = scmp.eq.s32.totalorder %s26, 0
    %p411 = por %p409, %p410
    %p412 = scmp.ne.s32.totalorder %s401, %s404
    %p413 = scmp.eq.s32.totalorder %s31, 3
    %p414 = por %p412, %p413
    %p415 = scmp.ne.s32.totalorder %s404, %s405
    %p416 = scmp.eq.s32.totalorder %s31, 0
    %p417 = por %p415, %p416
    %p418 = scmp.ne.s32.totalorder %s404, %s405
    %p419 = scmp.eq.s32.totalorder %s32, 3
    %p420 = por %p418, %p419
    %p422 = scmp.ne.s32.totalorder %s405, %s421
    %p423 = scmp.eq.s32.totalorder %s32, 0
    %p424 = por %p422, %p423
    %s425 = ssub.s32 %s33, %s45
    %s426 = ssub.s32 %s34, %s41
    %s427 = sor.u32 %s425, %s426
    %p428 = scmp.eq.s32.totalorder %s427, 0
    %s430 = sadd.s32 %s429, 1
    %s431 = scalar_select %p428, %s429, %s430
    %p434 = pneg %p428
    %p435 = scmp.eq.s32.totalorder %s26, 3
    %p436 = por %p434, %p435
    %p437 = scmp.ne.s32.totalorder %s429, %s432
    %p438 = scmp.eq.s32.totalorder %s26, 0
    %p439 = por %p437, %p438
    %p440 = scmp.ne.s32.totalorder %s429, %s432
    %p441 = scmp.eq.s32.totalorder %s31, 3
    %p442 = por %p440, %p441
    %p443 = scmp.ne.s32.totalorder %s432, %s433
    %p444 = scmp.eq.s32.totalorder %s31, 0
    %p445 = por %p443, %p444
    %p446 = scmp.ne.s32.totalorder %s432, %s433
    %p447 = scmp.eq.s32.totalorder %s32, 3
    %p448 = por %p446, %p447
    %p450 = scmp.ne.s32.totalorder %s433, %s449
    %p451 = scmp.eq.s32.totalorder %s32, 0
    %p452 = por %p450, %p451
    %s453 = ssub.s32 %s33, %s45
    %s454 = ssub.s32 %s34, %s41
    %s455 = sor.u32 %s453, %s454
    %p456 = scmp.eq.s32.totalorder %s455, 0
    %s458 = sadd.s32 %s457, 1
    %s459 = scalar_select %p456, %s457, %s458
    %p462 = pneg %p456
    %p463 = scmp.eq.s32.totalorder %s26, 3
    %p464 = por %p462, %p463
    %p465 = scmp.ne.s32.totalorder %s457, %s460
    %p466 = scmp.eq.s32.totalorder %s26, 0
    %p467 = por %p465, %p466
    %p468 = scmp.ne.s32.totalorder %s457, %s460
    %p469 = scmp.eq.s32.totalorder %s31, 3
    %p470 = por %p468, %p469
    %p471 = scmp.ne.s32.totalorder %s460, %s461
    %p472 = scmp.eq.s32.totalorder %s31, 0
    %p473 = por %p471, %p472
    %p474 = scmp.ne.s32.totalorder %s460, %s461
    %p475 = scmp.eq.s32.totalorder %s32, 3
    %p476 = por %p474, %p475
    %p478 = scmp.ne.s32.totalorder %s461, %s477
    %p479 = scmp.eq.s32.totalorder %s32, 0
    %p480 = por %p478, %p479
    %s481 = ssub.s32 %s33, %s45
    %s482 = ssub.s32 %s34, %s41
    %s483 = sor.u32 %s481, %s482
    %p484 = scmp.eq.s32.totalorder %s483, 0
    %s486 = sadd.s32 %s485, 1
    %s487 = scalar_select %p484, %s485, %s486
    %p490 = pneg %p484
    %p491 = scmp.eq.s32.totalorder %s26, 3
    %p492 = por %p490, %p491
    %p493 = scmp.ne.s32.totalorder %s485, %s488
    %p494 = scmp.eq.s32.totalorder %s26, 0
    %p495 = por %p493, %p494
    %p496 = scmp.ne.s32.totalorder %s485, %s488
    %p497 = scmp.eq.s32.totalorder %s31, 3
    %p498 = por %p496, %p497
    %p499 = scmp.ne.s32.totalorder %s488, %s489
    %p500 = scmp.eq.s32.totalorder %s31, 0
    %p501 = por %p499, %p500
    %p502 = scmp.ne.s32.totalorder %s488, %s489
    %p503 = scmp.eq.s32.totalorder %s32, 3
    %p504 = por %p502, %p503
    %p506 = scmp.ne.s32.totalorder %s489, %s505
    %p507 = scmp.eq.s32.totalorder %s32, 0
    %p508 = por %p506, %p507
    %s509 = ssub.s32 %s33, %s45
    %s510 = ssub.s32 %s34, %s41
    %s511 = sor.u32 %s509, %s510
    %p512 = scmp.eq.s32.totalorder %s511, 0
    %s514 = sadd.s32 %s513, 1
    %s515 = scalar_select %p512, %s513, %s514
    %p518 = pneg %p512
    %p519 = scmp.eq.s32.totalorder %s26, 3
    %p520 = por %p518, %p519
    %p521 = scmp.ne.s32.totalorder %s513, %s516
    %p522 = scmp.eq.s32.totalorder %s26, 0
    %p523 = por %p521, %p522
    %p524 = scmp.ne.s32.totalorder %s513, %s516
    %p525 = scmp.eq.s32.totalorder %s31, 3
    %p526 = por %p524, %p525
    %p527 = scmp.ne.s32.totalorder %s516, %s517
    %p528 = scmp.eq.s32.totalorder %s31, 0
    %p529 = por %p527, %p528
    %p530 = scmp.ne.s32.totalorder %s516, %s517
    %p531 = scmp.eq.s32.totalorder %s32, 3
    %p532 = por %p530, %p531
    %p534 = scmp.ne.s32.totalorder %s517, %s533
    %p535 = scmp.eq.s32.totalorder %s32, 0
    %p536 = por %p534, %p535
    %s538 = sadd.s32 %s537, 1
    %p541 = scmp.eq.s32.totalorder %s26, 3
    %p542 = scmp.ne.s32.totalorder %s537, %s539
    %p543 = scmp.eq.s32.totalorder %s26, 0
    %p544 = por %p542, %p543
    %p545 = scmp.ne.s32.totalorder %s537, %s539
    %p546 = scmp.eq.s32.totalorder %s31, 3
    %p547 = por %p545, %p546
    %p548 = scmp.ne.s32.totalorder %s539, %s540
    %p549 = scmp.eq.s32.totalorder %s31, 0
    %p550 = por %p548, %p549
    %p551 = scmp.ne.s32.totalorder %s539, %s540
    %p552 = scmp.eq.s32.totalorder %s32, 3
    %p553 = por %p551, %p552
    %p555 = scmp.ne.s32.totalorder %s540, %s554
    %p556 = scmp.eq.s32.totalorder %s32, 0
    %p557 = por %p555, %p556
    %s559 = sadd.s32 %s558, 1
    %p562 = scmp.eq.s32.totalorder %s26, 3
    %p563 = scmp.ne.s32.totalorder %s558, %s560
    %p564 = scmp.eq.s32.totalorder %s26, 0
    %p565 = por %p563, %p564
    %p566 = scmp.ne.s32.totalorder %s558, %s560
    %p567 = scmp.eq.s32.totalorder %s31, 3
    %p568 = por %p566, %p567
    %p569 = scmp.ne.s32.totalorder %s560, %s561
    %p570 = scmp.eq.s32.totalorder %s31, 0
    %p571 = por %p569, %p570
    %p572 = scmp.ne.s32.totalorder %s560, %s561
    %p573 = scmp.eq.s32.totalorder %s32, 3
    %p574 = por %p572, %p573
    %p576 = scmp.ne.s32.totalorder %s561, %s575
    %p577 = scmp.eq.s32.totalorder %s32, 0
    %p578 = por %p576, %p577
    %s579 = ssub.s32 %s33, %s45
    %p580 = scmp.eq.s32.totalorder %s579, 0
    %s582 = sadd.s32 %s581, 1
    %s583 = scalar_select %p580, %s581, %s582
    %p586 = pneg %p580
    %p587 = scmp.eq.s32.totalorder %s26, 3
    %p588 = por %p586, %p587
    %p589 = scmp.ne.s32.totalorder %s581, %s584
    %p590 = scmp.eq.s32.totalorder %s26, 0
    %p591 = por %p589, %p590
    %p592 = scmp.ne.s32.totalorder %s581, %s584
    %p593 = scmp.eq.s32.totalorder %s31, 3
    %p594 = por %p592, %p593
    %p595 = scmp.ne.s32.totalorder %s584, %s585
    %p596 = scmp.eq.s32.totalorder %s31, 0
    %p597 = por %p595, %p596
    %p598 = scmp.ne.s32.totalorder %s584, %s585
    %p599 = scmp.eq.s32.totalorder %s32, 3
    %p600 = por %p598, %p599
    %p602 = scmp.ne.s32.totalorder %s585, %s601
    %p603 = scmp.eq.s32.totalorder %s32, 0
    %p604 = por %p602, %p603
    %p605 = scmp.le.s32.totalorder 1, %s26
    %p606 = scmp.lt.s32.totalorder %s26, 5
    %p607 = pnand %p605, %p606
    %p608 = pneg %p607
    // Predicated region
    $region9: #{row_column_attention_encoder.1} parent=5 // pred_check
      _
    $region10: #{row_column_attention_encoder.1} parent=5 // pred_check_branch
      %610 = sbr.rel (%p607) target = $region12
    $region11: #{row_column_attention_encoder.1} parent=5 // pred_region
      %s611 = ssub.s32 %s26, 1
      // Predicated region
      $region13: #{row_column_attention_encoder.1} parent=11 // pred_check
        %p612 = pneg %p59
      $region14: #{row_column_attention_encoder.1} parent=11 // pred_check_branch
        %614 = sbr.rel (%p612) target = $region16
      $region15: #{row_column_attention_encoder.1} parent=11 // pred_region
        _
      $region16: #{row_column_attention_encoder.1} parent=11 // pred_fallthru
        _
      // Predicated region
      $region17: #{row_column_attention_encoder.1} parent=11 // pred_check
        %p615 = pneg %p550
      $region18: #{row_column_attention_encoder.1} parent=11 // pred_check_branch
        %617 = sbr.rel (%p615) target = $region20
      $region19: #{row_column_attention_encoder.1} parent=11 // pred_region
        _
      $region20: #{row_column_attention_encoder.1} parent=11 // pred_fallthru
        _
      // Predicated region
      $region21: #{row_column_attention_encoder.1} parent=11 // pred_check
        %p618 = pneg %p571
      $region22: #{row_column_attention_encoder.1} parent=11 // pred_check_branch
        %620 = sbr.rel (%p618) target = $region24
      $region23: #{row_column_attention_encoder.1} parent=11 // pred_region
        _
      $region24: #{row_column_attention_encoder.1} parent=11 // pred_fallthru
        _
    $region12: #{row_column_attention_encoder.1} parent=5 // pred_fallthru
      _
    %p621 = scmp.lt.s32.totalorder %s26, 4
    // Predicated region
    $region25: #{row_column_attention_encoder.1} parent=5 // pred_check
      %p622 = pneg %p621
    $region26: #{row_column_attention_encoder.1} parent=5 // pred_check_branch
      %624 = sbr.rel (%p622) target = $region28
    $region27: #{row_column_attention_encoder.1} parent=5 // pred_region
      // Predicated region
      $region29: #{row_column_attention_encoder.1} parent=27 // pred_check
        %p625 = pneg %p79
      $region30: #{row_column_attention_encoder.1} parent=27 // pred_check_branch
        %627 = sbr.rel (%p625) target = $region32
      $region31: #{row_column_attention_encoder.1} parent=27 // pred_region
        %p628 = scmp.lt.s32.totalorder %s33, 1
        %s629 = scalar_select %p628, %s33, 1
        %s630 = smul.addr %s629, 4
        %s631 = smul.addr %s630, 8
        %s632 = scalar_lea.vmem %s1, %s631
      $region32: #{row_column_attention_encoder.1} parent=27 // pred_fallthru
        _
      // Predicated region
      $region33: #{row_column_attention_encoder.1} parent=27 // pred_check
        %p633 = pneg %p105
      $region34: #{row_column_attention_encoder.1} parent=27 // pred_check_branch
        %635 = sbr.rel (%p633) target = $region36
      $region35: #{row_column_attention_encoder.1} parent=27 // pred_region
        %p636 = scmp.lt.s32.totalorder %s33, 1
        %s637 = scalar_select %p636, %s33, 1
        %s638 = smul.addr %s637, 32
        %s639 = smul.addr %s638, 4
        %s640 = scalar_lea.vmem %s2, %s639
      $region36: #{row_column_attention_encoder.1} parent=27 // pred_fallthru
        _
      // Predicated region
      $region37: #{row_column_attention_encoder.1} parent=27 // pred_check
        %p641 = pneg %p131
      $region38: #{row_column_attention_encoder.1} parent=27 // pred_check_branch
        %643 = sbr.rel (%p641) target = $region40
      $region39: #{row_column_attention_encoder.1} parent=27 // pred_region
        %p644 = scmp.lt.s32.totalorder %s33, 1
        %s645 = scalar_select %p644, %s33, 1
        %s646 = scalar_lea.vmem %s3, %s645
      $region40: #{row_column_attention_encoder.1} parent=27 // pred_fallthru
        _
      // Predicated region
      $region41: #{row_column_attention_encoder.1} parent=27 // pred_check
        %p647 = pneg %p159
      $region42: #{row_column_attention_encoder.1} parent=27 // pred_check_branch
        %649 = sbr.rel (%p647) target = $region44
      $region43: #{row_column_attention_encoder.1} parent=27 // pred_region
        %p650 = scmp.lt.s32.totalorder %s33, 1
        %s651 = scalar_select %p650, %s33, 1
        %p652 = scmp.lt.s32.totalorder %s34, 1
        %s653 = scalar_select %p652, %s34, 1
        %s654 = smul.addr %s653, 4
        %s655 = smul.addr %s651, 8
        %s656 = sadd.s32 %s654, %s655
        %s657 = smul.addr %s656, 4
        %s658 = scalar_lea.vmem %s4, %s657
      $region44: #{row_column_attention_encoder.1} parent=27 // pred_fallthru
        _
      // Predicated region
      $region45: #{row_column_attention_encoder.1} parent=27 // pred_check
        %p659 = pneg %p187
      $region46: #{row_column_attention_encoder.1} parent=27 // pred_check_branch
        %661 = sbr.rel (%p659) target = $region48
      $region47: #{row_column_attention_encoder.1} parent=27 // pred_region
        %p662 = scmp.lt.s32.totalorder %s33, 1
        %s663 = scalar_select %p662, %s33, 1
        %p664 = scmp.lt.s32.totalorder %s34, 1
        %s665 = scalar_select %p664, %s34, 1
        %s666 = smul.addr %s663, 2
        %s667 = sadd.s32 %s665, %s666
        %s668 = scalar_lea.vmem %s5, %s667
      $region48: #{row_column_attention_encoder.1} parent=27 // pred_fallthru
        _
      // Predicated region
      $region49: #{row_column_attention_encoder.1} parent=27 // pred_check
        %p669 = pneg %p215
      $region50: #{row_column_attention_encoder.1} parent=27 // pred_check_branch
        %671 = sbr.rel (%p669) target = $region52
      $region51: #{row_column_attention_encoder.1} parent=27 // pred_region
        %p672 = scmp.lt.s32.totalorder %s33, 1
        %s673 = scalar_select %p672, %s33, 1
        %p674 = scmp.lt.s32.totalorder %s34, 1
        %s675 = scalar_select %p674, %s34, 1
        %s676 = smul.addr %s675, 4
        %s677 = smul.addr %s673, 8
        %s678 = sadd.s32 %s676, %s677
        %s679 = smul.addr %s678, 4
        %s680 = scalar_lea.vmem %s6, %s679
      $region52: #{row_column_attention_encoder.1} parent=27 // pred_fallthru
        _
      // Predicated region
      $region53: #{row_column_attention_encoder.1} parent=27 // pred_check
        %p681 = pneg %p243
      $region54: #{row_column_attention_encoder.1} parent=27 // pred_check_branch
        %683 = sbr.rel (%p681) target = $region56
      $region55: #{row_column_attention_encoder.1} parent=27 // pred_region
        %p684 = scmp.lt.s32.totalorder %s33, 1
        %s685 = scalar_select %p684, %s33, 1
        %p686 = scmp.lt.s32.totalorder %s34, 1
        %s687 = scalar_select %p686, %s34, 1
        %s688 = smul.addr %s685, 2
        %s689 = sadd.s32 %s687, %s688
        %s690 = scalar_lea.vmem %s7, %s689
      $region56: #{row_column_attention_encoder.1} parent=27 // pred_fallthru
        _
      // Predicated region
      $region57: #{row_column_attention_encoder.1} parent=27 // pred_check
        %p691 = pneg %p271
      $region58: #{row_column_attention_encoder.1} parent=27 // pred_check_branch
        %693 = sbr.rel (%p691) target = $region60
      $region59: #{row_column_attention_encoder.1} parent=27 // pred_region
        %p694 = scmp.lt.s32.totalorder %s33, 1
        %s695 = scalar_select %p694, %s33, 1
        %p696 = scmp.lt.s32.totalorder %s34, 1
        %s697 = scalar_select %p696, %s34, 1
        %s698 = smul.addr %s697, 4
        %s699 = smul.addr %s695, 8
        %s700 = sadd.s32 %s698, %s699
        %s701 = smul.addr %s700, 4
        %s702 = scalar_lea.vmem %s8, %s701
      $region60: #{row_column_attention_encoder.1} parent=27 // pred_fallthru
        _
      // Predicated region
      $region61: #{row_column_attention_encoder.1} parent=27 // pred_check
        %p703 = pneg %p299
      $region62: #{row_column_attention_encoder.1} parent=27 // pred_check_branch
        %705 = sbr.rel (%p703) target = $region64
      $region63: #{row_column_attention_encoder.1} parent=27 // pred_region
        %p706 = scmp.lt.s32.totalorder %s33, 1
        %s707 = scalar_select %p706, %s33, 1
        %p708 = scmp.lt.s32.totalorder %s34, 1
        %s709 = scalar_select %p708, %s34, 1
        %s710 = smul.addr %s707, 2
        %s711 = sadd.s32 %s709, %s710
        %s712 = scalar_lea.vmem %s9, %s711
      $region64: #{row_column_attention_encoder.1} parent=27 // pred_fallthru
        _
      // Predicated region
      $region65: #{row_column_attention_encoder.1} parent=27 // pred_check
        %p713 = pneg %p327
      $region66: #{row_column_attention_encoder.1} parent=27 // pred_check_branch
        %715 = sbr.rel (%p713) target = $region68
      $region67: #{row_column_attention_encoder.1} parent=27 // pred_region
        %p716 = scmp.lt.s32.totalorder %s33, 1
        %s717 = scalar_select %p716, %s33, 1
        %p718 = scmp.lt.s32.totalorder %s34, 1
        %s719 = scalar_select %p718, %s34, 1
        %s720 = smul.addr %s719, 4
        %s721 = smul.addr %s717, 8
        %s722 = sadd.s32 %s720, %s721
        %s723 = smul.addr %s722, 4
        %s724 = scalar_lea.vmem %s10, %s723
      $region68: #{row_column_attention_encoder.1} parent=27 // pred_fallthru
        _
      // Predicated region
      $region69: #{row_column_attention_encoder.1} parent=27 // pred_check
        %p725 = pneg %p355
      $region70: #{row_column_attention_encoder.1} parent=27 // pred_check_branch
        %727 = sbr.rel (%p725) target = $region72
      $region71: #{row_column_attention_encoder.1} parent=27 // pred_region
        %p728 = scmp.lt.s32.totalorder %s33, 1
        %s729 = scalar_select %p728, %s33, 1
        %p730 = scmp.lt.s32.totalorder %s34, 1
        %s731 = scalar_select %p730, %s34, 1
        %s732 = smul.addr %s729, 2
        %s733 = sadd.s32 %s731, %s732
        %s734 = scalar_lea.vmem %s11, %s733
      $region72: #{row_column_attention_encoder.1} parent=27 // pred_fallthru
        _
      // Predicated region
      $region73: #{row_column_attention_encoder.1} parent=27 // pred_check
        %p735 = pneg %p383
      $region74: #{row_column_attention_encoder.1} parent=27 // pred_check_branch
        %737 = sbr.rel (%p735) target = $region76
      $region75: #{row_column_attention_encoder.1} parent=27 // pred_region
        %p738 = scmp.lt.s32.totalorder %s33, 1
        %s739 = scalar_select %p738, %s33, 1
        %p740 = scmp.lt.s32.totalorder %s34, 1
        %s741 = scalar_select %p740, %s34, 1
        %s742 = smul.addr %s741, 16
        %s743 = smul.addr %s739, 32
        %s744 = sadd.s32 %s742, %s743
        %s745 = smul.addr %s744, 4
        %s746 = scalar_lea.vmem %s12, %s745
      $region76: #{row_column_attention_encoder.1} parent=27 // pred_fallthru
        _
      // Predicated region
      $region77: #{row_column_attention_encoder.1} parent=27 // pred_check
        %p747 = pneg %p411
      $region78: #{row_column_attention_encoder.1} parent=27 // pred_check_branch
        %749 = sbr.rel (%p747) target = $region80
      $region79: #{row_column_attention_encoder.1} parent=27 // pred_region
        %p750 = scmp.lt.s32.totalorder %s33, 1
        %s751 = scalar_select %p750, %s33, 1
        %p752 = scmp.lt.s32.totalorder %s34, 1
        %s753 = scalar_select %p752, %s34, 1
        %s754 = smul.addr %s751, 2
        %s755 = sadd.s32 %s753, %s754
        %s756 = scalar_lea.vmem %s13, %s755
      $region80: #{row_column_attention_encoder.1} parent=27 // pred_fallthru
        _
      // Predicated region
      $region81: #{row_column_attention_encoder.1} parent=27 // pred_check
        %p757 = pneg %p439
      $region82: #{row_column_attention_encoder.1} parent=27 // pred_check_branch
        %759 = sbr.rel (%p757) target = $region84
      $region83: #{row_column_attention_encoder.1} parent=27 // pred_region
        %p760 = scmp.lt.s32.totalorder %s33, 1
        %s761 = scalar_select %p760, %s33, 1
        %p762 = scmp.lt.s32.totalorder %s34, 1
        %s763 = scalar_select %p762, %s34, 1
        %s764 = smul.addr %s761, 2
        %s765 = sadd.s32 %s763, %s764
        %s766 = scalar_lea.vmem %s14, %s765
      $region84: #{row_column_attention_encoder.1} parent=27 // pred_fallthru
        _
      // Predicated region
      $region85: #{row_column_attention_encoder.1} parent=27 // pred_check
        %p767 = pneg %p467
      $region86: #{row_column_attention_encoder.1} parent=27 // pred_check_branch
        %769 = sbr.rel (%p767) target = $region88
      $region87: #{row_column_attention_encoder.1} parent=27 // pred_region
        %p770 = scmp.lt.s32.totalorder %s33, 1
        %s771 = scalar_select %p770, %s33, 1
        %p772 = scmp.lt.s32.totalorder %s34, 1
        %s773 = scalar_select %p772, %s34, 1
        %s774 = smul.addr %s771, 2
        %s775 = sadd.s32 %s773, %s774
        %s776 = scalar_lea.vmem %s15, %s775
      $region88: #{row_column_attention_encoder.1} parent=27 // pred_fallthru
        _
      // Predicated region
      $region89: #{row_column_attention_encoder.1} parent=27 // pred_check
        %p777 = pneg %p495
      $region90: #{row_column_attention_encoder.1} parent=27 // pred_check_branch
        %779 = sbr.rel (%p777) target = $region92
      $region91: #{row_column_attention_encoder.1} parent=27 // pred_region
        %p780 = scmp.lt.s32.totalorder %s33, 1
        %s781 = scalar_select %p780, %s33, 1
        %p782 = scmp.lt.s32.totalorder %s34, 1
        %s783 = scalar_select %p782, %s34, 1
        %s784 = smul.addr %s781, 2
        %s785 = sadd.s32 %s783, %s784
        %s786 = scalar_lea.vmem %s16, %s785
      $region92: #{row_column_attention_encoder.1} parent=27 // pred_fallthru
        _
      // Predicated region
      $region93: #{row_column_attention_encoder.1} parent=27 // pred_check
        %p787 = pneg %p523
      $region94: #{row_column_attention_encoder.1} parent=27 // pred_check_branch
        %789 = sbr.rel (%p787) target = $region96
      $region95: #{row_column_attention_encoder.1} parent=27 // pred_region
        %p790 = scmp.lt.s32.totalorder %s33, 1
        %s791 = scalar_select %p790, %s33, 1
        %p792 = scmp.lt.s32.totalorder %s34, 1
        %s793 = scalar_select %p792, %s34, 1
        %s794 = smul.addr %s791, 2
        %s795 = sadd.s32 %s793, %s794
        %s796 = scalar_lea.vmem %s17, %s795
      $region96: #{row_column_attention_encoder.1} parent=27 // pred_fallthru
        _
    $region28: #{row_column_attention_encoder.1} parent=5 // pred_fallthru
      _
    %p797 = scmp.le.s32.totalorder 1, %s26
    %p798 = scmp.lt.s32.totalorder %s26, 5
    %p799 = pnand %p797, %p798
    %p800 = pneg %p799
    // Predicated region
    $region97: #{row_column_attention_encoder.1} parent=5 // pred_check
      _
    $region98: #{row_column_attention_encoder.1} parent=5 // pred_check_branch
      %802 = sbr.rel (%p799) target = $region100
    $region99: #{row_column_attention_encoder.1} parent=5 // pred_region
      %s803 = ssub.s32 %s26, 1
      %p804 = pneg %p59
      %p805 = pneg %p56
      %p806 = scmp.lt.s32.totalorder %s35, 1
      %s807 = scalar_select %p806, %s35, 1
      %s808 = smul.addr %s807, 4
      %s809 = smul.addr %s808, 8
      %s810 = scalar_lea.vmem %s1, %s809
      %p811 = pneg %p85
      %p812 = pneg %p82
      %p813 = scmp.lt.s32.totalorder %s35, 1
      %s814 = scalar_select %p813, %s35, 1
      %s815 = smul.addr %s814, 32
      %s816 = smul.addr %s815, 4
      %s817 = scalar_lea.vmem %s2, %s816
      %p818 = pneg %p111
      %p819 = pneg %p108
      %p820 = scmp.lt.s32.totalorder %s35, 1
      %s821 = scalar_select %p820, %s35, 1
      %s822 = scalar_lea.vmem %s3, %s821
      %p823 = pneg %p137
      %p824 = pneg %p134
      %p825 = scmp.lt.s32.totalorder %s35, 1
      %s826 = scalar_select %p825, %s35, 1
      %p827 = scmp.lt.s32.totalorder %s36, 1
      %s828 = scalar_select %p827, %s36, 1
      %s829 = smul.addr %s828, 4
      %s830 = smul.addr %s826, 8
      %s831 = sadd.s32 %s829, %s830
      %s832 = smul.addr %s831, 4
      %s833 = scalar_lea.vmem %s4, %s832
      %p834 = pneg %p165
      %p835 = pneg %p162
      %p836 = scmp.lt.s32.totalorder %s35, 1
      %s837 = scalar_select %p836, %s35, 1
      %p838 = scmp.lt.s32.totalorder %s36, 1
      %s839 = scalar_select %p838, %s36, 1
      %s840 = smul.addr %s837, 2
      %s841 = sadd.s32 %s839, %s840
      %s842 = scalar_lea.vmem %s5, %s841
      %p843 = pneg %p193
      %p844 = pneg %p190
      %p845 = scmp.lt.s32.totalorder %s35, 1
      %s846 = scalar_select %p845, %s35, 1
      %p847 = scmp.lt.s32.totalorder %s36, 1
      %s848 = scalar_select %p847, %s36, 1
      %s849 = smul.addr %s848, 4
      %s850 = smul.addr %s846, 8
      %s851 = sadd.s32 %s849, %s850
      %s852 = smul.addr %s851, 4
      %s853 = scalar_lea.vmem %s6, %s852
      %p854 = pneg %p221
      %p855 = pneg %p218
      %p856 = scmp.lt.s32.totalorder %s35, 1
      %s857 = scalar_select %p856, %s35, 1
      %p858 = scmp.lt.s32.totalorder %s36, 1
      %s859 = scalar_select %p858, %s36, 1
      %s860 = smul.addr %s857, 2
      %s861 = sadd.s32 %s859, %s860
      %s862 = scalar_lea.vmem %s7, %s861
      %p863 = pneg %p249
      %p864 = pneg %p246
      %p865 = scmp.lt.s32.totalorder %s35, 1
      %s866 = scalar_select %p865, %s35, 1
      %p867 = scmp.lt.s32.totalorder %s36, 1
      %s868 = scalar_select %p867, %s36, 1
      %s869 = smul.addr %s868, 4
      %s870 = smul.addr %s866, 8
      %s871 = sadd.s32 %s869, %s870
      %s872 = smul.addr %s871, 4
      %s873 = scalar_lea.vmem %s8, %s872
      %p874 = pneg %p277
      %p875 = pneg %p274
      %p876 = scmp.lt.s32.totalorder %s35, 1
      %s877 = scalar_select %p876, %s35, 1
      %p878 = scmp.lt.s32.totalorder %s36, 1
      %s879 = scalar_select %p878, %s36, 1
      %s880 = smul.addr %s877, 2
      %s881 = sadd.s32 %s879, %s880
      %s882 = scalar_lea.vmem %s9, %s881
      %p883 = pneg %p305
      %p884 = pneg %p302
      %p885 = scmp.lt.s32.totalorder %s35, 1
      %s886 = scalar_select %p885, %s35, 1
      %p887 = scmp.lt.s32.totalorder %s36, 1
      %s888 = scalar_select %p887, %s36, 1
      %s889 = smul.addr %s888, 4
      %s890 = smul.addr %s886, 8
      %s891 = sadd.s32 %s889, %s890
      %s892 = smul.addr %s891, 4
      %s893 = scalar_lea.vmem %s10, %s892
      %p894 = pneg %p333
      %p895 = pneg %p330
      %p896 = scmp.lt.s32.totalorder %s35, 1
      %s897 = scalar_select %p896, %s35, 1
      %p898 = scmp.lt.s32.totalorder %s36, 1
      %s899 = scalar_select %p898, %s36, 1
      %s900 = smul.addr %s897, 2
      %s901 = sadd.s32 %s899, %s900
      %s902 = scalar_lea.vmem %s11, %s901
      %p903 = pneg %p361
      %p904 = pneg %p358
      %p905 = scmp.lt.s32.totalorder %s35, 1
      %s906 = scalar_select %p905, %s35, 1
      %p907 = scmp.lt.s32.totalorder %s36, 1
      %s908 = scalar_select %p907, %s36, 1
      %s909 = smul.addr %s908, 16
      %s910 = smul.addr %s906, 32
      %s911 = sadd.s32 %s909, %s910
      %s912 = smul.addr %s911, 4
      %s913 = scalar_lea.vmem %s12, %s912
      %p914 = pneg %p389
      %p915 = pneg %p386
      %p916 = scmp.lt.s32.totalorder %s35, 1
      %s917 = scalar_select %p916, %s35, 1
      %p918 = scmp.lt.s32.totalorder %s36, 1
      %s919 = scalar_select %p918, %s36, 1
      %s920 = smul.addr %s917, 2
      %s921 = sadd.s32 %s919, %s920
      %s922 = scalar_lea.vmem %s13, %s921
      %p923 = pneg %p417
      %p924 = pneg %p414
      %p925 = scmp.lt.s32.totalorder %s35, 1
      %s926 = scalar_select %p925, %s35, 1
      %p927 = scmp.lt.s32.totalorder %s36, 1
      %s928 = scalar_select %p927, %s36, 1
      %s929 = smul.addr %s926, 2
      %s930 = sadd.s32 %s928, %s929
      %s931 = scalar_lea.vmem %s14, %s930
      %p932 = pneg %p445
      %p933 = pneg %p442
      %p934 = scmp.lt.s32.totalorder %s35, 1
      %s935 = scalar_select %p934, %s35, 1
      %p936 = scmp.lt.s32.totalorder %s36, 1
      %s937 = scalar_select %p936, %s36, 1
      %s938 = smul.addr %s935, 2
      %s939 = sadd.s32 %s937, %s938
      %s940 = scalar_lea.vmem %s15, %s939
      %p941 = pneg %p473
      %p942 = pneg %p470
      %p943 = scmp.lt.s32.totalorder %s35, 1
      %s944 = scalar_select %p943, %s35, 1
      %p945 = scmp.lt.s32.totalorder %s36, 1
      %s946 = scalar_select %p945, %s36, 1
      %s947 = smul.addr %s944, 2
      %s948 = sadd.s32 %s946, %s947
      %s949 = scalar_lea.vmem %s16, %s948
      %p950 = pneg %p501
      %p951 = pneg %p498
      %p952 = scmp.lt.s32.totalorder %s35, 1
      %s953 = scalar_select %p952, %s35, 1
      %p954 = scmp.lt.s32.totalorder %s36, 1
      %s955 = scalar_select %p954, %s36, 1
      %s956 = smul.addr %s953, 2
      %s957 = sadd.s32 %s955, %s956
      %s958 = scalar_lea.vmem %s17, %s957
      %p959 = pneg %p529
      %p960 = pneg %p526
      %p961 = pneg %p550
      %p962 = pneg %p547
      %p963 = pneg %p571
      %p964 = pneg %p568
      %p965 = pneg %p597
      %p966 = pneg %p594
      %p967 = scmp.lt.s32.totalorder %s35, 1
      %s968 = scalar_select %p967, %s35, 1
      %s969 = smul.addr %s968, 2
      %s970 = smul.addr %s969, 8
      %s971 = scalar_lea.vmem %s20, %s970
      %p972 = scmp.lt.s32.totalorder %s35, 1
      %s973 = scalar_select %p972, %s35, 1
      %s974 = smul.addr %s973, 4
      %s975 = smul.addr %s974, 8
      %s976 = scalar_lea.vmem %s1, %s975
      %p977 = scmp.lt.s32.totalorder %s35, 1
      %s978 = scalar_select %p977, %s35, 1
      %s979 = smul.addr %s978, 32
      %s980 = smul.addr %s979, 4
      %s981 = scalar_lea.vmem %s2, %s980
      %p982 = scmp.lt.s32.totalorder %s35, 1
      %s983 = scalar_select %p982, %s35, 1
      %s984 = scalar_lea.vmem %s3, %s983
      %p985 = scmp.lt.s32.totalorder %s35, 1
      %s986 = scalar_select %p985, %s35, 1
      %p987 = scmp.lt.s32.totalorder %s36, 1
      %s988 = scalar_select %p987, %s36, 1
      %s989 = smul.addr %s988, 4
      %s990 = smul.addr %s986, 8
      %s991 = sadd.s32 %s989, %s990
      %s992 = smul.addr %s991, 4
      %s993 = scalar_lea.vmem %s4, %s992
      %p994 = scmp.lt.s32.totalorder %s35, 1
      %s995 = scalar_select %p994, %s35, 1
      %p996 = scmp.lt.s32.totalorder %s36, 1
      %s997 = scalar_select %p996, %s36, 1
      %s998 = smul.addr %s995, 2
      %s999 = sadd.s32 %s997, %s998
      %s1000 = scalar_lea.vmem %s5, %s999
      %p1001 = scmp.lt.s32.totalorder %s35, 1
      %s1002 = scalar_select %p1001, %s35, 1
      %p1003 = scmp.lt.s32.totalorder %s36, 1
      %s1004 = scalar_select %p1003, %s36, 1
      %s1005 = smul.addr %s1004, 4
      %s1006 = smul.addr %s1002, 8
      %s1007 = sadd.s32 %s1005, %s1006
      %s1008 = smul.addr %s1007, 4
      %s1009 = scalar_lea.vmem %s6, %s1008
      %p1010 = scmp.lt.s32.totalorder %s35, 1
      %s1011 = scalar_select %p1010, %s35, 1
      %p1012 = scmp.lt.s32.totalorder %s36, 1
      %s1013 = scalar_select %p1012, %s36, 1
      %s1014 = smul.addr %s1011, 2
      %s1015 = sadd.s32 %s1013, %s1014
      %s1016 = scalar_lea.vmem %s7, %s1015
      %p1017 = scmp.lt.s32.totalorder %s35, 1
      %s1018 = scalar_select %p1017, %s35, 1
      %p1019 = scmp.lt.s32.totalorder %s36, 1
      %s1020 = scalar_select %p1019, %s36, 1
      %s1021 = smul.addr %s1020, 4
      %s1022 = smul.addr %s1018, 8
      %s1023 = sadd.s32 %s1021, %s1022
      %s1024 = smul.addr %s1023, 4
      %s1025 = scalar_lea.vmem %s8, %s1024
      %p1026 = scmp.lt.s32.totalorder %s35, 1
      %s1027 = scalar_select %p1026, %s35, 1
      %p1028 = scmp.lt.s32.totalorder %s36, 1
      %s1029 = scalar_select %p1028, %s36, 1
      %s1030 = smul.addr %s1027, 2
      %s1031 = sadd.s32 %s1029, %s1030
      %s1032 = scalar_lea.vmem %s9, %s1031
      %p1033 = scmp.lt.s32.totalorder %s35, 1
      %s1034 = scalar_select %p1033, %s35, 1
      %p1035 = scmp.lt.s32.totalorder %s36, 1
      %s1036 = scalar_select %p1035, %s36, 1
      %s1037 = smul.addr %s1036, 4
      %s1038 = smul.addr %s1034, 8
      %s1039 = sadd.s32 %s1037, %s1038
      %s1040 = smul.addr %s1039, 4
      %s1041 = scalar_lea.vmem %s10, %s1040
      %p1042 = scmp.lt.s32.totalorder %s35, 1
      %s1043 = scalar_select %p1042, %s35, 1
      %p1044 = scmp.lt.s32.totalorder %s36, 1
      %s1045 = scalar_select %p1044, %s36, 1
      %s1046 = smul.addr %s1043, 2
      %s1047 = sadd.s32 %s1045, %s1046
      %s1048 = scalar_lea.vmem %s11, %s1047
      %p1049 = scmp.lt.s32.totalorder %s35, 1
      %s1050 = scalar_select %p1049, %s35, 1
      %p1051 = scmp.lt.s32.totalorder %s36, 1
      %s1052 = scalar_select %p1051, %s36, 1
      %s1053 = smul.addr %s1052, 16
      %s1054 = smul.addr %s1050, 32
      %s1055 = sadd.s32 %s1053, %s1054
      %s1056 = smul.addr %s1055, 4
      %s1057 = scalar_lea.vmem %s12, %s1056
      %p1058 = scmp.lt.s32.totalorder %s35, 1
      %s1059 = scalar_select %p1058, %s35, 1
      %p1060 = scmp.lt.s32.totalorder %s36, 1
      %s1061 = scalar_select %p1060, %s36, 1
      %s1062 = smul.addr %s1059, 2
      %s1063 = sadd.s32 %s1061, %s1062
      %s1064 = scalar_lea.vmem %s13, %s1063
      %p1065 = scmp.lt.s32.totalorder %s35, 1
      %s1066 = scalar_select %p1065, %s35, 1
      %p1067 = scmp.lt.s32.totalorder %s36, 1
      %s1068 = scalar_select %p1067, %s36, 1
      %s1069 = smul.addr %s1066, 2
      %s1070 = sadd.s32 %s1068, %s1069
      %s1071 = scalar_lea.vmem %s14, %s1070
      %p1072 = scmp.lt.s32.totalorder %s35, 1
      %s1073 = scalar_select %p1072, %s35, 1
      %p1074 = scmp.lt.s32.totalorder %s36, 1
      %s1075 = scalar_select %p1074, %s36, 1
      %s1076 = smul.addr %s1073, 2
      %s1077 = sadd.s32 %s1075, %s1076
      %s1078 = scalar_lea.vmem %s15, %s1077
      %p1079 = scmp.lt.s32.totalorder %s35, 1
      %s1080 = scalar_select %p1079, %s35, 1
      %p1081 = scmp.lt.s32.totalorder %s36, 1
      %s1082 = scalar_select %p1081, %s36, 1
      %s1083 = smul.addr %s1080, 2
      %s1084 = sadd.s32 %s1082, %s1083
      %s1085 = scalar_lea.vmem %s16, %s1084
      %p1086 = scmp.lt.s32.totalorder %s35, 1
      %s1087 = scalar_select %p1086, %s35, 1
      %p1088 = scmp.lt.s32.totalorder %s36, 1
      %s1089 = scalar_select %p1088, %s36, 1
      %s1090 = smul.addr %s1087, 2
      %s1091 = sadd.s32 %s1089, %s1090
      %s1092 = scalar_lea.vmem %s17, %s1091
      %p1093 = scmp.lt.s32.totalorder %s35, 1
      %s1094 = scalar_select %p1093, %s35, 1
      %s1095 = smul.addr %s1094, 2
      %s1096 = smul.addr %s1095, 8
      %s1097 = scalar_lea.vmem %s20, %s1096
      %p1099 = scmp.eq.s32.totalorder %s36, 0
      // Predicated region
      $region101: #{row_column_attention_encoder.1} parent=99 // pred_check
        %p1100 = pneg %p1099
      $region102: #{row_column_attention_encoder.1} parent=99 // pred_check_branch
        %1102 = sbr.rel (%p1100) target = $region104
      $region103: #{row_column_attention_encoder.1} parent=99 // pred_region
        %v1103 = vld [vmem:[%s976] sm:$0xff]
        %v1104 = vld [vmem:[%s976 + $0x8] sm:$0xff]
        %v1105 = vld [vmem:[%s976 + $0x10] sm:$0xff]
        %v1106 = vld [vmem:[%s976 + $0x18] sm:$0xff]
        %v1107 = vpack.c.bf16 %v1105, %v1103
        %v1108 = vpack.c.bf16 %v1106, %v1104
        %v1109 = vld [vmem:[%s981] sm:$0xf]
        %v1110 = vld [vmem:[%s981 + $0x4] sm:$0xf]
        %v1111 = vld [vmem:[%s981 + $0x8] sm:$0xf]
        %v1112 = vld [vmem:[%s981 + $0xc] sm:$0xf]
        %v1113 = vld [vmem:[%s981 + $0x10] sm:$0xf]
        %v1114 = vld [vmem:[%s981 + $0x14] sm:$0xf]
        %v1115 = vld [vmem:[%s981 + $0x18] sm:$0xf]
        %v1116 = vld [vmem:[%s981 + $0x1c] sm:$0xf]
        %v1117 = vld [vmem:[%s981 + $0x20] sm:$0xf]
        %v1118 = vld [vmem:[%s981 + $0x24] sm:$0xf]
        %v1119 = vld [vmem:[%s981 + $0x28] sm:$0xf]
        %v1120 = vld [vmem:[%s981 + $0x2c] sm:$0xf]
        %v1121 = vld [vmem:[%s981 + $0x30] sm:$0xf]
        %v1122 = vld [vmem:[%s981 + $0x34] sm:$0xf]
        %v1123 = vld [vmem:[%s981 + $0x38] sm:$0xf]
        %v1124 = vld [vmem:[%s981 + $0x3c] sm:$0xf]
        %v1125 = vld [vmem:[%s981 + $0x40] sm:$0xf]
        %v1126 = vld [vmem:[%s981 + $0x44] sm:$0xf]
        %v1127 = vld [vmem:[%s981 + $0x48] sm:$0xf]
        %v1128 = vld [vmem:[%s981 + $0x4c] sm:$0xf]
        %v1129 = vld [vmem:[%s981 + $0x50] sm:$0xf]
        %v1130 = vld [vmem:[%s981 + $0x54] sm:$0xf]
        %v1131 = vld [vmem:[%s981 + $0x58] sm:$0xf]
        %v1132 = vld [vmem:[%s981 + $0x5c] sm:$0xf]
        %v1133 = vld [vmem:[%s981 + $0x60] sm:$0xf]
        %v1134 = vld [vmem:[%s981 + $0x64] sm:$0xf]
        %v1135 = vld [vmem:[%s981 + $0x68] sm:$0xf]
        %v1136 = vld [vmem:[%s981 + $0x6c] sm:$0xf]
        %v1137 = vld [vmem:[%s981 + $0x70] sm:$0xf]
        %v1138 = vld [vmem:[%s981 + $0x74] sm:$0xf]
        %v1139 = vld [vmem:[%s981 + $0x78] sm:$0xf]
        %v1140 = vld [vmem:[%s981 + $0x7c] sm:$0xf]
        %v1141 = vld [vmem:[%s984] sm:$0x1]
        %v1143 = vperm.slane %v1141, 0
        %v1177 = vunpack.c.l.b16 %v1109
        %v1178 = vunpack.c.l.b16 %v1110
        %v1179 = vunpack.c.l.b16 %v1111
        %v1180 = vunpack.c.l.b16 %v1112
        %v1181 = vunpack.c.l.b16 %v1113
        %v1182 = vunpack.c.l.b16 %v1114
        %v1183 = vunpack.c.l.b16 %v1115
        %v1184 = vunpack.c.l.b16 %v1116
        %v1185 = vunpack.c.l.b16 %v1117
        %v1186 = vunpack.c.l.b16 %v1118
        %v1187 = vunpack.c.l.b16 %v1119
        %v1188 = vunpack.c.l.b16 %v1120
        %v1189 = vunpack.c.l.b16 %v1121
        %v1190 = vunpack.c.l.b16 %v1122
        %v1191 = vunpack.c.l.b16 %v1123
        %v1192 = vunpack.c.l.b16 %v1124
        %v1193 = vunpack.c.l.b16 %v1125
        %v1194 = vunpack.c.l.b16 %v1126
        %v1195 = vunpack.c.l.b16 %v1127
        %v1196 = vunpack.c.l.b16 %v1128
        %v1197 = vunpack.c.l.b16 %v1129
        %v1198 = vunpack.c.l.b16 %v1130
        %v1199 = vunpack.c.l.b16 %v1131
        %v1200 = vunpack.c.l.b16 %v1132
        %v1201 = vunpack.c.l.b16 %v1133
        %v1202 = vunpack.c.l.b16 %v1134
        %v1203 = vunpack.c.l.b16 %v1135
        %v1204 = vunpack.c.l.b16 %v1136
        %v1205 = vunpack.c.l.b16 %v1137
        %v1206 = vunpack.c.l.b16 %v1138
        %v1207 = vunpack.c.l.b16 %v1139
        %v1208 = vunpack.c.l.b16 %v1140
        %v1209 = vpack.c.b16 %v1178, %v1177
        %v1210 = vpack.c.b16 %v1180, %v1179
        %v1211 = vpack.c.b16 %v1182, %v1181
        %v1212 = vpack.c.b16 %v1184, %v1183
        %v1213 = vpack.c.b16 %v1186, %v1185
        %v1214 = vpack.c.b16 %v1188, %v1187
        %v1215 = vpack.c.b16 %v1190, %v1189
        %v1216 = vpack.c.b16 %v1192, %v1191
        %v1217 = vpack.c.b16 %v1194, %v1193
        %v1218 = vpack.c.b16 %v1196, %v1195
        %v1219 = vpack.c.b16 %v1198, %v1197
        %v1220 = vpack.c.b16 %v1200, %v1199
        %v1221 = vpack.c.b16 %v1202, %v1201
        %v1222 = vpack.c.b16 %v1204, %v1203
        %v1223 = vpack.c.b16 %v1206, %v1205
        %v1224 = vpack.c.b16 %v1208, %v1207
        %1241 = vmatpush.bf16.msra.mxu0 %v1216
        %1242 = vmatpush.bf16.msra.mxu0 %v1215
        %1243 = vmatpush.bf16.msra.mxu0 %v1214
        %1244 = vmatpush.bf16.msra.mxu0 %v1213
        %1245 = vmatpush.bf16.msra.mxu0 %v1212
        %1246 = vmatpush.bf16.msra.mxu0 %v1211
        %1247 = vmatpush.bf16.msra.mxu0 %v1210
        %1248 = vmatpush.bf16.msra.mxu0 %v1209
        %1249 = vmatmul.bf16.gmra.mxu0 %v1107
        %v1250 = vpop.f32.mrf.mxu0
        %v1251 = vadd.f32 %v1143, %v1250
        %v1252 = vpop.f32.mrf.mxu0
        %v1253 = vadd.f32 %v1143, %v1252
        %1254 = vdwg.mxu0
        %1255 = vmatpush.bf16.msra.mxu0 %v1224
        %1256 = vmatpush.bf16.msra.mxu0 %v1223
        %1257 = vmatpush.bf16.msra.mxu0 %v1222
        %1258 = vmatpush.bf16.msra.mxu0 %v1221
        %1259 = vmatpush.bf16.msra.mxu0 %v1220
        %1260 = vmatpush.bf16.msra.mxu0 %v1219
        %1261 = vmatpush.bf16.msra.mxu0 %v1218
        %1262 = vmatpush.bf16.msra.mxu0 %v1217
        %1263 = vmatmul.bf16.gmra.mxu0 %v1108
        %v1264 = vpop.f32.mrf.mxu0
        %v1265 = vadd.f32 %v1251, %v1264
        %v1266 = vpop.f32.mrf.mxu0
        %v1267 = vadd.f32 %v1253, %v1266
        %1268 = vdwg.mxu0
        %vm1269 = vcmask 261120
        %1270 = vst.msk [vmem:[%s1097] sm:$0xff] %vm1269, %v1265
        %1271 = vst.msk [vmem:[%s1097 + $0x8] sm:$0xff] %vm1269, %v1267
      $region104: #{row_column_attention_encoder.1} parent=99 // pred_fallthru
        _
      %v1272 = vld [vmem:[%s0] sm:$0xff]
      %v1273 = vld [vmem:[%s1097] sm:$0xff]
      %v1274 = vld [vmem:[%s1097 + $0x8] sm:$0xff]
      %v1275 = vadd.f32 %v1273, %v1272
      %v1276 = vadd.f32 %v1274, %v1272
      %v1277 = vadd.f32 %v1275, %v1272
      %v1278 = vadd.f32 %v1276, %v1272
      %v1279 = vpack.c.bf16 %v1278, %v1277
      %v1280 = vld [vmem:[%s993] sm:$0xf]
      %v1281 = vld [vmem:[%s993 + $0x4] sm:$0xf]
      %v1282 = vld [vmem:[%s993 + $0x8] sm:$0xf]
      %v1283 = vld [vmem:[%s993 + $0xc] sm:$0xf]
      %v1284 = vld [vmem:[%s1000] sm:$0x1]
      %v1286 = vperm.slane %v1284, 0
      %v1292 = vunpack.c.l.b16 %v1280
      %v1293 = vunpack.c.l.b16 %v1281
      %v1294 = vunpack.c.l.b16 %v1282
      %v1295 = vunpack.c.l.b16 %v1283
      %v1296 = vpack.c.b16 %v1293, %v1292
      %v1297 = vpack.c.b16 %v1295, %v1294
      %vm1300 = vcmask 261120
      %v1302 = vsel %vm1300, %v1279, 0
      %1304 = vmatpush.bf16.msra.mxu0 0
      %1305 = vmatpush.bf16.msra.mxu0 0
      %1306 = vmatpush.bf16.msra.mxu0 0
      %1307 = vmatpush.bf16.msra.mxu0 0
      %1308 = vmatpush.bf16.msra.mxu0 0
      %1309 = vmatpush.bf16.msra.mxu0 0
      %1310 = vmatpush.bf16.msra.mxu0 %v1297
      %1311 = vmatpush.bf16.msra.mxu0 %v1296
      %1312 = vmatmul.bf16.gmra.mxu0 %v1302
      %v1313 = vpop.f32.mrf.mxu0
      %v1314 = vadd.f32 %v1286, %v1313
      %v1315 = vpop.f32.mrf.mxu0
      %v1316 = vadd.f32 %v1286, %v1315
      %1317 = vdwg.mxu0
      %v1318 = vpack.c.bf16 %v1276, %v1275
      %v1319 = vld [vmem:[%s1009] sm:$0xf]
      %v1320 = vld [vmem:[%s1009 + $0x4] sm:$0xf]
      %v1321 = vld [vmem:[%s1009 + $0x8] sm:$0xf]
      %v1322 = vld [vmem:[%s1009 + $0xc] sm:$0xf]
      %v1323 = vld [vmem:[%s1016] sm:$0x1]
      %v1325 = vperm.slane %v1323, 0
      %v1331 = vunpack.c.l.b16 %v1319
      %v1332 = vunpack.c.l.b16 %v1320
      %v1333 = vunpack.c.l.b16 %v1321
      %v1334 = vunpack.c.l.b16 %v1322
      %v1335 = vpack.c.b16 %v1332, %v1331
      %v1336 = vpack.c.b16 %v1334, %v1333
      %v1340 = vsel %vm1300, %v1318, 0
      %1342 = vmatpush.bf16.msra.mxu0 0
      %1343 = vmatpush.bf16.msra.mxu0 0
      %1344 = vmatpush.bf16.msra.mxu0 0
      %1345 = vmatpush.bf16.msra.mxu0 0
      %1346 = vmatpush.bf16.msra.mxu0 0
      %1347 = vmatpush.bf16.msra.mxu0 0
      %1348 = vmatpush.bf16.msra.mxu0 %v1336
      %1349 = vmatpush.bf16.msra.mxu0 %v1335
      %1350 = vmatmul.bf16.gmra.mxu0 %v1340
      %v1351 = vpop.f32.mrf.mxu0
      %v1352 = vadd.f32 %v1325, %v1351
      %v1353 = vpop.f32.mrf.mxu0
      %v1354 = vadd.f32 %v1325, %v1353
      %1355 = vdwg.mxu0
      %v1356 = vmul.f32 %v1314, 0.5
      %v1357 = vmul.f32 %v1316, 0.5
      %v1358 = vpack.c.bf16 %v1356, %v1356
      %v1359 = vpack.c.bf16 %v1357, %v1357
      %v1360 = vpack.c.bf16 %v1314, %v1314
      %v1361 = vpack.c.bf16 %v1316, %v1316
      %v1362 = vpack.c.bf16 %v1352, %v1352
      %v1363 = vpack.c.bf16 %v1354, %v1354
      %v1365 = vunpack.c.l.b16 %v1360
      %v1366 = vpack.c.b16 %v1365, %v1365
      %1367 = vrot.lane.b32.xlu0 %v1366, 96
      %v1368 = vpop.permute.xlu0 %1367
      %vm1369 = vcmask 31744
      %v1371 = vsel %vm1369, %v1358, 0
      %v1374 = vsel %vm1369, %v1368, 0
      %1376 = vmatpush.bf16.xpose.msra.mxu0 0
      %1377 = vmatpush.bf16.xpose.msra.mxu0 0
      %1378 = vmatpush.bf16.xpose.msra.mxu0 0
      %1379 = vmatpush.bf16.xpose.msra.mxu0 0
      %1380 = vmatpush.bf16.xpose.msra.mxu0 0
      %1381 = vmatpush.bf16.xpose.msra.mxu0 0
      %1382 = vmatpush.bf16.xpose.msra.mxu0 0
      %1383 = vmatpush.bf16.xpose.msra.mxu0 %v1374
      %1384 = vmatmul.bf16.gmra.mxu0 %v1371
      %v1385 = vpop.f32.mrf.mxu0
      %v1386 = vadd.f32 0.0, %v1385
      %v1387 = vpop.f32.mrf.mxu0
      %1388 = vdwg.mxu0
      %v1390 = vunpack.c.l.b16 %v1361
      %v1391 = vpack.c.b16 %v1390, %v1390
      %1392 = vrot.lane.b32.xlu0 %v1391, 96
      %v1393 = vpop.permute.xlu0 %1392
      %v1395 = vsel %vm1369, %v1359, 0
      %v1398 = vsel %vm1369, %v1393, 0
      %1400 = vmatpush.bf16.xpose.msra.mxu0 0
      %1401 = vmatpush.bf16.xpose.msra.mxu0 0
      %1402 = vmatpush.bf16.xpose.msra.mxu0 0
      %1403 = vmatpush.bf16.xpose.msra.mxu0 0
      %1404 = vmatpush.bf16.xpose.msra.mxu0 0
      %1405 = vmatpush.bf16.xpose.msra.mxu0 0
      %1406 = vmatpush.bf16.xpose.msra.mxu0 0
      %1407 = vmatpush.bf16.xpose.msra.mxu0 %v1398
      %1408 = vmatmul.bf16.gmra.mxu0 %v1395
      %v1409 = vpop.f32.mrf.mxu0
      %v1410 = vadd.f32 0.0, %v1409
      %v1411 = vpop.f32.mrf.mxu0
      %1412 = vdwg.mxu0
      %vm1413 = vcmask 64512
      %v1414 = vsel %vm1413, %v1386, -inf
      %1415 = vmax.xlane.f32.xlu0 %v1414
      %v1416 = vpop.xlane.xlu0 %1415
      %v1417 = vsel %vm1413, %v1410, -inf
      %1418 = vmax.xlane.f32.xlu0 %v1417
      %v1419 = vpop.xlane.xlu0 %1418
      %v1420 = vsub.f32 %v1386, %v1416
      %v1421 = vsub.f32 %v1410, %v1419
      %v1422 = vmul.f32 %v1420, 1.442695
      %v1423 = vpow.pop %v1422
      %v1424 = vmul.f32 %v1421, 1.442695
      %v1425 = vpow.pop %v1424
      %v1426 = vsel %vm1413, %v1423, 0.0
      %1427 = vadd.xlane.f32.xlu0 %v1426
      %v1428 = vpop.xlane.xlu0 %1427
      %v1429 = vsel %vm1413, %v1425, 0.0
      %1430 = vadd.xlane.f32.xlu0 %v1429
      %v1431 = vpop.xlane.xlu0 %1430
      %v1432 = vrcp.pop %v1428
      %v1433 = vrcp.pop %v1431
      %v1434 = vmul.f32 %v1423, %v1432
      %v1435 = vmul.f32 %v1425, %v1433
      %v1436 = vpack.c.bf16 %v1434, %v1434
      %v1437 = vpack.c.bf16 %v1435, %v1435
      %v1439 = vsel %vm1413, %v1436, 0
      %vm1441 = vcmask 1043456
      %v1443 = vsel %vm1441, %v1362, 0
      %1445 = vmatpush.bf16.msra.mxu0 0
      %1446 = vmatpush.bf16.msra.mxu0 0
      %1447 = vmatpush.bf16.msra.mxu0 0
      %1448 = vmatpush.bf16.msra.mxu0 0
      %1449 = vmatpush.bf16.msra.mxu0 0
      %1450 = vmatpush.bf16.msra.mxu0 0
      %1451 = vmatpush.bf16.msra.mxu0 0
      %1452 = vmatpush.bf16.msra.mxu0 %v1443
      %1453 = vmatmul.bf16.gmra.mxu0 %v1439
      %v1454 = vpop.f32.mrf.mxu0
      %v1455 = vadd.f32 0.0, %v1454
      %v1456 = vpop.f32.mrf.mxu0
      %1457 = vdwg.mxu0
      %v1459 = vsel %vm1413, %v1437, 0
      %v1462 = vsel %vm1441, %v1363, 0
      %1464 = vmatpush.bf16.msra.mxu0 0
      %1465 = vmatpush.bf16.msra.mxu0 0
      %1466 = vmatpush.bf16.msra.mxu0 0
      %1467 = vmatpush.bf16.msra.mxu0 0
      %1468 = vmatpush.bf16.msra.mxu0 0
      %1469 = vmatpush.bf16.msra.mxu0 0
      %1470 = vmatpush.bf16.msra.mxu0 0
      %1471 = vmatpush.bf16.msra.mxu0 %v1462
      %1472 = vmatmul.bf16.gmra.mxu0 %v1459
      %v1473 = vpop.f32.mrf.mxu0
      %v1474 = vadd.f32 0.0, %v1473
      %v1475 = vpop.f32.mrf.mxu0
      %1476 = vdwg.mxu0
      %v1478 = vunpack.c.l.b16 %v1358
      %v1479 = vpack.c.b16 %v1478, %v1478
      %1480 = vrot.lane.b32.xlu0 %v1479, 124
      %v1481 = vpop.permute.xlu0 %1480
      %1482 = vrot.lane.b32.xlu0 %v1366, 92
      %v1483 = vpop.permute.xlu0 %1482
      %v1485 = vsel %vm1369, %v1481, 0
      %v1488 = vsel %vm1369, %v1483, 0
      %1490 = vmatpush.bf16.xpose.msra.mxu0 0
      %1491 = vmatpush.bf16.xpose.msra.mxu0 0
      %1492 = vmatpush.bf16.xpose.msra.mxu0 0
      %1493 = vmatpush.bf16.xpose.msra.mxu0 0
      %1494 = vmatpush.bf16.xpose.msra.mxu0 0
      %1495 = vmatpush.bf16.xpose.msra.mxu0 0
      %1496 = vmatpush.bf16.xpose.msra.mxu0 0
      %1497 = vmatpush.bf16.xpose.msra.mxu0 %v1488
      %1498 = vmatmul.bf16.gmra.mxu0 %v1485
      %v1499 = vpop.f32.mrf.mxu0
      %v1500 = vadd.f32 0.0, %v1499
      %v1501 = vpop.f32.mrf.mxu0
      %1502 = vdwg.mxu0
      %v1504 = vunpack.c.l.b16 %v1359
      %v1505 = vpack.c.b16 %v1504, %v1504
      %1506 = vrot.lane.b32.xlu0 %v1505, 124
      %v1507 = vpop.permute.xlu0 %1506
      %1508 = vrot.lane.b32.xlu0 %v1391, 92
      %v1509 = vpop.permute.xlu0 %1508
      %v1511 = vsel %vm1369, %v1507, 0
      %v1514 = vsel %vm1369, %v1509, 0
      %1516 = vmatpush.bf16.xpose.msra.mxu0 0
      %1517 = vmatpush.bf16.xpose.msra.mxu0 0
      %1518 = vmatpush.bf16.xpose.msra.mxu0 0
      %1519 = vmatpush.bf16.xpose.msra.mxu0 0
      %1520 = vmatpush.bf16.xpose.msra.mxu0 0
      %1521 = vmatpush.bf16.xpose.msra.mxu0 0
      %1522 = vmatpush.bf16.xpose.msra.mxu0 0
      %1523 = vmatpush.bf16.xpose.msra.mxu0 %v1514
      %1524 = vmatmul.bf16.gmra.mxu0 %v1511
      %v1525 = vpop.f32.mrf.mxu0
      %v1526 = vadd.f32 0.0, %v1525
      %v1527 = vpop.f32.mrf.mxu0
      %1528 = vdwg.mxu0
      %v1529 = vsel %vm1413, %v1500, -inf
      %1530 = vmax.xlane.f32.xlu0 %v1529
      %v1531 = vpop.xlane.xlu0 %1530
      %v1532 = vsel %vm1413, %v1526, -inf
      %1533 = vmax.xlane.f32.xlu0 %v1532
      %v1534 = vpop.xlane.xlu0 %1533
      %v1535 = vsub.f32 %v1500, %v1531
      %v1536 = vsub.f32 %v1526, %v1534
      %v1537 = vmul.f32 %v1535, 1.442695
      %v1538 = vpow.pop %v1537
      %v1539 = vmul.f32 %v1536, 1.442695
      %v1540 = vpow.pop %v1539
      %v1541 = vsel %vm1413, %v1538, 0.0
      %1542 = vadd.xlane.f32.xlu0 %v1541
      %v1543 = vpop.xlane.xlu0 %1542
      %v1544 = vsel %vm1413, %v1540, 0.0
      %1545 = vadd.xlane.f32.xlu0 %v1544
      %v1546 = vpop.xlane.xlu0 %1545
      %v1547 = vrcp.pop %v1543
      %v1548 = vrcp.pop %v1546
      %v1549 = vmul.f32 %v1538, %v1547
      %v1550 = vmul.f32 %v1540, %v1548
      %v1551 = vpack.c.bf16 %v1549, %v1549
      %v1552 = vpack.c.bf16 %v1550, %v1550
      %v1554 = vunpack.c.l.b16 %v1362
      %v1555 = vpack.c.b16 %v1554, %v1554
      %1556 = vrot.lane.b32.xlu0 %v1555, 124
      %v1557 = vpop.permute.xlu0 %1556
      %v1559 = vsel %vm1413, %v1551, 0
      %v1562 = vsel %vm1441, %v1557, 0
      %1564 = vmatpush.bf16.msra.mxu0 0
      %1565 = vmatpush.bf16.msra.mxu0 0
      %1566 = vmatpush.bf16.msra.mxu0 0
      %1567 = vmatpush.bf16.msra.mxu0 0
      %1568 = vmatpush.bf16.msra.mxu0 0
      %1569 = vmatpush.bf16.msra.mxu0 0
      %1570 = vmatpush.bf16.msra.mxu0 0
      %1571 = vmatpush.bf16.msra.mxu0 %v1562
      %1572 = vmatmul.bf16.gmra.mxu0 %v1559
      %v1573 = vpop.f32.mrf.mxu0
      %v1574 = vadd.f32 0.0, %v1573
      %v1575 = vpop.f32.mrf.mxu0
      %1576 = vdwg.mxu0
      %v1578 = vunpack.c.l.b16 %v1363
      %v1579 = vpack.c.b16 %v1578, %v1578
      %1580 = vrot.lane.b32.xlu0 %v1579, 124
      %v1581 = vpop.permute.xlu0 %1580
      %v1583 = vsel %vm1413, %v1552, 0
      %v1586 = vsel %vm1441, %v1581, 0
      %1588 = vmatpush.bf16.msra.mxu0 0
      %1589 = vmatpush.bf16.msra.mxu0 0
      %1590 = vmatpush.bf16.msra.mxu0 0
      %1591 = vmatpush.bf16.msra.mxu0 0
      %1592 = vmatpush.bf16.msra.mxu0 0
      %1593 = vmatpush.bf16.msra.mxu0 0
      %1594 = vmatpush.bf16.msra.mxu0 0
      %1595 = vmatpush.bf16.msra.mxu0 %v1586
      %1596 = vmatmul.bf16.gmra.mxu0 %v1583
      %v1597 = vpop.f32.mrf.mxu0
      %v1598 = vadd.f32 0.0, %v1597
      %v1599 = vpop.f32.mrf.mxu0
      %1600 = vdwg.mxu0
      %1601 = vrot.lane.b32.xlu0 %v1479, 120
      %v1602 = vpop.permute.xlu0 %1601
      %1603 = vrot.lane.b32.xlu0 %v1366, 88
      %v1604 = vpop.permute.xlu0 %1603
      %v1606 = vsel %vm1369, %v1602, 0
      %v1609 = vsel %vm1369, %v1604, 0
      %1611 = vmatpush.bf16.xpose.msra.mxu0 0
      %1612 = vmatpush.bf16.xpose.msra.mxu0 0
      %1613 = vmatpush.bf16.xpose.msra.mxu0 0
      %1614 = vmatpush.bf16.xpose.msra.mxu0 0
      %1615 = vmatpush.bf16.xpose.msra.mxu0 0
      %1616 = vmatpush.bf16.xpose.msra.mxu0 0
      %1617 = vmatpush.bf16.xpose.msra.mxu0 0
      %1618 = vmatpush.bf16.xpose.msra.mxu0 %v1609
      %1619 = vmatmul.bf16.gmra.mxu0 %v1606
      %v1620 = vpop.f32.mrf.mxu0
      %v1621 = vadd.f32 0.0, %v1620
      %v1622 = vpop.f32.mrf.mxu0
      %1623 = vdwg.mxu0
      %1624 = vrot.lane.b32.xlu0 %v1505, 120
      %v1625 = vpop.permute.xlu0 %1624
      %1626 = vrot.lane.b32.xlu0 %v1391, 88
      %v1627 = vpop.permute.xlu0 %1626
      %v1629 = vsel %vm1369, %v1625, 0
      %v1632 = vsel %vm1369, %v1627, 0
      %1634 = vmatpush.bf16.xpose.msra.mxu0 0
      %1635 = vmatpush.bf16.xpose.msra.mxu0 0
      %1636 = vmatpush.bf16.xpose.msra.mxu0 0
      %1637 = vmatpush.bf16.xpose.msra.mxu0 0
      %1638 = vmatpush.bf16.xpose.msra.mxu0 0
      %1639 = vmatpush.bf16.xpose.msra.mxu0 0
      %1640 = vmatpush.bf16.xpose.msra.mxu0 0
      %1641 = vmatpush.bf16.xpose.msra.mxu0 %v1632
      %1642 = vmatmul.bf16.gmra.mxu0 %v1629
      %v1643 = vpop.f32.mrf.mxu0
      %v1644 = vadd.f32 0.0, %v1643
      %v1645 = vpop.f32.mrf.mxu0
      %1646 = vdwg.mxu0
      %v1647 = vsel %vm1413, %v1621, -inf
      %1648 = vmax.xlane.f32.xlu0 %v1647
      %v1649 = vpop.xlane.xlu0 %1648
      %v1650 = vsel %vm1413, %v1644, -inf
      %1651 = vmax.xlane.f32.xlu0 %v1650
      %v1652 = vpop.xlane.xlu0 %1651
      %v1653 = vsub.f32 %v1621, %v1649
      %v1654 = vsub.f32 %v1644, %v1652
      %v1655 = vmul.f32 %v1653, 1.442695
      %v1656 = vpow.pop %v1655
      %v1657 = vmul.f32 %v1654, 1.442695
      %v1658 = vpow.pop %v1657
      %v1659 = vsel %vm1413, %v1656, 0.0
      %1660 = vadd.xlane.f32.xlu0 %v1659
      %v1661 = vpop.xlane.xlu0 %1660
      %v1662 = vsel %vm1413, %v1658, 0.0
      %1663 = vadd.xlane.f32.xlu0 %v1662
      %v1664 = vpop.xlane.xlu0 %1663
      %v1665 = vrcp.pop %v1661
      %v1666 = vrcp.pop %v1664
      %v1667 = vmul.f32 %v1656, %v1665
      %v1668 = vmul.f32 %v1658, %v1666
      %v1669 = vpack.c.bf16 %v1667, %v1667
      %v1670 = vpack.c.bf16 %v1668, %v1668
      %1671 = vrot.lane.b32.xlu0 %v1555, 120
      %v1672 = vpop.permute.xlu0 %1671
      %v1674 = vsel %vm1413, %v1669, 0
      %v1677 = vsel %vm1441, %v1672, 0
      %1679 = vmatpush.bf16.msra.mxu0 0
      %1680 = vmatpush.bf16.msra.mxu0 0
      %1681 = vmatpush.bf16.msra.mxu0 0
      %1682 = vmatpush.bf16.msra.mxu0 0
      %1683 = vmatpush.bf16.msra.mxu0 0
      %1684 = vmatpush.bf16.msra.mxu0 0
      %1685 = vmatpush.bf16.msra.mxu0 0
      %1686 = vmatpush.bf16.msra.mxu0 %v1677
      %1687 = vmatmul.bf16.gmra.mxu0 %v1674
      %v1688 = vpop.f32.mrf.mxu0
      %v1689 = vadd.f32 0.0, %v1688
      %v1690 = vpop.f32.mrf.mxu0
      %1691 = vdwg.mxu0
      %1692 = vrot.lane.b32.xlu0 %v1579, 120
      %v1693 = vpop.permute.xlu0 %1692
      %v1695 = vsel %vm1413, %v1670, 0
      %v1698 = vsel %vm1441, %v1693, 0
      %1700 = vmatpush.bf16.msra.mxu0 0
      %1701 = vmatpush.bf16.msra.mxu0 0
      %1702 = vmatpush.bf16.msra.mxu0 0
      %1703 = vmatpush.bf16.msra.mxu0 0
      %1704 = vmatpush.bf16.msra.mxu0 0
      %1705 = vmatpush.bf16.msra.mxu0 0
      %1706 = vmatpush.bf16.msra.mxu0 0
      %1707 = vmatpush.bf16.msra.mxu0 %v1698
      %1708 = vmatmul.bf16.gmra.mxu0 %v1695
      %v1709 = vpop.f32.mrf.mxu0
      %v1710 = vadd.f32 0.0, %v1709
      %v1711 = vpop.f32.mrf.mxu0
      %1712 = vdwg.mxu0
      %1713 = vrot.lane.b32.xlu0 %v1479, 116
      %v1714 = vpop.permute.xlu0 %1713
      %1715 = vrot.lane.b32.xlu0 %v1366, 84
      %v1716 = vpop.permute.xlu0 %1715
      %v1718 = vsel %vm1369, %v1714, 0
      %v1721 = vsel %vm1369, %v1716, 0
      %1723 = vmatpush.bf16.xpose.msra.mxu0 0
      %1724 = vmatpush.bf16.xpose.msra.mxu0 0
      %1725 = vmatpush.bf16.xpose.msra.mxu0 0
      %1726 = vmatpush.bf16.xpose.msra.mxu0 0
      %1727 = vmatpush.bf16.xpose.msra.mxu0 0
      %1728 = vmatpush.bf16.xpose.msra.mxu0 0
      %1729 = vmatpush.bf16.xpose.msra.mxu0 0
      %1730 = vmatpush.bf16.xpose.msra.mxu0 %v1721
      %1731 = vmatmul.bf16.gmra.mxu0 %v1718
      %v1732 = vpop.f32.mrf.mxu0
      %v1733 = vadd.f32 0.0, %v1732
      %v1734 = vpop.f32.mrf.mxu0
      %1735 = vdwg.mxu0
      %1736 = vrot.lane.b32.xlu0 %v1505, 116
      %v1737 = vpop.permute.xlu0 %1736
      %1738 = vrot.lane.b32.xlu0 %v1391, 84
      %v1739 = vpop.permute.xlu0 %1738
      %v1741 = vsel %vm1369, %v1737, 0
      %v1744 = vsel %vm1369, %v1739, 0
      %1746 = vmatpush.bf16.xpose.msra.mxu0 0
      %1747 = vmatpush.bf16.xpose.msra.mxu0 0
      %1748 = vmatpush.bf16.xpose.msra.mxu0 0
      %1749 = vmatpush.bf16.xpose.msra.mxu0 0
      %1750 = vmatpush.bf16.xpose.msra.mxu0 0
      %1751 = vmatpush.bf16.xpose.msra.mxu0 0
      %1752 = vmatpush.bf16.xpose.msra.mxu0 0
      %1753 = vmatpush.bf16.xpose.msra.mxu0 %v1744
      %1754 = vmatmul.bf16.gmra.mxu0 %v1741
      %v1755 = vpop.f32.mrf.mxu0
      %v1756 = vadd.f32 0.0, %v1755
      %v1757 = vpop.f32.mrf.mxu0
      %1758 = vdwg.mxu0
      %v1759 = vsel %vm1413, %v1733, -inf
      %1760 = vmax.xlane.f32.xlu0 %v1759
      %v1761 = vpop.xlane.xlu0 %1760
      %v1762 = vsel %vm1413, %v1756, -inf
      %1763 = vmax.xlane.f32.xlu0 %v1762
      %v1764 = vpop.xlane.xlu0 %1763
      %v1765 = vsub.f32 %v1733, %v1761
      %v1766 = vsub.f32 %v1756, %v1764
      %v1767 = vmul.f32 %v1765, 1.442695
      %v1768 = vpow.pop %v1767
      %v1769 = vmul.f32 %v1766, 1.442695
      %v1770 = vpow.pop %v1769
      %v1771 = vsel %vm1413, %v1768, 0.0
      %1772 = vadd.xlane.f32.xlu0 %v1771
      %v1773 = vpop.xlane.xlu0 %1772
      %v1774 = vsel %vm1413, %v1770, 0.0
      %1775 = vadd.xlane.f32.xlu0 %v1774
      %v1776 = vpop.xlane.xlu0 %1775
      %v1777 = vrcp.pop %v1773
      %v1778 = vrcp.pop %v1776
      %v1779 = vmul.f32 %v1768, %v1777
      %v1780 = vmul.f32 %v1770, %v1778
      %v1781 = vpack.c.bf16 %v1779, %v1779
      %v1782 = vpack.c.bf16 %v1780, %v1780
      %1783 = vrot.lane.b32.xlu0 %v1555, 116
      %v1784 = vpop.permute.xlu0 %1783
      %v1786 = vsel %vm1413, %v1781, 0
      %v1789 = vsel %vm1441, %v1784, 0
      %1791 = vmatpush.bf16.msra.mxu0 0
      %1792 = vmatpush.bf16.msra.mxu0 0
      %1793 = vmatpush.bf16.msra.mxu0 0
      %1794 = vmatpush.bf16.msra.mxu0 0
      %1795 = vmatpush.bf16.msra.mxu0 0
      %1796 = vmatpush.bf16.msra.mxu0 0
      %1797 = vmatpush.bf16.msra.mxu0 0
      %1798 = vmatpush.bf16.msra.mxu0 %v1789
      %1799 = vmatmul.bf16.gmra.mxu0 %v1786
      %v1800 = vpop.f32.mrf.mxu0
      %v1801 = vadd.f32 0.0, %v1800
      %v1802 = vpop.f32.mrf.mxu0
      %1803 = vdwg.mxu0
      %1804 = vrot.lane.b32.xlu0 %v1579, 116
      %v1805 = vpop.permute.xlu0 %1804
      %v1807 = vsel %vm1413, %v1782, 0
      %v1810 = vsel %vm1441, %v1805, 0
      %1812 = vmatpush.bf16.msra.mxu0 0
      %1813 = vmatpush.bf16.msra.mxu0 0
      %1814 = vmatpush.bf16.msra.mxu0 0
      %1815 = vmatpush.bf16.msra.mxu0 0
      %1816 = vmatpush.bf16.msra.mxu0 0
      %1817 = vmatpush.bf16.msra.mxu0 0
      %1818 = vmatpush.bf16.msra.mxu0 0
      %1819 = vmatpush.bf16.msra.mxu0 %v1810
      %1820 = vmatmul.bf16.gmra.mxu0 %v1807
      %v1821 = vpop.f32.mrf.mxu0
      %v1822 = vadd.f32 0.0, %v1821
      %v1823 = vpop.f32.mrf.mxu0
      %1824 = vdwg.mxu0
      %1825 = vrot.lane.b32.xlu0 %v1479, 112
      %v1826 = vpop.permute.xlu0 %1825
      %1827 = vrot.lane.b32.xlu0 %v1366, 80
      %v1828 = vpop.permute.xlu0 %1827
      %v1830 = vsel %vm1369, %v1826, 0
      %v1833 = vsel %vm1369, %v1828, 0
      %1835 = vmatpush.bf16.xpose.msra.mxu0 0
      %1836 = vmatpush.bf16.xpose.msra.mxu0 0
      %1837 = vmatpush.bf16.xpose.msra.mxu0 0
      %1838 = vmatpush.bf16.xpose.msra.mxu0 0
      %1839 = vmatpush.bf16.xpose.msra.mxu0 0
      %1840 = vmatpush.bf16.xpose.msra.mxu0 0
      %1841 = vmatpush.bf16.xpose.msra.mxu0 0
      %1842 = vmatpush.bf16.xpose.msra.mxu0 %v1833
      %1843 = vmatmul.bf16.gmra.mxu0 %v1830
      %v1844 = vpop.f32.mrf.mxu0
      %v1845 = vadd.f32 0.0, %v1844
      %v1846 = vpop.f32.mrf.mxu0
      %1847 = vdwg.mxu0
      %1848 = vrot.lane.b32.xlu0 %v1505, 112
      %v1849 = vpop.permute.xlu0 %1848
      %1850 = vrot.lane.b32.xlu0 %v1391, 80
      %v1851 = vpop.permute.xlu0 %1850
      %v1853 = vsel %vm1369, %v1849, 0
      %v1856 = vsel %vm1369, %v1851, 0
      %1858 = vmatpush.bf16.xpose.msra.mxu0 0
      %1859 = vmatpush.bf16.xpose.msra.mxu0 0
      %1860 = vmatpush.bf16.xpose.msra.mxu0 0
      %1861 = vmatpush.bf16.xpose.msra.mxu0 0
      %1862 = vmatpush.bf16.xpose.msra.mxu0 0
      %1863 = vmatpush.bf16.xpose.msra.mxu0 0
      %1864 = vmatpush.bf16.xpose.msra.mxu0 0
      %1865 = vmatpush.bf16.xpose.msra.mxu0 %v1856
      %1866 = vmatmul.bf16.gmra.mxu0 %v1853
      %v1867 = vpop.f32.mrf.mxu0
      %v1868 = vadd.f32 0.0, %v1867
      %v1869 = vpop.f32.mrf.mxu0
      %1870 = vdwg.mxu0
      %v1871 = vsel %vm1413, %v1845, -inf
      %1872 = vmax.xlane.f32.xlu0 %v1871
      %v1873 = vpop.xlane.xlu0 %1872
      %v1874 = vsel %vm1413, %v1868, -inf
      %1875 = vmax.xlane.f32.xlu0 %v1874
      %v1876 = vpop.xlane.xlu0 %1875
      %v1877 = vsub.f32 %v1845, %v1873
      %v1878 = vsub.f32 %v1868, %v1876
      %v1879 = vmul.f32 %v1877, 1.442695
      %v1880 = vpow.pop %v1879
      %v1881 = vmul.f32 %v1878, 1.442695
      %v1882 = vpow.pop %v1881
      %v1883 = vsel %vm1413, %v1880, 0.0
      %1884 = vadd.xlane.f32.xlu0 %v1883
      %v1885 = vpop.xlane.xlu0 %1884
      %v1886 = vsel %vm1413, %v1882, 0.0
      %1887 = vadd.xlane.f32.xlu0 %v1886
      %v1888 = vpop.xlane.xlu0 %1887
      %v1889 = vrcp.pop %v1885
      %v1890 = vrcp.pop %v1888
      %v1891 = vmul.f32 %v1880, %v1889
      %v1892 = vmul.f32 %v1882, %v1890
      %v1893 = vpack.c.bf16 %v1891, %v1891
      %v1894 = vpack.c.bf16 %v1892, %v1892
      %1895 = vrot.lane.b32.xlu0 %v1555, 112
      %v1896 = vpop.permute.xlu0 %1895
      %v1898 = vsel %vm1413, %v1893, 0
      %v1901 = vsel %vm1441, %v1896, 0
      %1903 = vmatpush.bf16.msra.mxu0 0
      %1904 = vmatpush.bf16.msra.mxu0 0
      %1905 = vmatpush.bf16.msra.mxu0 0
      %1906 = vmatpush.bf16.msra.mxu0 0
      %1907 = vmatpush.bf16.msra.mxu0 0
      %1908 = vmatpush.bf16.msra.mxu0 0
      %1909 = vmatpush.bf16.msra.mxu0 0
      %1910 = vmatpush.bf16.msra.mxu0 %v1901
      %1911 = vmatmul.bf16.gmra.mxu0 %v1898
      %v1912 = vpop.f32.mrf.mxu0
      %v1913 = vadd.f32 0.0, %v1912
      %v1914 = vpop.f32.mrf.mxu0
      %1915 = vdwg.mxu0
      %1916 = vrot.lane.b32.xlu0 %v1579, 112
      %v1917 = vpop.permute.xlu0 %1916
      %v1919 = vsel %vm1413, %v1894, 0
      %v1922 = vsel %vm1441, %v1917, 0
      %1924 = vmatpush.bf16.msra.mxu0 0
      %1925 = vmatpush.bf16.msra.mxu0 0
      %1926 = vmatpush.bf16.msra.mxu0 0
      %1927 = vmatpush.bf16.msra.mxu0 0
      %1928 = vmatpush.bf16.msra.mxu0 0
      %1929 = vmatpush.bf16.msra.mxu0 0
      %1930 = vmatpush.bf16.msra.mxu0 0
      %1931 = vmatpush.bf16.msra.mxu0 %v1922
      %1932 = vmatmul.bf16.gmra.mxu0 %v1919
      %v1933 = vpop.f32.mrf.mxu0
      %v1934 = vadd.f32 0.0, %v1933
      %v1935 = vpop.f32.mrf.mxu0
      %1936 = vdwg.mxu0
      %1937 = vrot.lane.b32.xlu0 %v1479, 108
      %v1938 = vpop.permute.xlu0 %1937
      %1939 = vrot.lane.b32.xlu0 %v1366, 76
      %v1940 = vpop.permute.xlu0 %1939
      %v1942 = vsel %vm1369, %v1938, 0
      %v1945 = vsel %vm1369, %v1940, 0
      %1947 = vmatpush.bf16.xpose.msra.mxu0 0
      %1948 = vmatpush.bf16.xpose.msra.mxu0 0
      %1949 = vmatpush.bf16.xpose.msra.mxu0 0
      %1950 = vmatpush.bf16.xpose.msra.mxu0 0
      %1951 = vmatpush.bf16.xpose.msra.mxu0 0
      %1952 = vmatpush.bf16.xpose.msra.mxu0 0
      %1953 = vmatpush.bf16.xpose.msra.mxu0 0
      %1954 = vmatpush.bf16.xpose.msra.mxu0 %v1945
      %1955 = vmatmul.bf16.gmra.mxu0 %v1942
      %v1956 = vpop.f32.mrf.mxu0
      %v1957 = vadd.f32 0.0, %v1956
      %v1958 = vpop.f32.mrf.mxu0
      %1959 = vdwg.mxu0
      %1960 = vrot.lane.b32.xlu0 %v1505, 108
      %v1961 = vpop.permute.xlu0 %1960
      %1962 = vrot.lane.b32.xlu0 %v1391, 76
      %v1963 = vpop.permute.xlu0 %1962
      %v1965 = vsel %vm1369, %v1961, 0
      %v1968 = vsel %vm1369, %v1963, 0
      %1970 = vmatpush.bf16.xpose.msra.mxu0 0
      %1971 = vmatpush.bf16.xpose.msra.mxu0 0
      %1972 = vmatpush.bf16.xpose.msra.mxu0 0
      %1973 = vmatpush.bf16.xpose.msra.mxu0 0
      %1974 = vmatpush.bf16.xpose.msra.mxu0 0
      %1975 = vmatpush.bf16.xpose.msra.mxu0 0
      %1976 = vmatpush.bf16.xpose.msra.mxu0 0
      %1977 = vmatpush.bf16.xpose.msra.mxu0 %v1968
      %1978 = vmatmul.bf16.gmra.mxu0 %v1965
      %v1979 = vpop.f32.mrf.mxu0
      %v1980 = vadd.f32 0.0, %v1979
      %v1981 = vpop.f32.mrf.mxu0
      %1982 = vdwg.mxu0
      %v1983 = vsel %vm1413, %v1957, -inf
      %1984 = vmax.xlane.f32.xlu0 %v1983
      %v1985 = vpop.xlane.xlu0 %1984
      %v1986 = vsel %vm1413, %v1980, -inf
      %1987 = vmax.xlane.f32.xlu0 %v1986
      %v1988 = vpop.xlane.xlu0 %1987
      %v1989 = vsub.f32 %v1957, %v1985
      %v1990 = vsub.f32 %v1980, %v1988
      %v1991 = vmul.f32 %v1989, 1.442695
      %v1992 = vpow.pop %v1991
      %v1993 = vmul.f32 %v1990, 1.442695
      %v1994 = vpow.pop %v1993
      %v1995 = vsel %vm1413, %v1992, 0.0
      %1996 = vadd.xlane.f32.xlu0 %v1995
      %v1997 = vpop.xlane.xlu0 %1996
      %v1998 = vsel %vm1413, %v1994, 0.0
      %1999 = vadd.xlane.f32.xlu0 %v1998
      %v2000 = vpop.xlane.xlu0 %1999
      %v2001 = vrcp.pop %v1997
      %v2002 = vrcp.pop %v2000
      %v2003 = vmul.f32 %v1992, %v2001
      %v2004 = vmul.f32 %v1994, %v2002
      %v2005 = vpack.c.bf16 %v2003, %v2003
      %v2006 = vpack.c.bf16 %v2004, %v2004
      %2007 = vrot.lane.b32.xlu0 %v1555, 108
      %v2008 = vpop.permute.xlu0 %2007
      %v2010 = vsel %vm1413, %v2005, 0
      %v2013 = vsel %vm1441, %v2008, 0
      %2015 = vmatpush.bf16.msra.mxu0 0
      %2016 = vmatpush.bf16.msra.mxu0 0
      %2017 = vmatpush.bf16.msra.mxu0 0
      %2018 = vmatpush.bf16.msra.mxu0 0
      %2019 = vmatpush.bf16.msra.mxu0 0
      %2020 = vmatpush.bf16.msra.mxu0 0
      %2021 = vmatpush.bf16.msra.mxu0 0
      %2022 = vmatpush.bf16.msra.mxu0 %v2013
      %2023 = vmatmul.bf16.gmra.mxu0 %v2010
      %v2024 = vpop.f32.mrf.mxu0
      %v2025 = vadd.f32 0.0, %v2024
      %v2026 = vpop.f32.mrf.mxu0
      %2027 = vdwg.mxu0
      %2028 = vrot.lane.b32.xlu0 %v1579, 108
      %v2029 = vpop.permute.xlu0 %2028
      %v2031 = vsel %vm1413, %v2006, 0
      %v2034 = vsel %vm1441, %v2029, 0
      %2036 = vmatpush.bf16.msra.mxu0 0
      %2037 = vmatpush.bf16.msra.mxu0 0
      %2038 = vmatpush.bf16.msra.mxu0 0
      %2039 = vmatpush.bf16.msra.mxu0 0
      %2040 = vmatpush.bf16.msra.mxu0 0
      %2041 = vmatpush.bf16.msra.mxu0 0
      %2042 = vmatpush.bf16.msra.mxu0 0
      %2043 = vmatpush.bf16.msra.mxu0 %v2034
      %2044 = vmatmul.bf16.gmra.mxu0 %v2031
      %v2045 = vpop.f32.mrf.mxu0
      %v2046 = vadd.f32 0.0, %v2045
      %v2047 = vpop.f32.mrf.mxu0
      %2048 = vdwg.mxu0
      %2049 = vrot.lane.b32.xlu0 %v1479, 104
      %v2050 = vpop.permute.xlu0 %2049
      %2051 = vrot.lane.b32.xlu0 %v1366, 72
      %v2052 = vpop.permute.xlu0 %2051
      %v2054 = vsel %vm1369, %v2050, 0
      %v2057 = vsel %vm1369, %v2052, 0
      %2059 = vmatpush.bf16.xpose.msra.mxu0 0
      %2060 = vmatpush.bf16.xpose.msra.mxu0 0
      %2061 = vmatpush.bf16.xpose.msra.mxu0 0
      %2062 = vmatpush.bf16.xpose.msra.mxu0 0
      %2063 = vmatpush.bf16.xpose.msra.mxu0 0
      %2064 = vmatpush.bf16.xpose.msra.mxu0 0
      %2065 = vmatpush.bf16.xpose.msra.mxu0 0
      %2066 = vmatpush.bf16.xpose.msra.mxu0 %v2057
      %2067 = vmatmul.bf16.gmra.mxu0 %v2054
      %v2068 = vpop.f32.mrf.mxu0
      %v2069 = vadd.f32 0.0, %v2068
      %v2070 = vpop.f32.mrf.mxu0
      %2071 = vdwg.mxu0
      %2072 = vrot.lane.b32.xlu0 %v1505, 104
      %v2073 = vpop.permute.xlu0 %2072
      %2074 = vrot.lane.b32.xlu0 %v1391, 72
      %v2075 = vpop.permute.xlu0 %2074
      %v2077 = vsel %vm1369, %v2073, 0
      %v2080 = vsel %vm1369, %v2075, 0
      %2082 = vmatpush.bf16.xpose.msra.mxu0 0
      %2083 = vmatpush.bf16.xpose.msra.mxu0 0
      %2084 = vmatpush.bf16.xpose.msra.mxu0 0
      %2085 = vmatpush.bf16.xpose.msra.mxu0 0
      %2086 = vmatpush.bf16.xpose.msra.mxu0 0
      %2087 = vmatpush.bf16.xpose.msra.mxu0 0
      %2088 = vmatpush.bf16.xpose.msra.mxu0 0
      %2089 = vmatpush.bf16.xpose.msra.mxu0 %v2080
      %2090 = vmatmul.bf16.gmra.mxu0 %v2077
      %v2091 = vpop.f32.mrf.mxu0
      %v2092 = vadd.f32 0.0, %v2091
      %v2093 = vpop.f32.mrf.mxu0
      %2094 = vdwg.mxu0
      %v2095 = vsel %vm1413, %v2069, -inf
      %2096 = vmax.xlane.f32.xlu0 %v2095
      %v2097 = vpop.xlane.xlu0 %2096
      %v2098 = vsel %vm1413, %v2092, -inf
      %2099 = vmax.xlane.f32.xlu0 %v2098
      %v2100 = vpop.xlane.xlu0 %2099
      %v2101 = vsub.f32 %v2069, %v2097
      %v2102 = vsub.f32 %v2092, %v2100
      %v2103 = vmul.f32 %v2101, 1.442695
      %v2104 = vpow.pop %v2103
      %v2105 = vmul.f32 %v2102, 1.442695
      %v2106 = vpow.pop %v2105
      %v2107 = vsel %vm1413, %v2104, 0.0
      %2108 = vadd.xlane.f32.xlu0 %v2107
      %v2109 = vpop.xlane.xlu0 %2108
      %v2110 = vsel %vm1413, %v2106, 0.0
      %2111 = vadd.xlane.f32.xlu0 %v2110
      %v2112 = vpop.xlane.xlu0 %2111
      %v2113 = vrcp.pop %v2109
      %v2114 = vrcp.pop %v2112
      %v2115 = vmul.f32 %v2104, %v2113
      %v2116 = vmul.f32 %v2106, %v2114
      %v2117 = vpack.c.bf16 %v2115, %v2115
      %v2118 = vpack.c.bf16 %v2116, %v2116
      %2119 = vrot.lane.b32.xlu0 %v1555, 104
      %v2120 = vpop.permute.xlu0 %2119
      %v2122 = vsel %vm1413, %v2117, 0
      %v2125 = vsel %vm1441, %v2120, 0
      %2127 = vmatpush.bf16.msra.mxu0 0
      %2128 = vmatpush.bf16.msra.mxu0 0
      %2129 = vmatpush.bf16.msra.mxu0 0
      %2130 = vmatpush.bf16.msra.mxu0 0
      %2131 = vmatpush.bf16.msra.mxu0 0
      %2132 = vmatpush.bf16.msra.mxu0 0
      %2133 = vmatpush.bf16.msra.mxu0 0
      %2134 = vmatpush.bf16.msra.mxu0 %v2125
      %2135 = vmatmul.bf16.gmra.mxu0 %v2122
      %v2136 = vpop.f32.mrf.mxu0
      %v2137 = vadd.f32 0.0, %v2136
      %v2138 = vpop.f32.mrf.mxu0
      %2139 = vdwg.mxu0
      %2140 = vrot.lane.b32.xlu0 %v1579, 104
      %v2141 = vpop.permute.xlu0 %2140
      %v2143 = vsel %vm1413, %v2118, 0
      %v2146 = vsel %vm1441, %v2141, 0
      %2148 = vmatpush.bf16.msra.mxu0 0
      %2149 = vmatpush.bf16.msra.mxu0 0
      %2150 = vmatpush.bf16.msra.mxu0 0
      %2151 = vmatpush.bf16.msra.mxu0 0
      %2152 = vmatpush.bf16.msra.mxu0 0
      %2153 = vmatpush.bf16.msra.mxu0 0
      %2154 = vmatpush.bf16.msra.mxu0 0
      %2155 = vmatpush.bf16.msra.mxu0 %v2146
      %2156 = vmatmul.bf16.gmra.mxu0 %v2143
      %v2157 = vpop.f32.mrf.mxu0
      %v2158 = vadd.f32 0.0, %v2157
      %v2159 = vpop.f32.mrf.mxu0
      %2160 = vdwg.mxu0
      %2161 = vrot.lane.b32.xlu0 %v1479, 100
      %v2162 = vpop.permute.xlu0 %2161
      %2163 = vrot.lane.b32.xlu0 %v1366, 68
      %v2164 = vpop.permute.xlu0 %2163
      %v2166 = vsel %vm1369, %v2162, 0
      %v2169 = vsel %vm1369, %v2164, 0
      %2171 = vmatpush.bf16.xpose.msra.mxu0 0
      %2172 = vmatpush.bf16.xpose.msra.mxu0 0
      %2173 = vmatpush.bf16.xpose.msra.mxu0 0
      %2174 = vmatpush.bf16.xpose.msra.mxu0 0
      %2175 = vmatpush.bf16.xpose.msra.mxu0 0
      %2176 = vmatpush.bf16.xpose.msra.mxu0 0
      %2177 = vmatpush.bf16.xpose.msra.mxu0 0
      %2178 = vmatpush.bf16.xpose.msra.mxu0 %v2169
      %2179 = vmatmul.bf16.gmra.mxu0 %v2166
      %v2180 = vpop.f32.mrf.mxu0
      %v2181 = vadd.f32 0.0, %v2180
      %v2182 = vpop.f32.mrf.mxu0
      %2183 = vdwg.mxu0
      %2184 = vrot.lane.b32.xlu0 %v1505, 100
      %v2185 = vpop.permute.xlu0 %2184
      %2186 = vrot.lane.b32.xlu0 %v1391, 68
      %v2187 = vpop.permute.xlu0 %2186
      %v2189 = vsel %vm1369, %v2185, 0
      %v2192 = vsel %vm1369, %v2187, 0
      %2194 = vmatpush.bf16.xpose.msra.mxu0 0
      %2195 = vmatpush.bf16.xpose.msra.mxu0 0
      %2196 = vmatpush.bf16.xpose.msra.mxu0 0
      %2197 = vmatpush.bf16.xpose.msra.mxu0 0
      %2198 = vmatpush.bf16.xpose.msra.mxu0 0
      %2199 = vmatpush.bf16.xpose.msra.mxu0 0
      %2200 = vmatpush.bf16.xpose.msra.mxu0 0
      %2201 = vmatpush.bf16.xpose.msra.mxu0 %v2192
      %2202 = vmatmul.bf16.gmra.mxu0 %v2189
      %v2203 = vpop.f32.mrf.mxu0
      %v2204 = vadd.f32 0.0, %v2203
      %v2205 = vpop.f32.mrf.mxu0
      %2206 = vdwg.mxu0
      %v2207 = vsel %vm1413, %v2181, -inf
      %2208 = vmax.xlane.f32.xlu0 %v2207
      %v2209 = vpop.xlane.xlu0 %2208
      %v2210 = vsel %vm1413, %v2204, -inf
      %2211 = vmax.xlane.f32.xlu0 %v2210
      %v2212 = vpop.xlane.xlu0 %2211
      %v2213 = vsub.f32 %v2181, %v2209
      %v2214 = vsub.f32 %v2204, %v2212
      %v2215 = vmul.f32 %v2213, 1.442695
      %v2216 = vpow.pop %v2215
      %v2217 = vmul.f32 %v2214, 1.442695
      %v2218 = vpow.pop %v2217
      %v2219 = vsel %vm1413, %v2216, 0.0
      %2220 = vadd.xlane.f32.xlu0 %v2219
      %v2221 = vpop.xlane.xlu0 %2220
      %v2222 = vsel %vm1413, %v2218, 0.0
      %2223 = vadd.xlane.f32.xlu0 %v2222
      %v2224 = vpop.xlane.xlu0 %2223
      %v2225 = vrcp.pop %v2221
      %v2226 = vrcp.pop %v2224
      %v2227 = vmul.f32 %v2216, %v2225
      %v2228 = vmul.f32 %v2218, %v2226
      %v2229 = vpack.c.bf16 %v2227, %v2227
      %v2230 = vpack.c.bf16 %v2228, %v2228
      %2231 = vrot.lane.b32.xlu0 %v1555, 100
      %v2232 = vpop.permute.xlu0 %2231
      %v2234 = vsel %vm1413, %v2229, 0
      %v2237 = vsel %vm1441, %v2232, 0
      %2239 = vmatpush.bf16.msra.mxu0 0
      %2240 = vmatpush.bf16.msra.mxu0 0
      %2241 = vmatpush.bf16.msra.mxu0 0
      %2242 = vmatpush.bf16.msra.mxu0 0
      %2243 = vmatpush.bf16.msra.mxu0 0
      %2244 = vmatpush.bf16.msra.mxu0 0
      %2245 = vmatpush.bf16.msra.mxu0 0
      %2246 = vmatpush.bf16.msra.mxu0 %v2237
      %2247 = vmatmul.bf16.gmra.mxu0 %v2234
      %v2248 = vpop.f32.mrf.mxu0
      %v2249 = vadd.f32 0.0, %v2248
      %v2250 = vpop.f32.mrf.mxu0
      %2251 = vdwg.mxu0
      %2252 = vrot.lane.b32.xlu0 %v1579, 100
      %v2253 = vpop.permute.xlu0 %2252
      %v2255 = vsel %vm1413, %v2230, 0
      %v2258 = vsel %vm1441, %v2253, 0
      %2260 = vmatpush.bf16.msra.mxu0 0
      %2261 = vmatpush.bf16.msra.mxu0 0
      %2262 = vmatpush.bf16.msra.mxu0 0
      %2263 = vmatpush.bf16.msra.mxu0 0
      %2264 = vmatpush.bf16.msra.mxu0 0
      %2265 = vmatpush.bf16.msra.mxu0 0
      %2266 = vmatpush.bf16.msra.mxu0 0
      %2267 = vmatpush.bf16.msra.mxu0 %v2258
      %2268 = vmatmul.bf16.gmra.mxu0 %v2255
      %v2269 = vpop.f32.mrf.mxu0
      %v2270 = vadd.f32 0.0, %v2269
      %v2271 = vpop.f32.mrf.mxu0
      %2272 = vdwg.mxu0
      %2275 = vrot.lane.b32.xlu0 %v1574, 4
      %v2276 = vpop.permute.xlu0 %2275
      %2277 = vrot.lane.b32.xlu0 %v1598, 4
      %v2278 = vpop.permute.xlu0 %2277
      %2283 = vrot.lane.b32.xlu0 %v1689, 8
      %v2284 = vpop.permute.xlu0 %2283
      %2285 = vrot.lane.b32.xlu0 %v1710, 8
      %v2286 = vpop.permute.xlu0 %2285
      %2291 = vrot.lane.b32.xlu0 %v1801, 12
      %v2292 = vpop.permute.xlu0 %2291
      %2293 = vrot.lane.b32.xlu0 %v1822, 12
      %v2294 = vpop.permute.xlu0 %2293
      %2299 = vrot.lane.b32.xlu0 %v1913, 16
      %v2300 = vpop.permute.xlu0 %2299
      %2301 = vrot.lane.b32.xlu0 %v1934, 16
      %v2302 = vpop.permute.xlu0 %2301
      %2307 = vrot.lane.b32.xlu0 %v2025, 20
      %v2308 = vpop.permute.xlu0 %2307
      %2309 = vrot.lane.b32.xlu0 %v2046, 20
      %v2310 = vpop.permute.xlu0 %2309
      %2315 = vrot.lane.b32.xlu0 %v2137, 24
      %v2316 = vpop.permute.xlu0 %2315
      %2317 = vrot.lane.b32.xlu0 %v2158, 24
      %v2318 = vpop.permute.xlu0 %2317
      %2323 = vrot.lane.b32.xlu0 %v2249, 28
      %v2324 = vpop.permute.xlu0 %2323
      %2325 = vrot.lane.b32.xlu0 %v2270, 28
      %v2326 = vpop.permute.xlu0 %2325
      %v2329 = vsel %vm1369, %v1455, %v2276
      %v2330 = vsel %vm1369, %v1474, %v2278
      %v2331 = vsel %vm1413, %v2329, %v2284
      %v2332 = vsel %vm1413, %v2330, %v2286
      %vm2333 = vcmask 97280
      %v2334 = vsel %vm2333, %v2331, %v2292
      %v2335 = vsel %vm2333, %v2332, %v2294
      %vm2336 = vcmask 130048
      %v2337 = vsel %vm2336, %v2334, %v2300
      %v2338 = vsel %vm2336, %v2335, %v2302
      %vm2339 = vcmask 162816
      %v2340 = vsel %vm2339, %v2337, %v2308
      %v2341 = vsel %vm2339, %v2338, %v2310
      %vm2342 = vcmask 195584
      %v2343 = vsel %vm2342, %v2340, %v2316
      %v2344 = vsel %vm2342, %v2341, %v2318
      %vm2345 = vcmask 228352
      %v2346 = vsel %vm2345, %v2343, %v2324
      %v2347 = vsel %vm2345, %v2344, %v2326
      %v2348 = vpack.c.bf16 %v2347, %v2346
      %v2349 = vld [vmem:[%s1025] sm:$0xf]
      %v2350 = vld [vmem:[%s1025 + $0x4] sm:$0xf]
      %v2351 = vld [vmem:[%s1025 + $0x8] sm:$0xf]
      %v2352 = vld [vmem:[%s1025 + $0xc] sm:$0xf]
      %v2353 = vld [vmem:[%s1032] sm:$0x1]
      %v2355 = vperm.slane %v2353, 0
      %v2361 = vunpack.c.l.b16 %v2349
      %v2362 = vunpack.c.l.b16 %v2350
      %v2363 = vunpack.c.l.b16 %v2351
      %v2364 = vunpack.c.l.b16 %v2352
      %v2365 = vpack.c.b16 %v2362, %v2361
      %v2366 = vpack.c.b16 %v2364, %v2363
      %v2370 = vsel %vm1300, %v2348, 0
      %2372 = vmatpush.bf16.msra.mxu0 0
      %2373 = vmatpush.bf16.msra.mxu0 0
      %2374 = vmatpush.bf16.msra.mxu0 0
      %2375 = vmatpush.bf16.msra.mxu0 0
      %2376 = vmatpush.bf16.msra.mxu0 0
      %2377 = vmatpush.bf16.msra.mxu0 0
      %2378 = vmatpush.bf16.msra.mxu0 %v2366
      %2379 = vmatpush.bf16.msra.mxu0 %v2365
      %2380 = vmatmul.bf16.gmra.mxu0 %v2370
      %v2381 = vpop.f32.mrf.mxu0
      %v2382 = vadd.f32 %v2355, %v2381
      %v2383 = vpop.f32.mrf.mxu0
      %v2384 = vadd.f32 %v2355, %v2383
      %2385 = vdwg.mxu0
      %v2386 = vadd.f32 %v1275, %v2382
      %v2387 = vadd.f32 %v1276, %v2384
      %v2388 = vld [vmem:[%s1071] sm:$0x1]
      %v2389 = vld [vmem:[%s1078] sm:$0x1]
      %v2390 = vsel %vm1300, %v2386, 0.0
      %2391 = vadd.xlane.f32.xlu0 %v2390
      %v2392 = vpop.xlane.xlu0 %2391
      %v2393 = vsel %vm1300, %v2387, 0.0
      %2394 = vadd.xlane.f32.xlu0 %v2393
      %v2395 = vpop.xlane.xlu0 %2394
      %v2396 = vrcp.pop 32.0
      %v2397 = vmul.f32 32.0, %v2396
      %v2398 = vsub.f32 1.0, %v2397
      %v2399 = vmul.f32 %v2396, %v2398
      %v2400 = vadd.f32 %v2396, %v2399
      %vm2401 = vweird.f32 %v2396
      %v2402 = vsel %vm2401, %v2396, %v2400
      %v2403 = vmul.f32 %v2392, %v2402
      %v2404 = vmul.f32 %v2395, %v2402
      %v2405 = vsub.f32 %v2386, %v2403
      %v2406 = vsub.f32 %v2387, %v2404
      %v2407 = vmul.f32 %v2405, %v2405
      %v2408 = vmul.f32 %v2406, %v2406
      %v2409 = vsel %vm1300, %v2407, 0.0
      %2410 = vadd.xlane.f32.xlu0 %v2409
      %v2411 = vpop.xlane.xlu0 %2410
      %v2412 = vsel %vm1300, %v2408, 0.0
      %2413 = vadd.xlane.f32.xlu0 %v2412
      %v2414 = vpop.xlane.xlu0 %2413
      %v2415 = vmul.f32 %v2411, %v2402
      %v2416 = vmul.f32 %v2414, %v2402
      %v2417 = vadd.f32 %v2415, 1e-05
      %v2418 = vadd.f32 %v2416, 1e-05
      %v2419 = vrsqrt.pop %v2417
      %v2420 = vmul.f32 %v2419, %v2417
      %v2421 = vmul.f32 %v2420, %v2419
      %v2422 = vmul.f32 0.5, %v2421
      %v2423 = vsub.f32 1.5, %v2422
      %v2424 = vmul.f32 %v2419, %v2423
      %vm2425 = vweird.f32 %v2417
      %vm2426 = vweird.f32 %v2419
      %vm2427 = vmor %vm2425, %vm2426
      %v2428 = vsel %vm2427, %v2419, %v2424
      %v2429 = vrsqrt.pop %v2418
      %v2430 = vmul.f32 %v2429, %v2418
      %v2431 = vmul.f32 %v2430, %v2429
      %v2432 = vmul.f32 0.5, %v2431
      %v2433 = vsub.f32 1.5, %v2432
      %v2434 = vmul.f32 %v2429, %v2433
      %vm2435 = vweird.f32 %v2418
      %vm2436 = vweird.f32 %v2429
      %vm2437 = vmor %vm2435, %vm2436
      %v2438 = vsel %vm2437, %v2429, %v2434
      %v2439 = vmul.f32 %v2405, %v2428
      %v2440 = vmul.f32 %v2406, %v2438
      %v2442 = vperm.slane %v2388, 0
      %v2444 = vmul.f32 %v2439, %v2442
      %v2445 = vmul.f32 %v2440, %v2442
      %v2447 = vperm.slane %v2389, 0
      %v2449 = vadd.f32 %v2444, %v2447
      %v2450 = vadd.f32 %v2445, %v2447
      %v2451 = vpack.c.bf16 %v2450, %v2449
      %v2452 = vld [vmem:[%s1041] sm:$0xf]
      %v2453 = vld [vmem:[%s1041 + $0x4] sm:$0xf]
      %v2454 = vld [vmem:[%s1041 + $0x8] sm:$0xf]
      %v2455 = vld [vmem:[%s1041 + $0xc] sm:$0xf]
      %v2456 = vld [vmem:[%s1048] sm:$0x1]
      %v2458 = vperm.slane %v2456, 0
      %v2464 = vunpack.c.l.b16 %v2452
      %v2465 = vunpack.c.l.b16 %v2453
      %v2466 = vunpack.c.l.b16 %v2454
      %v2467 = vunpack.c.l.b16 %v2455
      %v2468 = vpack.c.b16 %v2465, %v2464
      %v2469 = vpack.c.b16 %v2467, %v2466
      %v2473 = vsel %vm1300, %v2451, 0
      %2475 = vmatpush.bf16.msra.mxu0 0
      %2476 = vmatpush.bf16.msra.mxu0 0
      %2477 = vmatpush.bf16.msra.mxu0 0
      %2478 = vmatpush.bf16.msra.mxu0 0
      %2479 = vmatpush.bf16.msra.mxu0 0
      %2480 = vmatpush.bf16.msra.mxu0 0
      %2481 = vmatpush.bf16.msra.mxu0 %v2469
      %2482 = vmatpush.bf16.msra.mxu0 %v2468
      %2483 = vmatmul.bf16.gmra.mxu0 %v2473
      %v2484 = vpop.f32.mrf.mxu0
      %v2485 = vadd.f32 %v2458, %v2484
      %v2486 = vpop.f32.mrf.mxu0
      %v2487 = vadd.f32 %v2458, %v2486
      %2488 = vdwg.mxu0
      %v2489 = vmax.f32 %v2485, 0.0
      %v2490 = vmax.f32 %v2487, 0.0
      %v2491 = vpack.c.bf16 %v2490, %v2489
      %v2492 = vld [vmem:[%s1057] sm:$0xf]
      %v2493 = vld [vmem:[%s1057 + $0x4] sm:$0xf]
      %v2494 = vld [vmem:[%s1057 + $0x8] sm:$0xf]
      %v2495 = vld [vmem:[%s1057 + $0xc] sm:$0xf]
      %v2496 = vld [vmem:[%s1057 + $0x10] sm:$0xf]
      %v2497 = vld [vmem:[%s1057 + $0x14] sm:$0xf]
      %v2498 = vld [vmem:[%s1057 + $0x18] sm:$0xf]
      %v2499 = vld [vmem:[%s1057 + $0x1c] sm:$0xf]
      %v2500 = vld [vmem:[%s1057 + $0x20] sm:$0xf]
      %v2501 = vld [vmem:[%s1057 + $0x24] sm:$0xf]
      %v2502 = vld [vmem:[%s1057 + $0x28] sm:$0xf]
      %v2503 = vld [vmem:[%s1057 + $0x2c] sm:$0xf]
      %v2504 = vld [vmem:[%s1057 + $0x30] sm:$0xf]
      %v2505 = vld [vmem:[%s1057 + $0x34] sm:$0xf]
      %v2506 = vld [vmem:[%s1057 + $0x38] sm:$0xf]
      %v2507 = vld [vmem:[%s1057 + $0x3c] sm:$0xf]
      %v2508 = vld [vmem:[%s1064] sm:$0x1]
      %v2510 = vperm.slane %v2508, 0
      %v2528 = vunpack.c.l.b16 %v2492
      %v2529 = vunpack.c.l.b16 %v2493
      %v2530 = vunpack.c.l.b16 %v2494
      %v2531 = vunpack.c.l.b16 %v2495
      %v2532 = vunpack.c.l.b16 %v2496
      %v2533 = vunpack.c.l.b16 %v2497
      %v2534 = vunpack.c.l.b16 %v2498
      %v2535 = vunpack.c.l.b16 %v2499
      %v2536 = vunpack.c.l.b16 %v2500
      %v2537 = vunpack.c.l.b16 %v2501
      %v2538 = vunpack.c.l.b16 %v2502
      %v2539 = vunpack.c.l.b16 %v2503
      %v2540 = vunpack.c.l.b16 %v2504
      %v2541 = vunpack.c.l.b16 %v2505
      %v2542 = vunpack.c.l.b16 %v2506
      %v2543 = vunpack.c.l.b16 %v2507
      %v2544 = vpack.c.b16 %v2529, %v2528
      %v2545 = vpack.c.b16 %v2531, %v2530
      %v2546 = vpack.c.b16 %v2533, %v2532
      %v2547 = vpack.c.b16 %v2535, %v2534
      %v2548 = vpack.c.b16 %v2537, %v2536
      %v2549 = vpack.c.b16 %v2539, %v2538
      %v2550 = vpack.c.b16 %v2541, %v2540
      %v2551 = vpack.c.b16 %v2543, %v2542
      %2560 = vmatpush.bf16.msra.mxu0 %v2551
      %2561 = vmatpush.bf16.msra.mxu0 %v2550
      %2562 = vmatpush.bf16.msra.mxu0 %v2549
      %2563 = vmatpush.bf16.msra.mxu0 %v2548
      %2564 = vmatpush.bf16.msra.mxu0 %v2547
      %2565 = vmatpush.bf16.msra.mxu0 %v2546
      %2566 = vmatpush.bf16.msra.mxu0 %v2545
      %2567 = vmatpush.bf16.msra.mxu0 %v2544
      %2568 = vmatmul.bf16.gmra.mxu0 %v2491
      %v2569 = vpop.f32.mrf.mxu0
      %v2570 = vadd.f32 %v2510, %v2569
      %v2571 = vpop.f32.mrf.mxu0
      %v2572 = vadd.f32 %v2510, %v2571
      %2573 = vdwg.mxu0
      %v2574 = vadd.f32 %v2449, %v2570
      %v2575 = vadd.f32 %v2450, %v2572
      %v2576 = vld [vmem:[%s1085] sm:$0x1]
      %v2577 = vld [vmem:[%s1092] sm:$0x1]
      %v2578 = vsel %vm1300, %v2574, 0.0
      %2579 = vadd.xlane.f32.xlu0 %v2578
      %v2580 = vpop.xlane.xlu0 %2579
      %v2581 = vsel %vm1300, %v2575, 0.0
      %2582 = vadd.xlane.f32.xlu0 %v2581
      %v2583 = vpop.xlane.xlu0 %2582
      %v2584 = vmul.f32 %v2580, %v2402
      %v2585 = vmul.f32 %v2583, %v2402
      %v2586 = vsub.f32 %v2574, %v2584
      %v2587 = vsub.f32 %v2575, %v2585
      %v2588 = vmul.f32 %v2586, %v2586
      %v2589 = vmul.f32 %v2587, %v2587
      %v2590 = vsel %vm1300, %v2588, 0.0
      %2591 = vadd.xlane.f32.xlu0 %v2590
      %v2592 = vpop.xlane.xlu0 %2591
      %v2593 = vsel %vm1300, %v2589, 0.0
      %2594 = vadd.xlane.f32.xlu0 %v2593
      %v2595 = vpop.xlane.xlu0 %2594
      %v2596 = vmul.f32 %v2592, %v2402
      %v2597 = vmul.f32 %v2595, %v2402
      %v2598 = vadd.f32 %v2596, 1e-05
      %v2599 = vadd.f32 %v2597, 1e-05
      %v2600 = vrsqrt.pop %v2598
      %v2601 = vmul.f32 %v2600, %v2598
      %v2602 = vmul.f32 %v2601, %v2600
      %v2603 = vmul.f32 0.5, %v2602
      %v2604 = vsub.f32 1.5, %v2603
      %v2605 = vmul.f32 %v2600, %v2604
      %vm2606 = vweird.f32 %v2598
      %vm2607 = vweird.f32 %v2600
      %vm2608 = vmor %vm2606, %vm2607
      %v2609 = vsel %vm2608, %v2600, %v2605
      %v2610 = vrsqrt.pop %v2599
      %v2611 = vmul.f32 %v2610, %v2599
      %v2612 = vmul.f32 %v2611, %v2610
      %v2613 = vmul.f32 0.5, %v2612
      %v2614 = vsub.f32 1.5, %v2613
      %v2615 = vmul.f32 %v2610, %v2614
      %vm2616 = vweird.f32 %v2599
      %vm2617 = vweird.f32 %v2610
      %vm2618 = vmor %vm2616, %vm2617
      %v2619 = vsel %vm2618, %v2610, %v2615
      %v2620 = vmul.f32 %v2586, %v2609
      %v2621 = vmul.f32 %v2587, %v2619
      %v2623 = vperm.slane %v2576, 0
      %v2625 = vmul.f32 %v2620, %v2623
      %v2626 = vmul.f32 %v2621, %v2623
      %v2628 = vperm.slane %v2577, 0
      %v2630 = vadd.f32 %v2625, %v2628
      %v2631 = vadd.f32 %v2626, %v2628
      %2632 = vst.msk [vmem:[%s1097] sm:$0xff] %vm1300, %v2630
      %2633 = vst.msk [vmem:[%s1097 + $0x8] sm:$0xff] %vm1300, %v2631
      %p2634 = scmp.eq.s32.totalorder %s36, 1
      // Predicated region
      $region105: #{row_column_attention_encoder.1} parent=99 // pred_check
        %p2635 = pneg %p2634
      $region106: #{row_column_attention_encoder.1} parent=99 // pred_check_branch
        %2637 = sbr.rel (%p2635) target = $region108
      $region107: #{row_column_attention_encoder.1} parent=99 // pred_region
        %v2638 = vld [vmem:[%s18] sm:$0x1]
        %v2639 = vld [vmem:[%s19] sm:$0x1]
        %v2640 = vsel %vm1300, %v2630, 0.0
        %2641 = vadd.xlane.f32.xlu0 %v2640
        %v2642 = vpop.xlane.xlu0 %2641
        %v2643 = vsel %vm1300, %v2631, 0.0
        %2644 = vadd.xlane.f32.xlu0 %v2643
        %v2645 = vpop.xlane.xlu0 %2644
        %v2646 = vmul.f32 %v2642, %v2402
        %v2647 = vmul.f32 %v2645, %v2402
        %v2648 = vsub.f32 %v2630, %v2646
        %v2649 = vsub.f32 %v2631, %v2647
        %v2650 = vmul.f32 %v2648, %v2648
        %v2651 = vmul.f32 %v2649, %v2649
        %v2652 = vsel %vm1300, %v2650, 0.0
        %2653 = vadd.xlane.f32.xlu0 %v2652
        %v2654 = vpop.xlane.xlu0 %2653
        %v2655 = vsel %vm1300, %v2651, 0.0
        %2656 = vadd.xlane.f32.xlu0 %v2655
        %v2657 = vpop.xlane.xlu0 %2656
        %v2658 = vmul.f32 %v2654, %v2402
        %v2659 = vmul.f32 %v2657, %v2402
        %v2660 = vadd.f32 %v2658, 1e-05
        %v2661 = vadd.f32 %v2659, 1e-05
        %v2662 = vrsqrt.pop %v2660
        %v2663 = vmul.f32 %v2662, %v2660
        %v2664 = vmul.f32 %v2663, %v2662
        %v2665 = vmul.f32 0.5, %v2664
        %v2666 = vsub.f32 1.5, %v2665
        %v2667 = vmul.f32 %v2662, %v2666
        %vm2668 = vweird.f32 %v2660
        %vm2669 = vweird.f32 %v2662
        %vm2670 = vmor %vm2668, %vm2669
        %v2671 = vsel %vm2670, %v2662, %v2667
        %v2672 = vrsqrt.pop %v2661
        %v2673 = vmul.f32 %v2672, %v2661
        %v2674 = vmul.f32 %v2673, %v2672
        %v2675 = vmul.f32 0.5, %v2674
        %v2676 = vsub.f32 1.5, %v2675
        %v2677 = vmul.f32 %v2672, %v2676
        %vm2678 = vweird.f32 %v2661
        %vm2679 = vweird.f32 %v2672
        %vm2680 = vmor %vm2678, %vm2679
        %v2681 = vsel %vm2680, %v2672, %v2677
        %v2682 = vmul.f32 %v2648, %v2671
        %v2683 = vmul.f32 %v2649, %v2681
        %v2685 = vperm.slane %v2638, 0
        %v2687 = vmul.f32 %v2682, %v2685
        %v2688 = vmul.f32 %v2683, %v2685
        %v2690 = vperm.slane %v2639, 0
        %v2692 = vadd.f32 %v2687, %v2690
        %v2693 = vadd.f32 %v2688, %v2690
        %2694 = vst.msk [vmem:[%s1097] sm:$0xff] %vm1300, %v2692
        %2695 = vst.msk [vmem:[%s1097 + $0x8] sm:$0xff] %vm1300, %v2693
      $region108: #{row_column_attention_encoder.1} parent=99 // pred_fallthru
        _
      %p2696 = scmp.lt.s32.totalorder %s35, 1
      %s2697 = scalar_select %p2696, %s35, 1
      %s2698 = smul.addr %s2697, 2
      %s2699 = smul.addr %s2698, 8
      %s2700 = scalar_lea.vmem %s20, %s2699
      // Predicated region
      $region109: #{row_column_attention_encoder.1} parent=99 // pred_check
        %p2701 = pneg %p594
      $region110: #{row_column_attention_encoder.1} parent=99 // pred_check_branch
        %2703 = sbr.rel (%p2701) target = $region112
      $region111: #{row_column_attention_encoder.1} parent=99 // pred_region
        _
      $region112: #{row_column_attention_encoder.1} parent=99 // pred_fallthru
        _
    $region100: #{row_column_attention_encoder.1} parent=5 // pred_fallthru
      _
    %p2704 = scmp.le.s32.totalorder 2, %s26
    // Predicated region
    $region113: #{row_column_attention_encoder.1} parent=5 // pred_check
      %p2705 = pneg %p2704
    $region114: #{row_column_attention_encoder.1} parent=5 // pred_check_branch
      %2707 = sbr.rel (%p2705) target = $region116
    $region115: #{row_column_attention_encoder.1} parent=5 // pred_region
      %s2708 = ssub.s32 %s26, 2
      // Predicated region
      $region117: #{row_column_attention_encoder.1} parent=115 // pred_check
        %p2709 = pneg %p600
      $region118: #{row_column_attention_encoder.1} parent=115 // pred_check_branch
        %2711 = sbr.rel (%p2709) target = $region120
      $region119: #{row_column_attention_encoder.1} parent=115 // pred_region
        %p2712 = scmp.lt.s32.totalorder %s37, 1
        %s2713 = scalar_select %p2712, %s37, 1
        %s2714 = smul.addr %s2713, 2
        %s2715 = smul.addr %s2714, 8
        %s2716 = scalar_lea.vmem %s20, %s2715
      $region120: #{row_column_attention_encoder.1} parent=115 // pred_fallthru
        _
    $region116: #{row_column_attention_encoder.1} parent=5 // pred_fallthru
      _
  $region6: #{row_column_attention_encoder.1} parent=0 // loop_footer
    %s30 = sadd.s32 1, %s26
  $region7: #{row_column_attention_encoder.1} parent=0 // loop_footer_branch
    %25 = sbr.rel target = $region3
  $region8: #{row_column_attention_encoder.1} parent=0 // loop_exit
    _

</llo_original>
